<compile_context>
chip_gen: v7x
topology: tpu7x:2x2x1
jax: 0.10.0
libtpu: 0.0.40
codegen_flags: <defaults>
</compile_context>

<pallas_src>
import jax
import jax.numpy as jnp
from jax.experimental import pallas as pl
from jax.experimental.pallas import tpu as pltpu

INPUT_DIM = 10752   # default of the PyTorch module
H1 = 512
H2 = 32
H3 = 1
HN = H1 // 2        # per-TensorCore half of Linear1's output dim
BM_MAX = 256        # batch-block cap (VMEM safety on v7x)


def learner_kernel(x_ref, w1_ref, scale_ref, b1_ref, w23_ref, o_ref):
    """One (H1-half, batch-block) tile of the fused MLP forward.

    Linear1 half on the MXU (bf16 x @ dequantized-int8 W1 half, f32 accum),
    per-channel dequant scale + bias + ReLU, then the fused Linear2*Linear3
    partial product.  b23 + sigmoid happen outside after both halves are
    summed.  Dropout layers are identity (eval mode).
    """
    # int8 -> bf16 dequant (VPU) + bf16 matmul (MXU) with f32 accumulation.
    acc = jnp.dot(x_ref[...], w1_ref[...].astype(jnp.bfloat16),
                  preferred_element_type=jnp.float32)
    # per-output-channel scale + bias + ReLU  (dropout = identity in eval)
    h1 = jnp.maximum(acc * scale_ref[...] + b1_ref[...], 0.0)
    # fused Linear2@Linear3 partial for this H1 half (f32)
    partial = jnp.dot(h1, w23_ref[...], preferred_element_type=jnp.float32)
    o_ref[...] = partial[None]      # block is (1, BM, 1)


@jax.jit
def learner_forward(x, w1_q, w1_scale, b1, w23, b23):
    """x: (batch, INPUT_DIM) float32/bf16.  w1_q int8 (in,out); w23/b23 fused."""
    batch = x.shape[0]
    # Pad batch to a bf16-sublane-friendly multiple of 16, cap the block size.
    b_pad = max(16, ((batch + 15) // 16) * 16)
    bm = min(b_pad, BM_MAX)
    b_pad = ((b_pad + bm - 1) // bm) * bm
    n_bblk = b_pad // bm

    x_p = jnp.zeros((b_pad, INPUT_DIM), jnp.bfloat16).at[:batch].set(
        x.astype(jnp.bfloat16))

    grid = (2, n_bblk)   # (H1 halves [parallel], batch blocks [arbitrary])

    # Explicit VMEM budget: double-buffered bf16 x tile + double-buffered int8
    # W1 half + in-kernel bf16 dequant temporary + small resident params +
    # partial outputs + compiler slack.
    small_bytes = 4 * (HN + HN + HN)            # scale, b1, w23 halves (f32)
    vmem_limit = int(
        2 * (bm * INPUT_DIM * 2)                # x tiles (bf16, 2-buffered)
        + 2 * (INPUT_DIM * HN)                  # W1 int8 half tiles
        + INPUT_DIM * HN * 2                    # int8->bf16 dequant temp
        + 4 * small_bytes                       # small params (2-buffered)
        + 4 * bm * 4                            # partial output blocks
        + (8 << 20))                            # slack / internal scratch

    cost = pl.CostEstimate(
        flops=2 * b_pad * (INPUT_DIM * H1 + H1 * H3),
        transcendentals=0,                      # sigmoid is in the XLA epilogue
        bytes_accessed=(2 * b_pad * INPUT_DIM * 2   # x streamed once per half
                        + INPUT_DIM * H1            # W1 (int8)
                        + 3 * H1 * 4                # scale, b1, w23
                        + 2 * b_pad * 4))           # partial outputs

    partials = pl.pallas_call(
        learner_kernel,
        out_shape=jax.ShapeDtypeStruct((2, b_pad, 1), jnp.float32),
        grid_spec=pltpu.PrefetchScalarGridSpec(
            num_scalar_prefetch=0,
            grid=grid,
            in_specs=[
                pl.BlockSpec((bm, INPUT_DIM), lambda n, b: (b, 0)),  # x (bf16)
                pl.BlockSpec((INPUT_DIM, HN), lambda n, b: (0, n)),  # W1 half (int8)
                pl.BlockSpec((1, HN),         lambda n, b: (0, n)),  # scale half
                pl.BlockSpec((1, HN),         lambda n, b: (0, n)),  # b1 half
                pl.BlockSpec((HN, 1),         lambda n, b: (n, 0)),  # W23 half
            ],
            out_specs=pl.BlockSpec((1, bm, 1), lambda n, b: (n, b, 0)),
        ),
        compiler_params=pltpu.CompilerParams(
            dimension_semantics=("parallel", "arbitrary"),
            vmem_limit_bytes=vmem_limit),
        cost_estimate=cost,
    )(x_p, w1_q, w1_scale, b1, w23)

    # Sum the two H1-half partials, add the fused bias, sigmoid (tiny epilogue).
    out = jax.nn.sigmoid(partials[0] + partials[1] + b23)
    return out[:batch]


# ----------------------------------------------------------------------------
# Parameter construction / preparation (one-time, outside the jitted forward)
# ----------------------------------------------------------------------------

def xavier_normal(key, fan_in, fan_out):
    # matches nn.init.xavier_normal_ : std = sqrt(2 / (fan_in + fan_out))
    std = (2.0 / (fan_in + fan_out)) ** 0.5
    # stored as (in, out) == transpose of torch's (out, in)
    return std * jax.random.normal(key, (fan_in, fan_out), jnp.float32)


def init_params(key):
    k1, k2, k3, kb1, kb2, kb3 = jax.random.split(key, 6)
    w1 = xavier_normal(k1, INPUT_DIM, H1)
    b1 = 0.01 * jax.random.normal(kb1, (1, H1), jnp.float32)
    w2 = xavier_normal(k2, H1, H2)
    b2 = 0.01 * jax.random.normal(kb2, (1, H2), jnp.float32)
    w3 = xavier_normal(k3, H2, H3)
    b3 = 0.01 * jax.random.normal(kb3, (1, H3), jnp.float32)
    return w1, b1, w2, b2, w3, b3


def quantize_w1(w1_f32):
    """Symmetric per-output-channel int8 quantization of W1."""
    scale = jnp.maximum(jnp.max(jnp.abs(w1_f32), axis=0, keepdims=True),
                        1e-8) / 127.0
    w1_q = jnp.clip(jnp.round(w1_f32 / scale), -127, 127).astype(jnp.int8)
    return w1_q, scale.astype(jnp.float32)


def prepare_params(w1, b1, w2, b2, w3, b3):
    """One-time prep: quantize W1, fuse Linear2*Linear3 (exact in eval mode)."""
    w1_q, w1_scale = quantize_w1(w1)
    w23 = jnp.dot(w2, w3, preferred_element_type=jnp.float32)   # (H1, 1)
    b23 = jnp.dot(b2, w3, preferred_element_type=jnp.float32) + b3  # (1, 1)
    return w1_q, w1_scale, b1, w23, b23


def reference_forward(x, w1_q, w1_scale, b1, w2, b2, w3, b3):
    """Unfused reference applying the same W1 quantization as the kernel."""
    acc = jnp.dot(x.astype(jnp.bfloat16), w1_q.astype(jnp.bfloat16),
                  preferred_element_type=jnp.float32)
    h1 = jnp.maximum(acc * w1_scale + b1, 0.0)
    h2 = jnp.dot(h1, w2, preferred_element_type=jnp.float32) + b2
    h3 = jnp.dot(h2, w3, preferred_element_type=jnp.float32) + b3
    return jax.nn.sigmoid(h3)


if __name__ == "__main__":
    key = jax.random.PRNGKey(0)
    kx, kp = jax.random.split(key)

    batch = 2
    x = jax.random.normal(kx, (batch, INPUT_DIM), jnp.float32)

    w1, b1, w2, b2, w3, b3 = init_params(kp)
    w1_q, w1_scale, b1_p, w23, b23 = prepare_params(w1, b1, w2, b2, w3, b3)

    out = jax.block_until_ready(
        learner_forward(x, w1_q, w1_scale, b1_p, w23, b23))
    ref = reference_forward(x, w1_q, w1_scale, b1, w2, b2, w3, b3)

    assert out.shape == (batch, 1), out.shape
    assert bool(jnp.all(jnp.isfinite(out)))
    assert jnp.allclose(out, ref, atol=2e-3, rtol=2e-3), (out, ref)

    print("KERNEL_OK")
</pallas_src>

<mosaic_0001>
module attributes {stable_mosaic.version = 11 : i64} {
  func.func @learner_kernel(%arg0: i32, %arg1: i32, %arg2: memref<16x10752xbf16, #tpu.memory_space<vmem>>, %arg3: memref<10752x256xi8, #tpu.memory_space<vmem>>, %arg4: memref<1x256xf32, #tpu.memory_space<vmem>>, %arg5: memref<1x256xf32, #tpu.memory_space<vmem>>, %arg6: memref<256x1xf32, #tpu.memory_space<vmem>>, %arg7: memref<1x16x1xf32, #tpu.memory_space<vmem>>) attributes {dimension_semantics = [#tpu.dimension_semantics<parallel>, #tpu.dimension_semantics<arbitrary>], iteration_bounds = array<i64: 2, 1>, scalar_prefetch = 0 : i64, scratch_operands = 0 : i64, tpu.core_type = #tpu.core_type<tc>, window_params = [{transform_indices = @transform_0, window_bounds = array<i64: 16, 10752>}, {transform_indices = @transform_1, window_bounds = array<i64: 10752, 256>}, {transform_indices = @transform_2, window_bounds = array<i64: 1, 256>}, {transform_indices = @transform_3, window_bounds = array<i64: 1, 256>}, {transform_indices = @transform_4, window_bounds = array<i64: 256, 1>}, {transform_indices = @transform_5, window_bounds = array<i64: 1, 16, 1>}]} {
    %c0 = arith.constant 0 : index
    %c0_0 = arith.constant 0 : index
    %0 = vector.load %arg2[%c0, %c0_0] : memref<16x10752xbf16, #tpu.memory_space<vmem>>, vector<16x10752xbf16>
    %c0_1 = arith.constant 0 : index
    %c0_2 = arith.constant 0 : index
    %1 = vector.load %arg3[%c0_1, %c0_2] : memref<10752x256xi8, #tpu.memory_space<vmem>>, vector<10752x256xi8>
    %2 = arith.sitofp %1 : vector<10752x256xi8> to vector<10752x256xbf16>
    %cst = arith.constant dense<0.000000e+00> : vector<16x256xf32>
    %3 = tpu.matmul %0, %2, %cst {dimension_numbers = #tpu.dot_dimension_numbers<[1], [0], [0], [1], [0, 0, 1, 1], [], []>} : vector<16x10752xbf16>, vector<10752x256xbf16>, vector<16x256xf32> -> vector<16x256xf32>
    %c0_3 = arith.constant 0 : index
    %c0_4 = arith.constant 0 : index
    %4 = vector.load %arg4[%c0_3, %c0_4] : memref<1x256xf32, #tpu.memory_space<vmem>>, vector<1x256xf32>
    %5 = vector.broadcast %4 : vector<1x256xf32> to vector<16x256xf32>
    %6 = arith.mulf %3, %5 : vector<16x256xf32>
    %c0_5 = arith.constant 0 : index
    %c0_6 = arith.constant 0 : index
    %7 = vector.load %arg5[%c0_5, %c0_6] : memref<1x256xf32, #tpu.memory_space<vmem>>, vector<1x256xf32>
    %8 = vector.broadcast %7 : vector<1x256xf32> to vector<16x256xf32>
    %9 = arith.addf %6, %8 : vector<16x256xf32>
    %cst_7 = arith.constant 0.000000e+00 : f32
    %10 = vector.broadcast %cst_7 : f32 to vector<16x256xf32>
    %11 = arith.maximumf %9, %10 : vector<16x256xf32>
    %c0_8 = arith.constant 0 : index
    %c0_9 = arith.constant 0 : index
    %12 = vector.load %arg6[%c0_8, %c0_9] : memref<256x1xf32, #tpu.memory_space<vmem>>, vector<256x1xf32>
    %cst_10 = arith.constant dense<0.000000e+00> : vector<16x1xf32>
    %13 = tpu.matmul %11, %12, %cst_10 {dimension_numbers = #tpu.dot_dimension_numbers<[1], [0], [0], [1], [0, 0, 1, 1], [], []>} : vector<16x256xf32>, vector<256x1xf32>, vector<16x1xf32> -> vector<16x1xf32>
    %14 = vector.shape_cast %13 : vector<16x1xf32> to vector<1x16x1xf32>
    %c0_11 = arith.constant 0 : index
    %c0_12 = arith.constant 0 : index
    %c0_13 = arith.constant 0 : index
    %15 = vector.load %arg7[%c0_11, %c0_12, %c0_13] : memref<1x16x1xf32, #tpu.memory_space<vmem>>, vector<1x16x1xf32>
    tpu.vector_store %arg7[%c0_11, %c0_12, %c0_13], %14 {strides = array<i32>} : memref<1x16x1xf32, #tpu.memory_space<vmem>>, vector<1x16x1xf32>,
    return
  }
  func.func @transform_0(%arg0: i32, %arg1: i32) -> (i32, i32) {
    %c0_i32 = arith.constant 0 : i32
    %c0_i32_0 = arith.constant 0 : i32
    return %arg1, %c0_i32 : i32, i32
  }
  func.func @transform_1(%arg0: i32, %arg1: i32) -> (i32, i32) {
    %c0_i32 = arith.constant 0 : i32
    %c0_i32_0 = arith.constant 0 : i32
    return %c0_i32, %arg0 : i32, i32
  }
  func.func @transform_2(%arg0: i32, %arg1: i32) -> (i32, i32) {
    %c0_i32 = arith.constant 0 : i32
    %c0_i32_0 = arith.constant 0 : i32
    return %c0_i32, %arg0 : i32, i32
  }
  func.func @transform_3(%arg0: i32, %arg1: i32) -> (i32, i32) {
    %c0_i32 = arith.constant 0 : i32
    %c0_i32_0 = arith.constant 0 : i32
    return %c0_i32, %arg0 : i32, i32
  }
  func.func @transform_4(%arg0: i32, %arg1: i32) -> (i32, i32) {
    %c0_i32 = arith.constant 0 : i32
    %c0_i32_0 = arith.constant 0 : i32
    return %arg0, %c0_i32 : i32, i32
  }
  func.func @transform_5(%arg0: i32, %arg1: i32) -> (i32, i32, i32) {
    %c0_i32 = arith.constant 0 : i32
    %c0_i32_0 = arith.constant 0 : i32
    return %arg0, %arg1, %c0_i32 : i32, i32, i32
  }
}

</mosaic_0001>

<llo_original>
// kernel: learner_forward.1
$region0: #{learner_forward.1}
  #allocation0 [shape = 'u32[]', space=smem, size = 0x4, offset = 0x4, fixed_abs, tag = 'smem constant byte address 0x4 - core index']
  #allocation1 [shape = 'u32[144,128]{1,0:T(1,128)}', space=vmem, size = 0x12000, scoped, tag = 'internal scratch']
  %s0 = inlined_call_operand.vmem [shape: bf16[16,10752], index: 0, kind: input, shape index: {}]
  %s1 = inlined_call_operand.hbm [shape: s8[10752,512], index: 1, kind: input, shape index: {}]
  %s2 = inlined_call_operand.hbm [shape: f32[1,512], index: 2, kind: input, shape index: {}]
  %s3 = inlined_call_operand.hbm [shape: f32[1,512], index: 3, kind: input, shape index: {}]
  %s4 = inlined_call_operand.vmem [shape: f32[512,1], index: 4, kind: input, shape index: {}]
  %s5 = inlined_call_operand.vmem [shape: f32[2,16,1], index: 5, kind: output, shape index: {}]
  %s6 = sld [smem:[#allocation0]]
  $region65: #{learner_forward.1} parent=0
    _
  %s8 = ssub.s32 1, %s6
  %s9 = scalar_select 0, %s8, %s6
  $region1: #{learner_forward.1} parent=0
    #allocation2 [shape = 'u8[5505024]{0}', space=vmem, size = 0x540000, scoped, tag = 'input window, operand 1']
    #allocation3 [shape = 's32[2]{0}', space=sflag, size = 0x8, scoped, tag = 'scoped memory for learner_forward.1']
    #allocation4 [shape = 'u8[2048]{0}', space=vmem, size = 0x800, scoped, tag = 'input window, operand 2']
    #allocation5 [shape = 's32[2]{0}', space=sflag, size = 0x8, scoped, tag = 'scoped memory for learner_forward.1']
    #allocation6 [shape = 'u8[2048]{0}', space=vmem, size = 0x800, scoped, tag = 'input window, operand 3']
    %10 = vsyncpa [#allocation3], 0
    %s11 = scalar_lea.sflag [#allocation3], 1
    %12 = vsyncpa %s11, 0
    %13 = vsyncpa [#allocation5], 0
    %s14 = scalar_lea.sflag [#allocation5], 1
    %15 = vsyncpa %s14, 0
    loop: start=0, step=1, limit=4
    $region2: #{learner_forward.1} parent=1 // loop_pre_header
      _
    $region3: #{learner_forward.1} parent=1 // loop_header
      %s17 = sphi 0, %s21
      %p18 = scmp.ge.s32.totalorder %s17, 4
      %s24 = sphi 0, %s36
      %s25 = sphi 0, %s32
      %s26 = sphi 0, %s24
      %s27 = sphi 0, %s25
      %s28 = sphi 0, %s26
      %s29 = sphi 0, %s27
      %s39 = sphi 0, %s41
      %s42 = sphi 0, %s39
      %s43 = sphi 0, %s42
      %s59 = sphi 0, %s43
      %s65 = sphi 0, %s67
      %s68 = sphi 0, %s65
      %s69 = sphi 0, %s68
      %s85 = sphi 0, %s69
      %s91 = sphi 0, %s93
      %s94 = sphi 0, %s91
      %s95 = sphi 0, %s94
      %s111 = sphi 0, %s95
      %s117 = sphi 0, %s119
      %s120 = sphi 0, %s117
      %s121 = sphi 0, %s120
      %s137 = sphi 0, %s121
      %s143 = sphi 0, %s145
      %s146 = sphi 0, %s143
      %s147 = sphi 0, %s146
      %s163 = sphi 0, %s147
      %s171 = sphi 0, %s173
      %s174 = sphi 0, %s171
      %s175 = sphi 0, %s174
      %s191 = sphi 0, %s175
    $region4: #{learner_forward.1} parent=1 // loop_header_branch
      %20 = sbr.rel (%p18) target = $region8
    $region5: #{learner_forward.1} parent=1 // loop_body
      %s22 = ssub.s32 %s17, 1
      %s23 = ssub.s32 %s17, 2
      %s30 = sadd.s32 1, %s25
      %p31 = scmp.ge.s32.totalorder %s30, 1
      %s32 = scalar_select %p31, 0, %s30
      %s33 = sadd.s32 1, %s24
      %s34 = scalar_select %p31, %s33, %s24
      %p35 = scmp.ge.s32.totalorder %s34, 2
      %s36 = scalar_select %p35, 0, %s34
      %s37 = ssub.s32 %s25, %s32
      %p38 = scmp.eq.s32.totalorder %s37, 0
      %s40 = sadd.s32 %s39, 1
      %s41 = scalar_select %p38, %s39, %s40
      %p44 = pneg %p38
      %p45 = scmp.eq.s32.totalorder %s17, 1
      %p46 = por %p44, %p45
      %p47 = scmp.ne.s32.totalorder %s39, %s42
      %p48 = scmp.eq.s32.totalorder %s17, 0
      %p49 = por %p47, %p48
      %p50 = scmp.ne.s32.totalorder %s39, %s42
      %p51 = scmp.eq.s32.totalorder %s22, 1
      %p52 = por %p50, %p51
      %p53 = scmp.ne.s32.totalorder %s42, %s43
      %p54 = scmp.eq.s32.totalorder %s22, 0
      %p55 = por %p53, %p54
      %p56 = scmp.ne.s32.totalorder %s42, %s43
      %p57 = scmp.eq.s32.totalorder %s23, 1
      %p58 = por %p56, %p57
      %p60 = scmp.ne.s32.totalorder %s43, %s59
      %p61 = scmp.eq.s32.totalorder %s23, 0
      %p62 = por %p60, %p61
      %s63 = ssub.s32 %s24, %s36
      %p64 = scmp.eq.s32.totalorder %s63, 0
      %s66 = sadd.s32 %s65, 1
      %s67 = scalar_select %p64, %s65, %s66
      %p70 = pneg %p64
      %p71 = scmp.eq.s32.totalorder %s17, 1
      %p72 = por %p70, %p71
      %p73 = scmp.ne.s32.totalorder %s65, %s68
      %p74 = scmp.eq.s32.totalorder %s17, 0
      %p75 = por %p73, %p74
      %p76 = scmp.ne.s32.totalorder %s65, %s68
      %p77 = scmp.eq.s32.totalorder %s22, 1
      %p78 = por %p76, %p77
      %p79 = scmp.ne.s32.totalorder %s68, %s69
      %p80 = scmp.eq.s32.totalorder %s22, 0
      %p81 = por %p79, %p80
      %p82 = scmp.ne.s32.totalorder %s68, %s69
      %p83 = scmp.eq.s32.totalorder %s23, 1
      %p84 = por %p82, %p83
      %p86 = scmp.ne.s32.totalorder %s69, %s85
      %p87 = scmp.eq.s32.totalorder %s23, 0
      %p88 = por %p86, %p87
      %s89 = ssub.s32 %s24, %s36
      %p90 = scmp.eq.s32.totalorder %s89, 0
      %s92 = sadd.s32 %s91, 1
      %s93 = scalar_select %p90, %s91, %s92
      %p96 = pneg %p90
      %p97 = scmp.eq.s32.totalorder %s17, 1
      %p98 = por %p96, %p97
      %p99 = scmp.ne.s32.totalorder %s91, %s94
      %p100 = scmp.eq.s32.totalorder %s17, 0
      %p101 = por %p99, %p100
      %p102 = scmp.ne.s32.totalorder %s91, %s94
      %p103 = scmp.eq.s32.totalorder %s22, 1
      %p104 = por %p102, %p103
      %p105 = scmp.ne.s32.totalorder %s94, %s95
      %p106 = scmp.eq.s32.totalorder %s22, 0
      %p107 = por %p105, %p106
      %p108 = scmp.ne.s32.totalorder %s94, %s95
      %p109 = scmp.eq.s32.totalorder %s23, 1
      %p110 = por %p108, %p109
      %p112 = scmp.ne.s32.totalorder %s95, %s111
      %p113 = scmp.eq.s32.totalorder %s23, 0
      %p114 = por %p112, %p113
      %s115 = ssub.s32 %s24, %s36
      %p116 = scmp.eq.s32.totalorder %s115, 0
      %s118 = sadd.s32 %s117, 1
      %s119 = scalar_select %p116, %s117, %s118
      %p122 = pneg %p116
      %p123 = scmp.eq.s32.totalorder %s17, 1
      %p124 = por %p122, %p123
      %p125 = scmp.ne.s32.totalorder %s117, %s120
      %p126 = scmp.eq.s32.totalorder %s17, 0
      %p127 = por %p125, %p126
      %p128 = scmp.ne.s32.totalorder %s117, %s120
      %p129 = scmp.eq.s32.totalorder %s22, 1
      %p130 = por %p128, %p129
      %p131 = scmp.ne.s32.totalorder %s120, %s121
      %p132 = scmp.eq.s32.totalorder %s22, 0
      %p133 = por %p131, %p132
      %p134 = scmp.ne.s32.totalorder %s120, %s121
      %p135 = scmp.eq.s32.totalorder %s23, 1
      %p136 = por %p134, %p135
      %p138 = scmp.ne.s32.totalorder %s121, %s137
      %p139 = scmp.eq.s32.totalorder %s23, 0
      %p140 = por %p138, %p139
      %s141 = ssub.s32 %s24, %s36
      %p142 = scmp.eq.s32.totalorder %s141, 0
      %s144 = sadd.s32 %s143, 1
      %s145 = scalar_select %p142, %s143, %s144
      %p148 = pneg %p142
      %p149 = scmp.eq.s32.totalorder %s17, 1
      %p150 = por %p148, %p149
      %p151 = scmp.ne.s32.totalorder %s143, %s146
      %p152 = scmp.eq.s32.totalorder %s17, 0
      %p153 = por %p151, %p152
      %p154 = scmp.ne.s32.totalorder %s143, %s146
      %p155 = scmp.eq.s32.totalorder %s22, 1
      %p156 = por %p154, %p155
      %p157 = scmp.ne.s32.totalorder %s146, %s147
      %p158 = scmp.eq.s32.totalorder %s22, 0
      %p159 = por %p157, %p158
      %p160 = scmp.ne.s32.totalorder %s146, %s147
      %p161 = scmp.eq.s32.totalorder %s23, 1
      %p162 = por %p160, %p161
      %p164 = scmp.ne.s32.totalorder %s147, %s163
      %p165 = scmp.eq.s32.totalorder %s23, 0
      %p166 = por %p164, %p165
      %s167 = ssub.s32 %s24, %s36
      %s168 = ssub.s32 %s25, %s32
      %s169 = sor.u32 %s167, %s168
      %p170 = scmp.eq.s32.totalorder %s169, 0
      %s172 = sadd.s32 %s171, 1
      %s173 = scalar_select %p170, %s171, %s172
      %p176 = pneg %p170
      %p177 = scmp.eq.s32.totalorder %s17, 1
      %p178 = por %p176, %p177
      %p179 = scmp.ne.s32.totalorder %s171, %s174
      %p180 = scmp.eq.s32.totalorder %s17, 0
      %p181 = por %p179, %p180
      %p182 = scmp.ne.s32.totalorder %s171, %s174
      %p183 = scmp.eq.s32.totalorder %s22, 1
      %p184 = por %p182, %p183
      %p185 = scmp.ne.s32.totalorder %s174, %s175
      %p186 = scmp.eq.s32.totalorder %s22, 0
      %p187 = por %p185, %p186
      %p188 = scmp.ne.s32.totalorder %s174, %s175
      %p189 = scmp.eq.s32.totalorder %s23, 1
      %p190 = por %p188, %p189
      %p192 = scmp.ne.s32.totalorder %s175, %s191
      %p193 = scmp.eq.s32.totalorder %s23, 0
      %p194 = por %p192, %p193
      %p195 = scmp.le.s32.totalorder 1, %s17
      %p196 = scmp.lt.s32.totalorder %s17, 3
      %p197 = pnand %p195, %p196
      %p198 = pneg %p197
      // Predicated region
      $region9: #{learner_forward.1} parent=5 // pred_check
        _
      $region10: #{learner_forward.1} parent=5 // pred_check_branch
        %200 = sbr.rel (%p197) target = $region12
      $region11: #{learner_forward.1} parent=5 // pred_region
        %s201 = ssub.s32 %s17, 1
        // Predicated region
        $region13: #{learner_forward.1} parent=11 // pred_check
          %p202 = pneg %p55
        $region14: #{learner_forward.1} parent=11 // pred_check_branch
          %204 = sbr.rel (%p202) target = $region16
        $region15: #{learner_forward.1} parent=11 // pred_region
          %s205 = smul.u32 2, %s27
          %p206 = scmp.lt.s32.totalorder %s205, 1
          %s207 = scalar_select %p206, %s205, 1
          %s208 = smul.addr %s207, 84
          %s209 = smul.addr %s208, 4
          %s210 = scalar_lea.vmem %s0, %s209
          %s211 = smul.u32 2, %s27
        $region16: #{learner_forward.1} parent=11 // pred_fallthru
          _
      $region12: #{learner_forward.1} parent=5 // pred_fallthru
        _
      %p212 = scmp.lt.s32.totalorder %s17, 2
      // Predicated region
      $region17: #{learner_forward.1} parent=5 // pred_check
        %p213 = pneg %p212
      $region18: #{learner_forward.1} parent=5 // pred_check_branch
        %215 = sbr.rel (%p213) target = $region20
      $region19: #{learner_forward.1} parent=5 // pred_region
        // Predicated region
        $region21: #{learner_forward.1} parent=19 // pred_check
          %p216 = pneg %p75
        $region22: #{learner_forward.1} parent=19 // pred_check_branch
          %218 = sbr.rel (%p216) target = $region24
        $region23: #{learner_forward.1} parent=19 // pred_region
          %s219 = sand.u32 %s65, 1
          %s220 = scalar_lea.sflag [#allocation3], %s219
          %s221 = sand.u32 %s65, 1
          %s222 = smul.addr %s221, 5376
          %s223 = scalar_lea.vmem [#allocation2], %s222
          %s224 = smul.u32 2, %s24
          %s226 = ssub.s32 86016, 86016
          %227 = vsyncadd %s220, %s226
          %s228 = smul.addr %s224, 128
          %s229 = scalar_lea.hbm %s1, %s228
          %s230 = sshll.u32 %s223, 4
          %s231 = int_to_ptr.vmem [resolvable:$true] %s230
          %236 = dma.hbm_to_vmem [thread:$0]  %s229, 86016, %s231, %s220, 512, 256, 16
        $region24: #{learner_forward.1} parent=19 // pred_fallthru
          _
        // Predicated region
        $region25: #{learner_forward.1} parent=19 // pred_check
          %p237 = pneg %p101
        $region26: #{learner_forward.1} parent=19 // pred_check_branch
          %239 = sbr.rel (%p237) target = $region28
        $region27: #{learner_forward.1} parent=19 // pred_region
          %s240 = sand.u32 %s17, 1
          %s241 = scalar_lea.sflag [#allocation5], %s240
          %s242 = sand.u32 %s91, 1
          %s243 = smul.addr %s242, 2
          %s244 = scalar_lea.vmem [#allocation4], %s243
          %s245 = smul.u32 2, %s24
          %s247 = ssub.s32 32, 32
          %248 = vsyncadd %s241, %s247
          %s249 = smul.addr %s245, 16
          %s250 = scalar_lea.hbm %s2, %s249
          %s252 = sshll.u32 %s244, 4
          %s253 = int_to_ptr.vmem [resolvable:$true] %s252
          %255 = dma.hbm_to_vmem [thread:$0]  %s250, 32, %s253, %s241
        $region28: #{learner_forward.1} parent=19 // pred_fallthru
          _
        // Predicated region
        $region29: #{learner_forward.1} parent=19 // pred_check
          %p256 = pneg %p127
        $region30: #{learner_forward.1} parent=19 // pred_check_branch
          %258 = sbr.rel (%p256) target = $region32
        $region31: #{learner_forward.1} parent=19 // pred_region
          %s259 = sand.u32 %s17, 1
          %s260 = scalar_lea.sflag [#allocation5], %s259
          %s261 = sand.u32 %s117, 1
          %s262 = smul.addr %s261, 2
          %s263 = scalar_lea.vmem [#allocation6], %s262
          %s264 = smul.u32 2, %s24
          %s266 = ssub.s32 32, 32
          %267 = vsyncadd %s260, %s266
          %s268 = smul.addr %s264, 16
          %s269 = scalar_lea.hbm %s3, %s268
          %s271 = sshll.u32 %s263, 4
          %s272 = int_to_ptr.vmem [resolvable:$true] %s271
          %274 = dma.hbm_to_vmem [thread:$0]  %s269, 32, %s272, %s260
        $region32: #{learner_forward.1} parent=19 // pred_fallthru
          _
        // Predicated region
        $region33: #{learner_forward.1} parent=19 // pred_check
          %p275 = pneg %p153
        $region34: #{learner_forward.1} parent=19 // pred_check_branch
          %277 = sbr.rel (%p275) target = $region36
        $region35: #{learner_forward.1} parent=19 // pred_region
          %s278 = smul.u32 32, %s24
          %p279 = scmp.lt.s32.totalorder %s278, 63
          %s280 = scalar_select %p279, %s278, 63
          %s281 = smul.addr %s280, 8
          %s282 = scalar_lea.vmem %s4, %s281
          %s283 = smul.u32 32, %s24
        $region36: #{learner_forward.1} parent=19 // pred_fallthru
          _
      $region20: #{learner_forward.1} parent=5 // pred_fallthru
        _
      %p284 = scmp.le.s32.totalorder 1, %s17
      %p285 = scmp.lt.s32.totalorder %s17, 3
      %p286 = pnand %p284, %p285
      %p287 = pneg %p286
      // Predicated region
      $region37: #{learner_forward.1} parent=5 // pred_check
        _
      $region38: #{learner_forward.1} parent=5 // pred_check_branch
        %289 = sbr.rel (%p286) target = $region40
      $region39: #{learner_forward.1} parent=5 // pred_region
        %s290 = ssub.s32 %s17, 1
        %s291 = sand.u32 %s68, 1
        %s292 = scalar_lea.sflag [#allocation3], %s291
        %s293 = sand.u32 %s68, 1
        %s294 = smul.addr %s293, 5376
        %s295 = scalar_lea.vmem [#allocation2], %s294
        // Predicated region
        $region41: #{learner_forward.1} parent=39 // pred_check
          %p296 = pneg %p81
        $region42: #{learner_forward.1} parent=39 // pred_check_branch
          %298 = sbr.rel (%p296) target = $region44
        $region43: #{learner_forward.1} parent=39 // pred_region
          %299 = dma.done %s292, 86016
        $region44: #{learner_forward.1} parent=39 // pred_fallthru
          _
        %s300 = sand.u32 %s22, 1
        %s301 = scalar_lea.sflag [#allocation5], %s300
        %s302 = sand.u32 %s94, 1
        %s303 = smul.addr %s302, 2
        %s304 = scalar_lea.vmem [#allocation4], %s303
        // Predicated region
        $region45: #{learner_forward.1} parent=39 // pred_check
          %p305 = pneg %p107
        $region46: #{learner_forward.1} parent=39 // pred_check_branch
          %307 = sbr.rel (%p305) target = $region48
        $region47: #{learner_forward.1} parent=39 // pred_region
          %308 = dma.done %s301, 32
        $region48: #{learner_forward.1} parent=39 // pred_fallthru
          _
        %s309 = sand.u32 %s22, 1
        %s310 = scalar_lea.sflag [#allocation5], %s309
        %s311 = sand.u32 %s120, 1
        %s312 = smul.addr %s311, 2
        %s313 = scalar_lea.vmem [#allocation6], %s312
        // Predicated region
        $region49: #{learner_forward.1} parent=39 // pred_check
          %p314 = pneg %p133
        $region50: #{learner_forward.1} parent=39 // pred_check_branch
          %316 = sbr.rel (%p314) target = $region52
        $region51: #{learner_forward.1} parent=39 // pred_region
          %317 = dma.done %s310, 32
        $region52: #{learner_forward.1} parent=39 // pred_fallthru
          _
        %s318 = smul.u32 2, %s27
        %p319 = scmp.lt.s32.totalorder %s318, 1
        %s320 = scalar_select %p319, %s318, 1
        %s321 = smul.addr %s320, 84
        %s322 = smul.addr %s321, 4
        %s323 = scalar_lea.vmem %s0, %s322
        %p324 = pneg %p55
        %p325 = pneg %p52
        %s326 = sand.u32 %s68, 1
        %s327 = scalar_lea.sflag [#allocation3], %s326
        %s328 = sand.u32 %s68, 1
        %s329 = smul.addr %s328, 5376
        %s330 = scalar_lea.vmem [#allocation2], %s329
        %p331 = pneg %p81
        %p332 = pneg %p78
        %s333 = sand.u32 %s22, 1
        %s334 = scalar_lea.sflag [#allocation5], %s333
        %s335 = sand.u32 %s94, 1
        %s336 = smul.addr %s335, 2
        %s337 = scalar_lea.vmem [#allocation4], %s336
        %p338 = pneg %p107
        %p339 = pneg %p104
        %s340 = sand.u32 %s22, 1
        %s341 = scalar_lea.sflag [#allocation5], %s340
        %s342 = sand.u32 %s120, 1
        %s343 = smul.addr %s342, 2
        %s344 = scalar_lea.vmem [#allocation6], %s343
        %p345 = pneg %p133
        %p346 = pneg %p130
        %s347 = smul.u32 32, %s26
        %p348 = scmp.lt.s32.totalorder %s347, 63
        %s349 = scalar_select %p348, %s347, 63
        %s350 = smul.addr %s349, 8
        %s351 = scalar_lea.vmem %s4, %s350
        %p352 = pneg %p159
        %p353 = pneg %p156
        %p354 = pneg %p187
        %p355 = pneg %p184
        %s356 = smul.u32 2, %s27
        %p357 = scmp.lt.s32.totalorder %s26, 1
        %s358 = scalar_select %p357, %s26, 1
        %p359 = scmp.lt.s32.totalorder %s356, 1
        %s360 = scalar_select %p359, %s356, 1
        %s361 = smul.addr %s358, 2
        %s362 = sadd.s32 %s360, %s361
        %s363 = smul.addr %s362, 8
        %s364 = scalar_lea.vmem %s5, %s363
        %s365 = smul.u32 2, %s27
        %p366 = scmp.lt.s32.totalorder %s365, 1
        %s367 = scalar_select %p366, %s365, 1
        %s368 = smul.addr %s367, 84
        %s369 = smul.addr %s368, 4
        %s370 = scalar_lea.vmem %s0, %s369
        %s371 = smul.u32 2, %s27
        %s372 = smul.u32 2, %s26
        %s373 = smul.u32 2, %s26
        %s374 = smul.u32 2, %s26
        %s375 = smul.u32 32, %s26
        %p376 = scmp.lt.s32.totalorder %s375, 63
        %s377 = scalar_select %p376, %s375, 63
        %s378 = smul.addr %s377, 8
        %s379 = scalar_lea.vmem %s4, %s378
        %s380 = smul.u32 32, %s26
        %s381 = smul.u32 2, %s27
        %p382 = scmp.lt.s32.totalorder %s26, 1
        %s383 = scalar_select %p382, %s26, 1
        %p384 = scmp.lt.s32.totalorder %s381, 1
        %s385 = scalar_select %p384, %s381, 1
        %s386 = smul.addr %s383, 2
        %s387 = sadd.s32 %s385, %s386
        %s388 = smul.addr %s387, 8
        %s389 = scalar_lea.vmem %s5, %s388
        %s390 = smul.u32 2, %s27
        %v391 = vld [vmem:[%s370] sm:$0xff]
        %v392 = vld [vmem:[%s370 + $0x8] sm:$0xff]
        %v393 = vld [vmem:[%s370 + $0x10] sm:$0xff]
        %v394 = vld [vmem:[%s370 + $0x18] sm:$0xff]
        %v395 = vld [vmem:[%s370 + $0x20] sm:$0xff]
        %v396 = vld [vmem:[%s370 + $0x28] sm:$0xff]
        %v397 = vld [vmem:[%s370 + $0x30] sm:$0xff]
        %v398 = vld [vmem:[%s370 + $0x38] sm:$0xff]
        %v399 = vld [vmem:[%s370 + $0x40] sm:$0xff]
        %v400 = vld [vmem:[%s370 + $0x48] sm:$0xff]
        %v401 = vld [vmem:[%s370 + $0x50] sm:$0xff]
        %v402 = vld [vmem:[%s370 + $0x58] sm:$0xff]
        %v403 = vld [vmem:[%s370 + $0x60] sm:$0xff]
        %v404 = vld [vmem:[%s370 + $0x68] sm:$0xff]
        %v405 = vld [vmem:[%s370 + $0x70] sm:$0xff]
        %v406 = vld [vmem:[%s370 + $0x78] sm:$0xff]
        %v407 = vld [vmem:[%s370 + $0x80] sm:$0xff]
        %v408 = vld [vmem:[%s370 + $0x88] sm:$0xff]
        %v409 = vld [vmem:[%s370 + $0x90] sm:$0xff]
        %v410 = vld [vmem:[%s370 + $0x98] sm:$0xff]
        %v411 = vld [vmem:[%s370 + $0xa0] sm:$0xff]
        %v412 = vld [vmem:[%s370 + $0xa8] sm:$0xff]
        %v413 = vld [vmem:[%s370 + $0xb0] sm:$0xff]
        %v414 = vld [vmem:[%s370 + $0xb8] sm:$0xff]
        %v415 = vld [vmem:[%s370 + $0xc0] sm:$0xff]
        %v416 = vld [vmem:[%s370 + $0xc8] sm:$0xff]
        %v417 = vld [vmem:[%s370 + $0xd0] sm:$0xff]
        %v418 = vld [vmem:[%s370 + $0xd8] sm:$0xff]
        %v419 = vld [vmem:[%s370 + $0xe0] sm:$0xff]
        %v420 = vld [vmem:[%s370 + $0xe8] sm:$0xff]
        %v421 = vld [vmem:[%s370 + $0xf0] sm:$0xff]
        %v422 = vld [vmem:[%s370 + $0xf8] sm:$0xff]
        %v423 = vld [vmem:[%s370 + $0x100] sm:$0xff]
        %v424 = vld [vmem:[%s370 + $0x108] sm:$0xff]
        %v425 = vld [vmem:[%s370 + $0x110] sm:$0xff]
        %v426 = vld [vmem:[%s370 + $0x118] sm:$0xff]
        %v427 = vld [vmem:[%s370 + $0x120] sm:$0xff]
        %v428 = vld [vmem:[%s370 + $0x128] sm:$0xff]
        %v429 = vld [vmem:[%s370 + $0x130] sm:$0xff]
        %v430 = vld [vmem:[%s370 + $0x138] sm:$0xff]
        %v431 = vld [vmem:[%s370 + $0x140] sm:$0xff]
        %v432 = vld [vmem:[%s370 + $0x148] sm:$0xff]
        %v433 = vld [vmem:[%s370 + $0x150] sm:$0xff]
        %v434 = vld [vmem:[%s370 + $0x158] sm:$0xff]
        %v435 = vld [vmem:[%s370 + $0x160] sm:$0xff]
        %v436 = vld [vmem:[%s370 + $0x168] sm:$0xff]
        %v437 = vld [vmem:[%s370 + $0x170] sm:$0xff]
        %v438 = vld [vmem:[%s370 + $0x178] sm:$0xff]
        %v439 = vld [vmem:[%s370 + $0x180] sm:$0xff]
        %v440 = vld [vmem:[%s370 + $0x188] sm:$0xff]
        %v441 = vld [vmem:[%s370 + $0x190] sm:$0xff]
        %v442 = vld [vmem:[%s370 + $0x198] sm:$0xff]
        %v443 = vld [vmem:[%s370 + $0x1a0] sm:$0xff]
        %v444 = vld [vmem:[%s370 + $0x1a8] sm:$0xff]
        %v445 = vld [vmem:[%s370 + $0x1b0] sm:$0xff]
        %v446 = vld [vmem:[%s370 + $0x1b8] sm:$0xff]
        %v447 = vld [vmem:[%s370 + $0x1c0] sm:$0xff]
        %v448 = vld [vmem:[%s370 + $0x1c8] sm:$0xff]
        %v449 = vld [vmem:[%s370 + $0x1d0] sm:$0xff]
        %v450 = vld [vmem:[%s370 + $0x1d8] sm:$0xff]
        %v451 = vld [vmem:[%s370 + $0x1e0] sm:$0xff]
        %v452 = vld [vmem:[%s370 + $0x1e8] sm:$0xff]
        %v453 = vld [vmem:[%s370 + $0x1f0] sm:$0xff]
        %v454 = vld [vmem:[%s370 + $0x1f8] sm:$0xff]
        %v455 = vld [vmem:[%s370 + $0x200] sm:$0xff]
        %v456 = vld [vmem:[%s370 + $0x208] sm:$0xff]
        %v457 = vld [vmem:[%s370 + $0x210] sm:$0xff]
        %v458 = vld [vmem:[%s370 + $0x218] sm:$0xff]
        %v459 = vld [vmem:[%s370 + $0x220] sm:$0xff]
        %v460 = vld [vmem:[%s370 + $0x228] sm:$0xff]
        %v461 = vld [vmem:[%s370 + $0x230] sm:$0xff]
        %v462 = vld [vmem:[%s370 + $0x238] sm:$0xff]
        %v463 = vld [vmem:[%s370 + $0x240] sm:$0xff]
        %v464 = vld [vmem:[%s370 + $0x248] sm:$0xff]
        %v465 = vld [vmem:[%s370 + $0x250] sm:$0xff]
        %v466 = vld [vmem:[%s370 + $0x258] sm:$0xff]
        %v467 = vld [vmem:[%s370 + $0x260] sm:$0xff]
        %v468 = vld [vmem:[%s370 + $0x268] sm:$0xff]
        %v469 = vld [vmem:[%s370 + $0x270] sm:$0xff]
        %v470 = vld [vmem:[%s370 + $0x278] sm:$0xff]
        %v471 = vld [vmem:[%s370 + $0x280] sm:$0xff]
        %v472 = vld [vmem:[%s370 + $0x288] sm:$0xff]
        %v473 = vld [vmem:[%s370 + $0x290] sm:$0xff]
        %v474 = vld [vmem:[%s370 + $0x298] sm:$0xff]
        %v475 = vld [vmem:[%s295] sm:$0xff]
        %v476 = vld [vmem:[%s295 + $0x8] sm:$0xff]
        %v477 = vld [vmem:[%s295 + $0x10] sm:$0xff]
        %v478 = vld [vmem:[%s295 + $0x18] sm:$0xff]
        %v479 = vld [vmem:[%s295 + $0x20] sm:$0xff]
        %v480 = vld [vmem:[%s295 + $0x28] sm:$0xff]
        %v481 = vld [vmem:[%s295 + $0x30] sm:$0xff]
        %v482 = vld [vmem:[%s295 + $0x38] sm:$0xff]
        %v483 = vld [vmem:[%s295 + $0x40] sm:$0xff]
        %v484 = vld [vmem:[%s295 + $0x48] sm:$0xff]
        %v485 = vld [vmem:[%s295 + $0x50] sm:$0xff]
        %v486 = vld [vmem:[%s295 + $0x58] sm:$0xff]
        %v487 = vld [vmem:[%s295 + $0x60] sm:$0xff]
        %v488 = vld [vmem:[%s295 + $0x68] sm:$0xff]
        %v489 = vld [vmem:[%s295 + $0x70] sm:$0xff]
        %v490 = vld [vmem:[%s295 + $0x78] sm:$0xff]
        %v491 = vld [vmem:[%s295 + $0x80] sm:$0xff]
        %v492 = vld [vmem:[%s295 + $0x88] sm:$0xff]
        %v493 = vld [vmem:[%s295 + $0x90] sm:$0xff]
        %v494 = vld [vmem:[%s295 + $0x98] sm:$0xff]
        %v495 = vld [vmem:[%s295 + $0xa0] sm:$0xff]
        %v496 = vld [vmem:[%s295 + $0xa8] sm:$0xff]
        %v497 = vld [vmem:[%s295 + $0xb0] sm:$0xff]
        %v498 = vld [vmem:[%s295 + $0xb8] sm:$0xff]
        %v499 = vld [vmem:[%s295 + $0xc0] sm:$0xff]
        %v500 = vld [vmem:[%s295 + $0xc8] sm:$0xff]
        %v501 = vld [vmem:[%s295 + $0xd0] sm:$0xff]
        %v502 = vld [vmem:[%s295 + $0xd8] sm:$0xff]
        %v503 = vld [vmem:[%s295 + $0xe0] sm:$0xff]
        %v504 = vld [vmem:[%s295 + $0xe8] sm:$0xff]
        %v505 = vld [vmem:[%s295 + $0xf0] sm:$0xff]
        %v506 = vld [vmem:[%s295 + $0xf8] sm:$0xff]
        %v507 = vld [vmem:[%s295 + $0x100] sm:$0xff]
        %v508 = vld [vmem:[%s295 + $0x108] sm:$0xff]
        %v509 = vld [vmem:[%s295 + $0x110] sm:$0xff]
        %v510 = vld [vmem:[%s295 + $0x118] sm:$0xff]
        %v511 = vld [vmem:[%s295 + $0x120] sm:$0xff]
        %v512 = vld [vmem:[%s295 + $0x128] sm:$0xff]
        %v513 = vld [vmem:[%s295 + $0x130] sm:$0xff]
        %v514 = vld [vmem:[%s295 + $0x138] sm:$0xff]
        %v515 = vld [vmem:[%s295 + $0x140] sm:$0xff]
        %v516 = vld [vmem:[%s295 + $0x148] sm:$0xff]
        %v517 = vld [vmem:[%s295 + $0x150] sm:$0xff]
        %v518 = vld [vmem:[%s295 + $0x158] sm:$0xff]
        %v519 = vld [vmem:[%s295 + $0x160] sm:$0xff]
        %v520 = vld [vmem:[%s295 + $0x168] sm:$0xff]
        %v521 = vld [vmem:[%s295 + $0x170] sm:$0xff]
        %v522 = vld [vmem:[%s295 + $0x178] sm:$0xff]
        %v523 = vld [vmem:[%s295 + $0x180] sm:$0xff]
        %v524 = vld [vmem:[%s295 + $0x188] sm:$0xff]
        %v525 = vld [vmem:[%s295 + $0x190] sm:$0xff]
        %v526 = vld [vmem:[%s295 + $0x198] sm:$0xff]
        %v527 = vld [vmem:[%s295 + $0x1a0] sm:$0xff]
        %v528 = vld [vmem:[%s295 + $0x1a8] sm:$0xff]
        %v529 = vld [vmem:[%s295 + $0x1b0] sm:$0xff]
        %v530 = vld [vmem:[%s295 + $0x1b8] sm:$0xff]
        %v531 = vld [vmem:[%s295 + $0x1c0] sm:$0xff]
        %v532 = vld [vmem:[%s295 + $0x1c8] sm:$0xff]
        %v533 = vld [vmem:[%s295 + $0x1d0] sm:$0xff]
        %v534 = vld [vmem:[%s295 + $0x1d8] sm:$0xff]
        %v535 = vld [vmem:[%s295 + $0x1e0] sm:$0xff]
        %v536 = vld [vmem:[%s295 + $0x1e8] sm:$0xff]
        %v537 = vld [vmem:[%s295 + $0x1f0] sm:$0xff]
        %v538 = vld [vmem:[%s295 + $0x1f8] sm:$0xff]
        %v539 = vld [vmem:[%s295 + $0x200] sm:$0xff]
        %v540 = vld [vmem:[%s295 + $0x208] sm:$0xff]
        %v541 = vld [vmem:[%s295 + $0x210] sm:$0xff]
        %v542 = vld [vmem:[%s295 + $0x218] sm:$0xff]
        %v543 = vld [vmem:[%s295 + $0x220] sm:$0xff]
        %v544 = vld [vmem:[%s295 + $0x228] sm:$0xff]
        %v545 = vld [vmem:[%s295 + $0x230] sm:$0xff]
        %v546 = vld [vmem:[%s295 + $0x238] sm:$0xff]
        %v547 = vld [vmem:[%s295 + $0x240] sm:$0xff]
        %v548 = vld [vmem:[%s295 + $0x248] sm:$0xff]
        %v549 = vld [vmem:[%s295 + $0x250] sm:$0xff]
        %v550 = vld [vmem:[%s295 + $0x258] sm:$0xff]
        %v551 = vld [vmem:[%s295 + $0x260] sm:$0xff]
        %v552 = vld [vmem:[%s295 + $0x268] sm:$0xff]
        %v553 = vld [vmem:[%s295 + $0x270] sm:$0xff]
        %v554 = vld [vmem:[%s295 + $0x278] sm:$0xff]
        %v555 = vld [vmem:[%s295 + $0x280] sm:$0xff]
        %v556 = vld [vmem:[%s295 + $0x288] sm:$0xff]
        %v557 = vld [vmem:[%s295 + $0x290] sm:$0xff]
        %v558 = vld [vmem:[%s295 + $0x298] sm:$0xff]
        %v559 = vld [vmem:[%s295 + $0x2a0] sm:$0xff]
        %v560 = vld [vmem:[%s295 + $0x2a8] sm:$0xff]
        %v561 = vld [vmem:[%s295 + $0x2b0] sm:$0xff]
        %v562 = vld [vmem:[%s295 + $0x2b8] sm:$0xff]
        %v563 = vld [vmem:[%s295 + $0x2c0] sm:$0xff]
        %v564 = vld [vmem:[%s295 + $0x2c8] sm:$0xff]
        %v565 = vld [vmem:[%s295 + $0x2d0] sm:$0xff]
        %v566 = vld [vmem:[%s295 + $0x2d8] sm:$0xff]
        %v567 = vld [vmem:[%s295 + $0x2e0] sm:$0xff]
        %v568 = vld [vmem:[%s295 + $0x2e8] sm:$0xff]
        %v569 = vld [vmem:[%s295 + $0x2f0] sm:$0xff]
        %v570 = vld [vmem:[%s295 + $0x2f8] sm:$0xff]
        %v571 = vld [vmem:[%s295 + $0x300] sm:$0xff]
        %v572 = vld [vmem:[%s295 + $0x308] sm:$0xff]
        %v573 = vld [vmem:[%s295 + $0x310] sm:$0xff]
        %v574 = vld [vmem:[%s295 + $0x318] sm:$0xff]
        %v575 = vld [vmem:[%s295 + $0x320] sm:$0xff]
        %v576 = vld [vmem:[%s295 + $0x328] sm:$0xff]
        %v577 = vld [vmem:[%s295 + $0x330] sm:$0xff]
        %v578 = vld [vmem:[%s295 + $0x338] sm:$0xff]
        %v579 = vld [vmem:[%s295 + $0x340] sm:$0xff]
        %v580 = vld [vmem:[%s295 + $0x348] sm:$0xff]
        %v581 = vld [vmem:[%s295 + $0x350] sm:$0xff]
        %v582 = vld [vmem:[%s295 + $0x358] sm:$0xff]
        %v583 = vld [vmem:[%s295 + $0x360] sm:$0xff]
        %v584 = vld [vmem:[%s295 + $0x368] sm:$0xff]
        %v585 = vld [vmem:[%s295 + $0x370] sm:$0xff]
        %v586 = vld [vmem:[%s295 + $0x378] sm:$0xff]
        %v587 = vld [vmem:[%s295 + $0x380] sm:$0xff]
        %v588 = vld [vmem:[%s295 + $0x388] sm:$0xff]
        %v589 = vld [vmem:[%s295 + $0x390] sm:$0xff]
        %v590 = vld [vmem:[%s295 + $0x398] sm:$0xff]
        %v591 = vld [vmem:[%s295 + $0x3a0] sm:$0xff]
        %v592 = vld [vmem:[%s295 + $0x3a8] sm:$0xff]
        %v593 = vld [vmem:[%s295 + $0x3b0] sm:$0xff]
        %v594 = vld [vmem:[%s295 + $0x3b8] sm:$0xff]
        %v595 = vld [vmem:[%s295 + $0x3c0] sm:$0xff]
        %v596 = vld [vmem:[%s295 + $0x3c8] sm:$0xff]
        %v597 = vld [vmem:[%s295 + $0x3d0] sm:$0xff]
        %v598 = vld [vmem:[%s295 + $0x3d8] sm:$0xff]
        %v599 = vld [vmem:[%s295 + $0x3e0] sm:$0xff]
        %v600 = vld [vmem:[%s295 + $0x3e8] sm:$0xff]
        %v601 = vld [vmem:[%s295 + $0x3f0] sm:$0xff]
        %v602 = vld [vmem:[%s295 + $0x3f8] sm:$0xff]
        %v603 = vld [vmem:[%s295 + $0x400] sm:$0xff]
        %v604 = vld [vmem:[%s295 + $0x408] sm:$0xff]
        %v605 = vld [vmem:[%s295 + $0x410] sm:$0xff]
        %v606 = vld [vmem:[%s295 + $0x418] sm:$0xff]
        %v607 = vld [vmem:[%s295 + $0x420] sm:$0xff]
        %v608 = vld [vmem:[%s295 + $0x428] sm:$0xff]
        %v609 = vld [vmem:[%s295 + $0x430] sm:$0xff]
        %v610 = vld [vmem:[%s295 + $0x438] sm:$0xff]
        %v611 = vld [vmem:[%s295 + $0x440] sm:$0xff]
        %v612 = vld [vmem:[%s295 + $0x448] sm:$0xff]
        %v613 = vld [vmem:[%s295 + $0x450] sm:$0xff]
        %v614 = vld [vmem:[%s295 + $0x458] sm:$0xff]
        %v615 = vld [vmem:[%s295 + $0x460] sm:$0xff]
        %v616 = vld [vmem:[%s295 + $0x468] sm:$0xff]
        %v617 = vld [vmem:[%s295 + $0x470] sm:$0xff]
        %v618 = vld [vmem:[%s295 + $0x478] sm:$0xff]
        %v619 = vld [vmem:[%s295 + $0x480] sm:$0xff]
        %v620 = vld [vmem:[%s295 + $0x488] sm:$0xff]
        %v621 = vld [vmem:[%s295 + $0x490] sm:$0xff]
        %v622 = vld [vmem:[%s295 + $0x498] sm:$0xff]
        %v623 = vld [vmem:[%s295 + $0x4a0] sm:$0xff]
        %v624 = vld [vmem:[%s295 + $0x4a8] sm:$0xff]
        %v625 = vld [vmem:[%s295 + $0x4b0] sm:$0xff]
        %v626 = vld [vmem:[%s295 + $0x4b8] sm:$0xff]
        %v627 = vld [vmem:[%s295 + $0x4c0] sm:$0xff]
        %v628 = vld [vmem:[%s295 + $0x4c8] sm:$0xff]
        %v629 = vld [vmem:[%s295 + $0x4d0] sm:$0xff]
        %v630 = vld [vmem:[%s295 + $0x4d8] sm:$0xff]
        %v631 = vld [vmem:[%s295 + $0x4e0] sm:$0xff]
        %v632 = vld [vmem:[%s295 + $0x4e8] sm:$0xff]
        %v633 = vld [vmem:[%s295 + $0x4f0] sm:$0xff]
        %v634 = vld [vmem:[%s295 + $0x4f8] sm:$0xff]
        %v635 = vld [vmem:[%s295 + $0x500] sm:$0xff]
        %v636 = vld [vmem:[%s295 + $0x508] sm:$0xff]
        %v637 = vld [vmem:[%s295 + $0x510] sm:$0xff]
        %v638 = vld [vmem:[%s295 + $0x518] sm:$0xff]
        %v639 = vld [vmem:[%s295 + $0x520] sm:$0xff]
        %v640 = vld [vmem:[%s295 + $0x528] sm:$0xff]
        %v641 = vld [vmem:[%s295 + $0x530] sm:$0xff]
        %v642 = vld [vmem:[%s295 + $0x538] sm:$0xff]
        %v643 = vld [vmem:[%s295 + $0x540] sm:$0xff]
        %v644 = vld [vmem:[%s295 + $0x548] sm:$0xff]
        %v645 = vld [vmem:[%s295 + $0x550] sm:$0xff]
        %v646 = vld [vmem:[%s295 + $0x558] sm:$0xff]
        %v647 = vld [vmem:[%s295 + $0x560] sm:$0xff]
        %v648 = vld [vmem:[%s295 + $0x568] sm:$0xff]
        %v649 = vld [vmem:[%s295 + $0x570] sm:$0xff]
        %v650 = vld [vmem:[%s295 + $0x578] sm:$0xff]
        %v651 = vld [vmem:[%s295 + $0x580] sm:$0xff]
        %v652 = vld [vmem:[%s295 + $0x588] sm:$0xff]
        %v653 = vld [vmem:[%s295 + $0x590] sm:$0xff]
        %v654 = vld [vmem:[%s295 + $0x598] sm:$0xff]
        %v655 = vld [vmem:[%s295 + $0x5a0] sm:$0xff]
        %v656 = vld [vmem:[%s295 + $0x5a8] sm:$0xff]
        %v657 = vld [vmem:[%s295 + $0x5b0] sm:$0xff]
        %v658 = vld [vmem:[%s295 + $0x5b8] sm:$0xff]
        %v659 = vld [vmem:[%s295 + $0x5c0] sm:$0xff]
        %v660 = vld [vmem:[%s295 + $0x5c8] sm:$0xff]
        %v661 = vld [vmem:[%s295 + $0x5d0] sm:$0xff]
        %v662 = vld [vmem:[%s295 + $0x5d8] sm:$0xff]
        %v663 = vld [vmem:[%s295 + $0x5e0] sm:$0xff]
        %v664 = vld [vmem:[%s295 + $0x5e8] sm:$0xff]
        %v665 = vld [vmem:[%s295 + $0x5f0] sm:$0xff]
        %v666 = vld [vmem:[%s295 + $0x5f8] sm:$0xff]
        %v667 = vld [vmem:[%s295 + $0x600] sm:$0xff]
        %v668 = vld [vmem:[%s295 + $0x608] sm:$0xff]
        %v669 = vld [vmem:[%s295 + $0x610] sm:$0xff]
        %v670 = vld [vmem:[%s295 + $0x618] sm:$0xff]
        %v671 = vld [vmem:[%s295 + $0x620] sm:$0xff]
        %v672 = vld [vmem:[%s295 + $0x628] sm:$0xff]
        %v673 = vld [vmem:[%s295 + $0x630] sm:$0xff]
        %v674 = vld [vmem:[%s295 + $0x638] sm:$0xff]
        %v675 = vld [vmem:[%s295 + $0x640] sm:$0xff]
        %v676 = vld [vmem:[%s295 + $0x648] sm:$0xff]
        %v677 = vld [vmem:[%s295 + $0x650] sm:$0xff]
        %v678 = vld [vmem:[%s295 + $0x658] sm:$0xff]
        %v679 = vld [vmem:[%s295 + $0x660] sm:$0xff]
        %v680 = vld [vmem:[%s295 + $0x668] sm:$0xff]
        %v681 = vld [vmem:[%s295 + $0x670] sm:$0xff]
        %v682 = vld [vmem:[%s295 + $0x678] sm:$0xff]
        %v683 = vld [vmem:[%s295 + $0x680] sm:$0xff]
        %v684 = vld [vmem:[%s295 + $0x688] sm:$0xff]
        %v685 = vld [vmem:[%s295 + $0x690] sm:$0xff]
        %v686 = vld [vmem:[%s295 + $0x698] sm:$0xff]
        %v687 = vld [vmem:[%s295 + $0x6a0] sm:$0xff]
        %v688 = vld [vmem:[%s295 + $0x6a8] sm:$0xff]
        %v689 = vld [vmem:[%s295 + $0x6b0] sm:$0xff]
        %v690 = vld [vmem:[%s295 + $0x6b8] sm:$0xff]
        %v691 = vld [vmem:[%s295 + $0x6c0] sm:$0xff]
        %v692 = vld [vmem:[%s295 + $0x6c8] sm:$0xff]
        %v693 = vld [vmem:[%s295 + $0x6d0] sm:$0xff]
        %v694 = vld [vmem:[%s295 + $0x6d8] sm:$0xff]
        %v695 = vld [vmem:[%s295 + $0x6e0] sm:$0xff]
        %v696 = vld [vmem:[%s295 + $0x6e8] sm:$0xff]
        %v697 = vld [vmem:[%s295 + $0x6f0] sm:$0xff]
        %v698 = vld [vmem:[%s295 + $0x6f8] sm:$0xff]
        %v699 = vld [vmem:[%s295 + $0x700] sm:$0xff]
        %v700 = vld [vmem:[%s295 + $0x708] sm:$0xff]
        %v701 = vld [vmem:[%s295 + $0x710] sm:$0xff]
        %v702 = vld [vmem:[%s295 + $0x718] sm:$0xff]
        %v703 = vld [vmem:[%s295 + $0x720] sm:$0xff]
        %v704 = vld [vmem:[%s295 + $0x728] sm:$0xff]
        %v705 = vld [vmem:[%s295 + $0x730] sm:$0xff]
        %v706 = vld [vmem:[%s295 + $0x738] sm:$0xff]
        %v707 = vld [vmem:[%s295 + $0x740] sm:$0xff]
        %v708 = vld [vmem:[%s295 + $0x748] sm:$0xff]
        %v709 = vld [vmem:[%s295 + $0x750] sm:$0xff]
        %v710 = vld [vmem:[%s295 + $0x758] sm:$0xff]
        %v711 = vld [vmem:[%s295 + $0x760] sm:$0xff]
        %v712 = vld [vmem:[%s295 + $0x768] sm:$0xff]
        %v713 = vld [vmem:[%s295 + $0x770] sm:$0xff]
        %v714 = vld [vmem:[%s295 + $0x778] sm:$0xff]
        %v715 = vld [vmem:[%s295 + $0x780] sm:$0xff]
        %v716 = vld [vmem:[%s295 + $0x788] sm:$0xff]
        %v717 = vld [vmem:[%s295 + $0x790] sm:$0xff]
        %v718 = vld [vmem:[%s295 + $0x798] sm:$0xff]
        %v719 = vld [vmem:[%s295 + $0x7a0] sm:$0xff]
        %v720 = vld [vmem:[%s295 + $0x7a8] sm:$0xff]
        %v721 = vld [vmem:[%s295 + $0x7b0] sm:$0xff]
        %v722 = vld [vmem:[%s295 + $0x7b8] sm:$0xff]
        %v723 = vld [vmem:[%s295 + $0x7c0] sm:$0xff]
        %v724 = vld [vmem:[%s295 + $0x7c8] sm:$0xff]
        %v725 = vld [vmem:[%s295 + $0x7d0] sm:$0xff]
        %v726 = vld [vmem:[%s295 + $0x7d8] sm:$0xff]
        %v727 = vld [vmem:[%s295 + $0x7e0] sm:$0xff]
        %v728 = vld [vmem:[%s295 + $0x7e8] sm:$0xff]
        %v729 = vld [vmem:[%s295 + $0x7f0] sm:$0xff]
        %v730 = vld [vmem:[%s295 + $0x7f8] sm:$0xff]
        %v731 = vld [vmem:[%s295 + $0x800] sm:$0xff]
        %v732 = vld [vmem:[%s295 + $0x808] sm:$0xff]
        %v733 = vld [vmem:[%s295 + $0x810] sm:$0xff]
        %v734 = vld [vmem:[%s295 + $0x818] sm:$0xff]
        %v735 = vld [vmem:[%s295 + $0x820] sm:$0xff]
        %v736 = vld [vmem:[%s295 + $0x828] sm:$0xff]
        %v737 = vld [vmem:[%s295 + $0x830] sm:$0xff]
        %v738 = vld [vmem:[%s295 + $0x838] sm:$0xff]
        %v739 = vld [vmem:[%s295 + $0x840] sm:$0xff]
        %v740 = vld [vmem:[%s295 + $0x848] sm:$0xff]
        %v741 = vld [vmem:[%s295 + $0x850] sm:$0xff]
        %v742 = vld [vmem:[%s295 + $0x858] sm:$0xff]
        %v743 = vld [vmem:[%s295 + $0x860] sm:$0xff]
        %v744 = vld [vmem:[%s295 + $0x868] sm:$0xff]
        %v745 = vld [vmem:[%s295 + $0x870] sm:$0xff]
        %v746 = vld [vmem:[%s295 + $0x878] sm:$0xff]
        %v747 = vld [vmem:[%s295 + $0x880] sm:$0xff]
        %v748 = vld [vmem:[%s295 + $0x888] sm:$0xff]
        %v749 = vld [vmem:[%s295 + $0x890] sm:$0xff]
        %v750 = vld [vmem:[%s295 + $0x898] sm:$0xff]
        %v751 = vld [vmem:[%s295 + $0x8a0] sm:$0xff]
        %v752 = vld [vmem:[%s295 + $0x8a8] sm:$0xff]
        %v753 = vld [vmem:[%s295 + $0x8b0] sm:$0xff]
        %v754 = vld [vmem:[%s295 + $0x8b8] sm:$0xff]
        %v755 = vld [vmem:[%s295 + $0x8c0] sm:$0xff]
        %v756 = vld [vmem:[%s295 + $0x8c8] sm:$0xff]
        %v757 = vld [vmem:[%s295 + $0x8d0] sm:$0xff]
        %v758 = vld [vmem:[%s295 + $0x8d8] sm:$0xff]
        %v759 = vld [vmem:[%s295 + $0x8e0] sm:$0xff]
        %v760 = vld [vmem:[%s295 + $0x8e8] sm:$0xff]
        %v761 = vld [vmem:[%s295 + $0x8f0] sm:$0xff]
        %v762 = vld [vmem:[%s295 + $0x8f8] sm:$0xff]
        %v763 = vld [vmem:[%s295 + $0x900] sm:$0xff]
        %v764 = vld [vmem:[%s295 + $0x908] sm:$0xff]
        %v765 = vld [vmem:[%s295 + $0x910] sm:$0xff]
        %v766 = vld [vmem:[%s295 + $0x918] sm:$0xff]
        %v767 = vld [vmem:[%s295 + $0x920] sm:$0xff]
        %v768 = vld [vmem:[%s295 + $0x928] sm:$0xff]
        %v769 = vld [vmem:[%s295 + $0x930] sm:$0xff]
        %v770 = vld [vmem:[%s295 + $0x938] sm:$0xff]
        %v771 = vld [vmem:[%s295 + $0x940] sm:$0xff]
        %v772 = vld [vmem:[%s295 + $0x948] sm:$0xff]
        %v773 = vld [vmem:[%s295 + $0x950] sm:$0xff]
        %v774 = vld [vmem:[%s295 + $0x958] sm:$0xff]
        %v775 = vld [vmem:[%s295 + $0x960] sm:$0xff]
        %v776 = vld [vmem:[%s295 + $0x968] sm:$0xff]
        %v777 = vld [vmem:[%s295 + $0x970] sm:$0xff]
        %v778 = vld [vmem:[%s295 + $0x978] sm:$0xff]
        %v779 = vld [vmem:[%s295 + $0x980] sm:$0xff]
        %v780 = vld [vmem:[%s295 + $0x988] sm:$0xff]
        %v781 = vld [vmem:[%s295 + $0x990] sm:$0xff]
        %v782 = vld [vmem:[%s295 + $0x998] sm:$0xff]
        %v783 = vld [vmem:[%s295 + $0x9a0] sm:$0xff]
        %v784 = vld [vmem:[%s295 + $0x9a8] sm:$0xff]
        %v785 = vld [vmem:[%s295 + $0x9b0] sm:$0xff]
        %v786 = vld [vmem:[%s295 + $0x9b8] sm:$0xff]
        %v787 = vld [vmem:[%s295 + $0x9c0] sm:$0xff]
        %v788 = vld [vmem:[%s295 + $0x9c8] sm:$0xff]
        %v789 = vld [vmem:[%s295 + $0x9d0] sm:$0xff]
        %v790 = vld [vmem:[%s295 + $0x9d8] sm:$0xff]
        %v791 = vld [vmem:[%s295 + $0x9e0] sm:$0xff]
        %v792 = vld [vmem:[%s295 + $0x9e8] sm:$0xff]
        %v793 = vld [vmem:[%s295 + $0x9f0] sm:$0xff]
        %v794 = vld [vmem:[%s295 + $0x9f8] sm:$0xff]
        %v795 = vld [vmem:[%s295 + $0xa00] sm:$0xff]
        %v796 = vld [vmem:[%s295 + $0xa08] sm:$0xff]
        %v797 = vld [vmem:[%s295 + $0xa10] sm:$0xff]
        %v798 = vld [vmem:[%s295 + $0xa18] sm:$0xff]
        %v799 = vld [vmem:[%s295 + $0xa20] sm:$0xff]
        %v800 = vld [vmem:[%s295 + $0xa28] sm:$0xff]
        %v801 = vld [vmem:[%s295 + $0xa30] sm:$0xff]
        %v802 = vld [vmem:[%s295 + $0xa38] sm:$0xff]
        %v803 = vld [vmem:[%s295 + $0xa40] sm:$0xff]
        %v804 = vld [vmem:[%s295 + $0xa48] sm:$0xff]
        %v805 = vld [vmem:[%s295 + $0xa50] sm:$0xff]
        %v806 = vld [vmem:[%s295 + $0xa58] sm:$0xff]
        %v807 = vld [vmem:[%s295 + $0xa60] sm:$0xff]
        %v808 = vld [vmem:[%s295 + $0xa68] sm:$0xff]
        %v809 = vld [vmem:[%s295 + $0xa70] sm:$0xff]
        %v810 = vld [vmem:[%s295 + $0xa78] sm:$0xff]
        %v811 = vld [vmem:[%s295 + $0xa80] sm:$0xff]
        %v812 = vld [vmem:[%s295 + $0xa88] sm:$0xff]
        %v813 = vld [vmem:[%s295 + $0xa90] sm:$0xff]
        %v814 = vld [vmem:[%s295 + $0xa98] sm:$0xff]
        %v815 = vld [vmem:[%s295 + $0xaa0] sm:$0xff]
        %v816 = vld [vmem:[%s295 + $0xaa8] sm:$0xff]
        %v817 = vld [vmem:[%s295 + $0xab0] sm:$0xff]
        %v818 = vld [vmem:[%s295 + $0xab8] sm:$0xff]
        %v819 = vld [vmem:[%s295 + $0xac0] sm:$0xff]
        %v820 = vld [vmem:[%s295 + $0xac8] sm:$0xff]
        %v821 = vld [vmem:[%s295 + $0xad0] sm:$0xff]
        %v822 = vld [vmem:[%s295 + $0xad8] sm:$0xff]
        %v823 = vld [vmem:[%s295 + $0xae0] sm:$0xff]
        %v824 = vld [vmem:[%s295 + $0xae8] sm:$0xff]
        %v825 = vld [vmem:[%s295 + $0xaf0] sm:$0xff]
        %v826 = vld [vmem:[%s295 + $0xaf8] sm:$0xff]
        %v827 = vld [vmem:[%s295 + $0xb00] sm:$0xff]
        %v828 = vld [vmem:[%s295 + $0xb08] sm:$0xff]
        %v829 = vld [vmem:[%s295 + $0xb10] sm:$0xff]
        %v830 = vld [vmem:[%s295 + $0xb18] sm:$0xff]
        %v831 = vld [vmem:[%s295 + $0xb20] sm:$0xff]
        %v832 = vld [vmem:[%s295 + $0xb28] sm:$0xff]
        %v833 = vld [vmem:[%s295 + $0xb30] sm:$0xff]
        %v834 = vld [vmem:[%s295 + $0xb38] sm:$0xff]
        %v835 = vld [vmem:[%s295 + $0xb40] sm:$0xff]
        %v836 = vld [vmem:[%s295 + $0xb48] sm:$0xff]
        %v837 = vld [vmem:[%s295 + $0xb50] sm:$0xff]
        %v838 = vld [vmem:[%s295 + $0xb58] sm:$0xff]
        %v839 = vld [vmem:[%s295 + $0xb60] sm:$0xff]
        %v840 = vld [vmem:[%s295 + $0xb68] sm:$0xff]
        %v841 = vld [vmem:[%s295 + $0xb70] sm:$0xff]
        %v842 = vld [vmem:[%s295 + $0xb78] sm:$0xff]
        %v843 = vld [vmem:[%s295 + $0xb80] sm:$0xff]
        %v844 = vld [vmem:[%s295 + $0xb88] sm:$0xff]
        %v845 = vld [vmem:[%s295 + $0xb90] sm:$0xff]
        %v846 = vld [vmem:[%s295 + $0xb98] sm:$0xff]
        %v847 = vld [vmem:[%s295 + $0xba0] sm:$0xff]
        %v848 = vld [vmem:[%s295 + $0xba8] sm:$0xff]
        %v849 = vld [vmem:[%s295 + $0xbb0] sm:$0xff]
        %v850 = vld [vmem:[%s295 + $0xbb8] sm:$0xff]
        %v851 = vld [vmem:[%s295 + $0xbc0] sm:$0xff]
        %v852 = vld [vmem:[%s295 + $0xbc8] sm:$0xff]
        %v853 = vld [vmem:[%s295 + $0xbd0] sm:$0xff]
        %v854 = vld [vmem:[%s295 + $0xbd8] sm:$0xff]
        %v855 = vld [vmem:[%s295 + $0xbe0] sm:$0xff]
        %v856 = vld [vmem:[%s295 + $0xbe8] sm:$0xff]
        %v857 = vld [vmem:[%s295 + $0xbf0] sm:$0xff]
        %v858 = vld [vmem:[%s295 + $0xbf8] sm:$0xff]
        %v859 = vld [vmem:[%s295 + $0xc00] sm:$0xff]
        %v860 = vld [vmem:[%s295 + $0xc08] sm:$0xff]
        %v861 = vld [vmem:[%s295 + $0xc10] sm:$0xff]
        %v862 = vld [vmem:[%s295 + $0xc18] sm:$0xff]
        %v863 = vld [vmem:[%s295 + $0xc20] sm:$0xff]
        %v864 = vld [vmem:[%s295 + $0xc28] sm:$0xff]
        %v865 = vld [vmem:[%s295 + $0xc30] sm:$0xff]
        %v866 = vld [vmem:[%s295 + $0xc38] sm:$0xff]
        %v867 = vld [vmem:[%s295 + $0xc40] sm:$0xff]
        %v868 = vld [vmem:[%s295 + $0xc48] sm:$0xff]
        %v869 = vld [vmem:[%s295 + $0xc50] sm:$0xff]
        %v870 = vld [vmem:[%s295 + $0xc58] sm:$0xff]
        %v871 = vld [vmem:[%s295 + $0xc60] sm:$0xff]
        %v872 = vld [vmem:[%s295 + $0xc68] sm:$0xff]
        %v873 = vld [vmem:[%s295 + $0xc70] sm:$0xff]
        %v874 = vld [vmem:[%s295 + $0xc78] sm:$0xff]
        %v875 = vld [vmem:[%s295 + $0xc80] sm:$0xff]
        %v876 = vld [vmem:[%s295 + $0xc88] sm:$0xff]
        %v877 = vld [vmem:[%s295 + $0xc90] sm:$0xff]
        %v878 = vld [vmem:[%s295 + $0xc98] sm:$0xff]
        %v879 = vld [vmem:[%s295 + $0xca0] sm:$0xff]
        %v880 = vld [vmem:[%s295 + $0xca8] sm:$0xff]
        %v881 = vld [vmem:[%s295 + $0xcb0] sm:$0xff]
        %v882 = vld [vmem:[%s295 + $0xcb8] sm:$0xff]
        %v883 = vld [vmem:[%s295 + $0xcc0] sm:$0xff]
        %v884 = vld [vmem:[%s295 + $0xcc8] sm:$0xff]
        %v885 = vld [vmem:[%s295 + $0xcd0] sm:$0xff]
        %v886 = vld [vmem:[%s295 + $0xcd8] sm:$0xff]
        %v887 = vld [vmem:[%s295 + $0xce0] sm:$0xff]
        %v888 = vld [vmem:[%s295 + $0xce8] sm:$0xff]
        %v889 = vld [vmem:[%s295 + $0xcf0] sm:$0xff]
        %v890 = vld [vmem:[%s295 + $0xcf8] sm:$0xff]
        %v891 = vld [vmem:[%s295 + $0xd00] sm:$0xff]
        %v892 = vld [vmem:[%s295 + $0xd08] sm:$0xff]
        %v893 = vld [vmem:[%s295 + $0xd10] sm:$0xff]
        %v894 = vld [vmem:[%s295 + $0xd18] sm:$0xff]
        %v895 = vld [vmem:[%s295 + $0xd20] sm:$0xff]
        %v896 = vld [vmem:[%s295 + $0xd28] sm:$0xff]
        %v897 = vld [vmem:[%s295 + $0xd30] sm:$0xff]
        %v898 = vld [vmem:[%s295 + $0xd38] sm:$0xff]
        %v899 = vld [vmem:[%s295 + $0xd40] sm:$0xff]
        %v900 = vld [vmem:[%s295 + $0xd48] sm:$0xff]
        %v901 = vld [vmem:[%s295 + $0xd50] sm:$0xff]
        %v902 = vld [vmem:[%s295 + $0xd58] sm:$0xff]
        %v903 = vld [vmem:[%s295 + $0xd60] sm:$0xff]
        %v904 = vld [vmem:[%s295 + $0xd68] sm:$0xff]
        %v905 = vld [vmem:[%s295 + $0xd70] sm:$0xff]
        %v906 = vld [vmem:[%s295 + $0xd78] sm:$0xff]
        %v907 = vld [vmem:[%s295 + $0xd80] sm:$0xff]
        %v908 = vld [vmem:[%s295 + $0xd88] sm:$0xff]
        %v909 = vld [vmem:[%s295 + $0xd90] sm:$0xff]
        %v910 = vld [vmem:[%s295 + $0xd98] sm:$0xff]
        %v911 = vld [vmem:[%s295 + $0xda0] sm:$0xff]
        %v912 = vld [vmem:[%s295 + $0xda8] sm:$0xff]
        %v913 = vld [vmem:[%s295 + $0xdb0] sm:$0xff]
        %v914 = vld [vmem:[%s295 + $0xdb8] sm:$0xff]
        %v915 = vld [vmem:[%s295 + $0xdc0] sm:$0xff]
        %v916 = vld [vmem:[%s295 + $0xdc8] sm:$0xff]
        %v917 = vld [vmem:[%s295 + $0xdd0] sm:$0xff]
        %v918 = vld [vmem:[%s295 + $0xdd8] sm:$0xff]
        %v919 = vld [vmem:[%s295 + $0xde0] sm:$0xff]
        %v920 = vld [vmem:[%s295 + $0xde8] sm:$0xff]
        %v921 = vld [vmem:[%s295 + $0xdf0] sm:$0xff]
        %v922 = vld [vmem:[%s295 + $0xdf8] sm:$0xff]
        %v923 = vld [vmem:[%s295 + $0xe00] sm:$0xff]
        %v924 = vld [vmem:[%s295 + $0xe08] sm:$0xff]
        %v925 = vld [vmem:[%s295 + $0xe10] sm:$0xff]
        %v926 = vld [vmem:[%s295 + $0xe18] sm:$0xff]
        %v927 = vld [vmem:[%s295 + $0xe20] sm:$0xff]
        %v928 = vld [vmem:[%s295 + $0xe28] sm:$0xff]
        %v929 = vld [vmem:[%s295 + $0xe30] sm:$0xff]
        %v930 = vld [vmem:[%s295 + $0xe38] sm:$0xff]
        %v931 = vld [vmem:[%s295 + $0xe40] sm:$0xff]
        %v932 = vld [vmem:[%s295 + $0xe48] sm:$0xff]
        %v933 = vld [vmem:[%s295 + $0xe50] sm:$0xff]
        %v934 = vld [vmem:[%s295 + $0xe58] sm:$0xff]
        %v935 = vld [vmem:[%s295 + $0xe60] sm:$0xff]
        %v936 = vld [vmem:[%s295 + $0xe68] sm:$0xff]
        %v937 = vld [vmem:[%s295 + $0xe70] sm:$0xff]
        %v938 = vld [vmem:[%s295 + $0xe78] sm:$0xff]
        %v939 = vld [vmem:[%s295 + $0xe80] sm:$0xff]
        %v940 = vld [vmem:[%s295 + $0xe88] sm:$0xff]
        %v941 = vld [vmem:[%s295 + $0xe90] sm:$0xff]
        %v942 = vld [vmem:[%s295 + $0xe98] sm:$0xff]
        %v943 = vld [vmem:[%s295 + $0xea0] sm:$0xff]
        %v944 = vld [vmem:[%s295 + $0xea8] sm:$0xff]
        %v945 = vld [vmem:[%s295 + $0xeb0] sm:$0xff]
        %v946 = vld [vmem:[%s295 + $0xeb8] sm:$0xff]
        %v947 = vld [vmem:[%s295 + $0xec0] sm:$0xff]
        %v948 = vld [vmem:[%s295 + $0xec8] sm:$0xff]
        %v949 = vld [vmem:[%s295 + $0xed0] sm:$0xff]
        %v950 = vld [vmem:[%s295 + $0xed8] sm:$0xff]
        %v951 = vld [vmem:[%s295 + $0xee0] sm:$0xff]
        %v952 = vld [vmem:[%s295 + $0xee8] sm:$0xff]
        %v953 = vld [vmem:[%s295 + $0xef0] sm:$0xff]
        %v954 = vld [vmem:[%s295 + $0xef8] sm:$0xff]
        %v955 = vld [vmem:[%s295 + $0xf00] sm:$0xff]
        %v956 = vld [vmem:[%s295 + $0xf08] sm:$0xff]
        %v957 = vld [vmem:[%s295 + $0xf10] sm:$0xff]
        %v958 = vld [vmem:[%s295 + $0xf18] sm:$0xff]
        %v959 = vld [vmem:[%s295 + $0xf20] sm:$0xff]
        %v960 = vld [vmem:[%s295 + $0xf28] sm:$0xff]
        %v961 = vld [vmem:[%s295 + $0xf30] sm:$0xff]
        %v962 = vld [vmem:[%s295 + $0xf38] sm:$0xff]
        %v963 = vld [vmem:[%s295 + $0xf40] sm:$0xff]
        %v964 = vld [vmem:[%s295 + $0xf48] sm:$0xff]
        %v965 = vld [vmem:[%s295 + $0xf50] sm:$0xff]
        %v966 = vld [vmem:[%s295 + $0xf58] sm:$0xff]
        %v967 = vld [vmem:[%s295 + $0xf60] sm:$0xff]
        %v968 = vld [vmem:[%s295 + $0xf68] sm:$0xff]
        %v969 = vld [vmem:[%s295 + $0xf70] sm:$0xff]
        %v970 = vld [vmem:[%s295 + $0xf78] sm:$0xff]
        %v971 = vld [vmem:[%s295 + $0xf80] sm:$0xff]
        %v972 = vld [vmem:[%s295 + $0xf88] sm:$0xff]
        %v973 = vld [vmem:[%s295 + $0xf90] sm:$0xff]
        %v974 = vld [vmem:[%s295 + $0xf98] sm:$0xff]
        %v975 = vld [vmem:[%s295 + $0xfa0] sm:$0xff]
        %v976 = vld [vmem:[%s295 + $0xfa8] sm:$0xff]
        %v977 = vld [vmem:[%s295 + $0xfb0] sm:$0xff]
        %v978 = vld [vmem:[%s295 + $0xfb8] sm:$0xff]
        %v979 = vld [vmem:[%s295 + $0xfc0] sm:$0xff]
        %v980 = vld [vmem:[%s295 + $0xfc8] sm:$0xff]
        %v981 = vld [vmem:[%s295 + $0xfd0] sm:$0xff]
        %v982 = vld [vmem:[%s295 + $0xfd8] sm:$0xff]
        %v983 = vld [vmem:[%s295 + $0xfe0] sm:$0xff]
        %v984 = vld [vmem:[%s295 + $0xfe8] sm:$0xff]
        %v985 = vld [vmem:[%s295 + $0xff0] sm:$0xff]
        %v986 = vld [vmem:[%s295 + $0xff8] sm:$0xff]
        %v987 = vld [vmem:[%s295 + $0x1000] sm:$0xff]
        %v988 = vld [vmem:[%s295 + $0x1008] sm:$0xff]
        %v989 = vld [vmem:[%s295 + $0x1010] sm:$0xff]
        %v990 = vld [vmem:[%s295 + $0x1018] sm:$0xff]
        %v991 = vld [vmem:[%s295 + $0x1020] sm:$0xff]
        %v992 = vld [vmem:[%s295 + $0x1028] sm:$0xff]
        %v993 = vld [vmem:[%s295 + $0x1030] sm:$0xff]
        %v994 = vld [vmem:[%s295 + $0x1038] sm:$0xff]
        %v995 = vld [vmem:[%s295 + $0x1040] sm:$0xff]
        %v996 = vld [vmem:[%s295 + $0x1048] sm:$0xff]
        %v997 = vld [vmem:[%s295 + $0x1050] sm:$0xff]
        %v998 = vld [vmem:[%s295 + $0x1058] sm:$0xff]
        %v999 = vld [vmem:[%s295 + $0x1060] sm:$0xff]
        %v1000 = vld [vmem:[%s295 + $0x1068] sm:$0xff]
        %v1001 = vld [vmem:[%s295 + $0x1070] sm:$0xff]
        %v1002 = vld [vmem:[%s295 + $0x1078] sm:$0xff]
        %v1003 = vld [vmem:[%s295 + $0x1080] sm:$0xff]
        %v1004 = vld [vmem:[%s295 + $0x1088] sm:$0xff]
        %v1005 = vld [vmem:[%s295 + $0x1090] sm:$0xff]
        %v1006 = vld [vmem:[%s295 + $0x1098] sm:$0xff]
        %v1007 = vld [vmem:[%s295 + $0x10a0] sm:$0xff]
        %v1008 = vld [vmem:[%s295 + $0x10a8] sm:$0xff]
        %v1009 = vld [vmem:[%s295 + $0x10b0] sm:$0xff]
        %v1010 = vld [vmem:[%s295 + $0x10b8] sm:$0xff]
        %v1011 = vld [vmem:[%s295 + $0x10c0] sm:$0xff]
        %v1012 = vld [vmem:[%s295 + $0x10c8] sm:$0xff]
        %v1013 = vld [vmem:[%s295 + $0x10d0] sm:$0xff]
        %v1014 = vld [vmem:[%s295 + $0x10d8] sm:$0xff]
        %v1015 = vld [vmem:[%s295 + $0x10e0] sm:$0xff]
        %v1016 = vld [vmem:[%s295 + $0x10e8] sm:$0xff]
        %v1017 = vld [vmem:[%s295 + $0x10f0] sm:$0xff]
        %v1018 = vld [vmem:[%s295 + $0x10f8] sm:$0xff]
        %v1019 = vld [vmem:[%s295 + $0x1100] sm:$0xff]
        %v1020 = vld [vmem:[%s295 + $0x1108] sm:$0xff]
        %v1021 = vld [vmem:[%s295 + $0x1110] sm:$0xff]
        %v1022 = vld [vmem:[%s295 + $0x1118] sm:$0xff]
        %v1023 = vld [vmem:[%s295 + $0x1120] sm:$0xff]
        %v1024 = vld [vmem:[%s295 + $0x1128] sm:$0xff]
        %v1025 = vld [vmem:[%s295 + $0x1130] sm:$0xff]
        %v1026 = vld [vmem:[%s295 + $0x1138] sm:$0xff]
        %v1027 = vld [vmem:[%s295 + $0x1140] sm:$0xff]
        %v1028 = vld [vmem:[%s295 + $0x1148] sm:$0xff]
        %v1029 = vld [vmem:[%s295 + $0x1150] sm:$0xff]
        %v1030 = vld [vmem:[%s295 + $0x1158] sm:$0xff]
        %v1031 = vld [vmem:[%s295 + $0x1160] sm:$0xff]
        %v1032 = vld [vmem:[%s295 + $0x1168] sm:$0xff]
        %v1033 = vld [vmem:[%s295 + $0x1170] sm:$0xff]
        %v1034 = vld [vmem:[%s295 + $0x1178] sm:$0xff]
        %v1035 = vld [vmem:[%s295 + $0x1180] sm:$0xff]
        %v1036 = vld [vmem:[%s295 + $0x1188] sm:$0xff]
        %v1037 = vld [vmem:[%s295 + $0x1190] sm:$0xff]
        %v1038 = vld [vmem:[%s295 + $0x1198] sm:$0xff]
        %v1039 = vld [vmem:[%s295 + $0x11a0] sm:$0xff]
        %v1040 = vld [vmem:[%s295 + $0x11a8] sm:$0xff]
        %v1041 = vld [vmem:[%s295 + $0x11b0] sm:$0xff]
        %v1042 = vld [vmem:[%s295 + $0x11b8] sm:$0xff]
        %v1043 = vld [vmem:[%s295 + $0x11c0] sm:$0xff]
        %v1044 = vld [vmem:[%s295 + $0x11c8] sm:$0xff]
        %v1045 = vld [vmem:[%s295 + $0x11d0] sm:$0xff]
        %v1046 = vld [vmem:[%s295 + $0x11d8] sm:$0xff]
        %v1047 = vld [vmem:[%s295 + $0x11e0] sm:$0xff]
        %v1048 = vld [vmem:[%s295 + $0x11e8] sm:$0xff]
        %v1049 = vld [vmem:[%s295 + $0x11f0] sm:$0xff]
        %v1050 = vld [vmem:[%s295 + $0x11f8] sm:$0xff]
        %v1051 = vld [vmem:[%s295 + $0x1200] sm:$0xff]
        %v1052 = vld [vmem:[%s295 + $0x1208] sm:$0xff]
        %v1053 = vld [vmem:[%s295 + $0x1210] sm:$0xff]
        %v1054 = vld [vmem:[%s295 + $0x1218] sm:$0xff]
        %v1055 = vld [vmem:[%s295 + $0x1220] sm:$0xff]
        %v1056 = vld [vmem:[%s295 + $0x1228] sm:$0xff]
        %v1057 = vld [vmem:[%s295 + $0x1230] sm:$0xff]
        %v1058 = vld [vmem:[%s295 + $0x1238] sm:$0xff]
        %v1059 = vld [vmem:[%s295 + $0x1240] sm:$0xff]
        %v1060 = vld [vmem:[%s295 + $0x1248] sm:$0xff]
        %v1061 = vld [vmem:[%s295 + $0x1250] sm:$0xff]
        %v1062 = vld [vmem:[%s295 + $0x1258] sm:$0xff]
        %v1063 = vld [vmem:[%s295 + $0x1260] sm:$0xff]
        %v1064 = vld [vmem:[%s295 + $0x1268] sm:$0xff]
        %v1065 = vld [vmem:[%s295 + $0x1270] sm:$0xff]
        %v1066 = vld [vmem:[%s295 + $0x1278] sm:$0xff]
        %v1067 = vld [vmem:[%s295 + $0x1280] sm:$0xff]
        %v1068 = vld [vmem:[%s295 + $0x1288] sm:$0xff]
        %v1069 = vld [vmem:[%s295 + $0x1290] sm:$0xff]
        %v1070 = vld [vmem:[%s295 + $0x1298] sm:$0xff]
        %v1071 = vld [vmem:[%s295 + $0x12a0] sm:$0xff]
        %v1072 = vld [vmem:[%s295 + $0x12a8] sm:$0xff]
        %v1073 = vld [vmem:[%s295 + $0x12b0] sm:$0xff]
        %v1074 = vld [vmem:[%s295 + $0x12b8] sm:$0xff]
        %v1075 = vld [vmem:[%s295 + $0x12c0] sm:$0xff]
        %v1076 = vld [vmem:[%s295 + $0x12c8] sm:$0xff]
        %v1077 = vld [vmem:[%s295 + $0x12d0] sm:$0xff]
        %v1078 = vld [vmem:[%s295 + $0x12d8] sm:$0xff]
        %v1079 = vld [vmem:[%s295 + $0x12e0] sm:$0xff]
        %v1080 = vld [vmem:[%s295 + $0x12e8] sm:$0xff]
        %v1081 = vld [vmem:[%s295 + $0x12f0] sm:$0xff]
        %v1082 = vld [vmem:[%s295 + $0x12f8] sm:$0xff]
        %v1083 = vld [vmem:[%s295 + $0x1300] sm:$0xff]
        %v1084 = vld [vmem:[%s295 + $0x1308] sm:$0xff]
        %v1085 = vld [vmem:[%s295 + $0x1310] sm:$0xff]
        %v1086 = vld [vmem:[%s295 + $0x1318] sm:$0xff]
        %v1087 = vld [vmem:[%s295 + $0x1320] sm:$0xff]
        %v1088 = vld [vmem:[%s295 + $0x1328] sm:$0xff]
        %v1089 = vld [vmem:[%s295 + $0x1330] sm:$0xff]
        %v1090 = vld [vmem:[%s295 + $0x1338] sm:$0xff]
        %v1091 = vld [vmem:[%s295 + $0x1340] sm:$0xff]
        %v1092 = vld [vmem:[%s295 + $0x1348] sm:$0xff]
        %v1093 = vld [vmem:[%s295 + $0x1350] sm:$0xff]
        %v1094 = vld [vmem:[%s295 + $0x1358] sm:$0xff]
        %v1095 = vld [vmem:[%s295 + $0x1360] sm:$0xff]
        %v1096 = vld [vmem:[%s295 + $0x1368] sm:$0xff]
        %v1097 = vld [vmem:[%s295 + $0x1370] sm:$0xff]
        %v1098 = vld [vmem:[%s295 + $0x1378] sm:$0xff]
        %v1099 = vld [vmem:[%s295 + $0x1380] sm:$0xff]
        %v1100 = vld [vmem:[%s295 + $0x1388] sm:$0xff]
        %v1101 = vld [vmem:[%s295 + $0x1390] sm:$0xff]
        %v1102 = vld [vmem:[%s295 + $0x1398] sm:$0xff]
        %v1103 = vld [vmem:[%s295 + $0x13a0] sm:$0xff]
        %v1104 = vld [vmem:[%s295 + $0x13a8] sm:$0xff]
        %v1105 = vld [vmem:[%s295 + $0x13b0] sm:$0xff]
        %v1106 = vld [vmem:[%s295 + $0x13b8] sm:$0xff]
        %v1107 = vld [vmem:[%s295 + $0x13c0] sm:$0xff]
        %v1108 = vld [vmem:[%s295 + $0x13c8] sm:$0xff]
        %v1109 = vld [vmem:[%s295 + $0x13d0] sm:$0xff]
        %v1110 = vld [vmem:[%s295 + $0x13d8] sm:$0xff]
        %v1111 = vld [vmem:[%s295 + $0x13e0] sm:$0xff]
        %v1112 = vld [vmem:[%s295 + $0x13e8] sm:$0xff]
        %v1113 = vld [vmem:[%s295 + $0x13f0] sm:$0xff]
        %v1114 = vld [vmem:[%s295 + $0x13f8] sm:$0xff]
        %v1115 = vld [vmem:[%s295 + $0x1400] sm:$0xff]
        %v1116 = vld [vmem:[%s295 + $0x1408] sm:$0xff]
        %v1117 = vld [vmem:[%s295 + $0x1410] sm:$0xff]
        %v1118 = vld [vmem:[%s295 + $0x1418] sm:$0xff]
        %v1119 = vld [vmem:[%s295 + $0x1420] sm:$0xff]
        %v1120 = vld [vmem:[%s295 + $0x1428] sm:$0xff]
        %v1121 = vld [vmem:[%s295 + $0x1430] sm:$0xff]
        %v1122 = vld [vmem:[%s295 + $0x1438] sm:$0xff]
        %v1123 = vld [vmem:[%s295 + $0x1440] sm:$0xff]
        %v1124 = vld [vmem:[%s295 + $0x1448] sm:$0xff]
        %v1125 = vld [vmem:[%s295 + $0x1450] sm:$0xff]
        %v1126 = vld [vmem:[%s295 + $0x1458] sm:$0xff]
        %v1127 = vld [vmem:[%s295 + $0x1460] sm:$0xff]
        %v1128 = vld [vmem:[%s295 + $0x1468] sm:$0xff]
        %v1129 = vld [vmem:[%s295 + $0x1470] sm:$0xff]
        %v1130 = vld [vmem:[%s295 + $0x1478] sm:$0xff]
        %v1131 = vld [vmem:[%s295 + $0x1480] sm:$0xff]
        %v1132 = vld [vmem:[%s295 + $0x1488] sm:$0xff]
        %v1133 = vld [vmem:[%s295 + $0x1490] sm:$0xff]
        %v1134 = vld [vmem:[%s295 + $0x1498] sm:$0xff]
        %v1135 = vld [vmem:[%s295 + $0x14a0] sm:$0xff]
        %v1136 = vld [vmem:[%s295 + $0x14a8] sm:$0xff]
        %v1137 = vld [vmem:[%s295 + $0x14b0] sm:$0xff]
        %v1138 = vld [vmem:[%s295 + $0x14b8] sm:$0xff]
        %v1139 = vld [vmem:[%s295 + $0x14c0] sm:$0xff]
        %v1140 = vld [vmem:[%s295 + $0x14c8] sm:$0xff]
        %v1141 = vld [vmem:[%s295 + $0x14d0] sm:$0xff]
        %v1142 = vld [vmem:[%s295 + $0x14d8] sm:$0xff]
        %v1143 = vld [vmem:[%s295 + $0x14e0] sm:$0xff]
        %v1144 = vld [vmem:[%s295 + $0x14e8] sm:$0xff]
        %v1145 = vld [vmem:[%s295 + $0x14f0] sm:$0xff]
        %v1146 = vld [vmem:[%s295 + $0x14f8] sm:$0xff]
        %v1147 = vunpack.c.l.s8.bf16 %v475
        %v1148 = vunpack.c.l.s8.bf16 %v476
        %v1149 = vunpack.c.h.s8.bf16 %v475
        %v1150 = vunpack.c.h.s8.bf16 %v476
        %v1151 = vunpack.c.l.s8.bf16 %v477
        %v1152 = vunpack.c.l.s8.bf16 %v478
        %v1153 = vunpack.c.h.s8.bf16 %v477
        %v1154 = vunpack.c.h.s8.bf16 %v478
        %v1155 = vunpack.c.l.s8.bf16 %v479
        %v1156 = vunpack.c.l.s8.bf16 %v480
        %v1157 = vunpack.c.h.s8.bf16 %v479
        %v1158 = vunpack.c.h.s8.bf16 %v480
        %v1159 = vunpack.c.l.s8.bf16 %v481
        %v1160 = vunpack.c.l.s8.bf16 %v482
        %v1161 = vunpack.c.h.s8.bf16 %v481
        %v1162 = vunpack.c.h.s8.bf16 %v482
        %v1163 = vunpack.c.l.s8.bf16 %v483
        %v1164 = vunpack.c.l.s8.bf16 %v484
        %v1165 = vunpack.c.h.s8.bf16 %v483
        %v1166 = vunpack.c.h.s8.bf16 %v484
        %v1167 = vunpack.c.l.s8.bf16 %v485
        %v1168 = vunpack.c.l.s8.bf16 %v486
        %v1169 = vunpack.c.h.s8.bf16 %v485
        %v1170 = vunpack.c.h.s8.bf16 %v486
        %v1171 = vunpack.c.l.s8.bf16 %v487
        %v1172 = vunpack.c.l.s8.bf16 %v488
        %v1173 = vunpack.c.h.s8.bf16 %v487
        %v1174 = vunpack.c.h.s8.bf16 %v488
        %v1175 = vunpack.c.l.s8.bf16 %v489
        %v1176 = vunpack.c.l.s8.bf16 %v490
        %v1177 = vunpack.c.h.s8.bf16 %v489
        %v1178 = vunpack.c.h.s8.bf16 %v490
        %v1179 = vunpack.c.l.s8.bf16 %v491
        %v1180 = vunpack.c.l.s8.bf16 %v492
        %v1181 = vunpack.c.h.s8.bf16 %v491
        %v1182 = vunpack.c.h.s8.bf16 %v492
        %v1183 = vunpack.c.l.s8.bf16 %v493
        %v1184 = vunpack.c.l.s8.bf16 %v494
        %v1185 = vunpack.c.h.s8.bf16 %v493
        %v1186 = vunpack.c.h.s8.bf16 %v494
        %v1187 = vunpack.c.l.s8.bf16 %v495
        %v1188 = vunpack.c.l.s8.bf16 %v496
        %v1189 = vunpack.c.h.s8.bf16 %v495
        %v1190 = vunpack.c.h.s8.bf16 %v496
        %v1191 = vunpack.c.l.s8.bf16 %v497
        %v1192 = vunpack.c.l.s8.bf16 %v498
        %v1193 = vunpack.c.h.s8.bf16 %v497
        %v1194 = vunpack.c.h.s8.bf16 %v498
        %v1195 = vunpack.c.l.s8.bf16 %v499
        %v1196 = vunpack.c.l.s8.bf16 %v500
        %v1197 = vunpack.c.h.s8.bf16 %v499
        %v1198 = vunpack.c.h.s8.bf16 %v500
        %v1199 = vunpack.c.l.s8.bf16 %v501
        %v1200 = vunpack.c.l.s8.bf16 %v502
        %v1201 = vunpack.c.h.s8.bf16 %v501
        %v1202 = vunpack.c.h.s8.bf16 %v502
        %v1203 = vunpack.c.l.s8.bf16 %v503
        %v1204 = vunpack.c.l.s8.bf16 %v504
        %v1205 = vunpack.c.h.s8.bf16 %v503
        %v1206 = vunpack.c.h.s8.bf16 %v504
        %v1207 = vunpack.c.l.s8.bf16 %v505
        %v1208 = vunpack.c.l.s8.bf16 %v506
        %v1209 = vunpack.c.h.s8.bf16 %v505
        %v1210 = vunpack.c.h.s8.bf16 %v506
        %v1211 = vunpack.c.l.s8.bf16 %v507
        %v1212 = vunpack.c.l.s8.bf16 %v508
        %v1213 = vunpack.c.h.s8.bf16 %v507
        %v1214 = vunpack.c.h.s8.bf16 %v508
        %v1215 = vunpack.c.l.s8.bf16 %v509
        %v1216 = vunpack.c.l.s8.bf16 %v510
        %v1217 = vunpack.c.h.s8.bf16 %v509
        %v1218 = vunpack.c.h.s8.bf16 %v510
        %v1219 = vunpack.c.l.s8.bf16 %v511
        %v1220 = vunpack.c.l.s8.bf16 %v512
        %v1221 = vunpack.c.h.s8.bf16 %v511
        %v1222 = vunpack.c.h.s8.bf16 %v512
        %v1223 = vunpack.c.l.s8.bf16 %v513
        %v1224 = vunpack.c.l.s8.bf16 %v514
        %v1225 = vunpack.c.h.s8.bf16 %v513
        %v1226 = vunpack.c.h.s8.bf16 %v514
        %v1227 = vunpack.c.l.s8.bf16 %v515
        %v1228 = vunpack.c.l.s8.bf16 %v516
        %v1229 = vunpack.c.h.s8.bf16 %v515
        %v1230 = vunpack.c.h.s8.bf16 %v516
        %v1231 = vunpack.c.l.s8.bf16 %v517
        %v1232 = vunpack.c.l.s8.bf16 %v518
        %v1233 = vunpack.c.h.s8.bf16 %v517
        %v1234 = vunpack.c.h.s8.bf16 %v518
        %v1235 = vunpack.c.l.s8.bf16 %v519
        %v1236 = vunpack.c.l.s8.bf16 %v520
        %v1237 = vunpack.c.h.s8.bf16 %v519
        %v1238 = vunpack.c.h.s8.bf16 %v520
        %v1239 = vunpack.c.l.s8.bf16 %v521
        %v1240 = vunpack.c.l.s8.bf16 %v522
        %v1241 = vunpack.c.h.s8.bf16 %v521
        %v1242 = vunpack.c.h.s8.bf16 %v522
        %v1243 = vunpack.c.l.s8.bf16 %v523
        %v1244 = vunpack.c.l.s8.bf16 %v524
        %v1245 = vunpack.c.h.s8.bf16 %v523
        %v1246 = vunpack.c.h.s8.bf16 %v524
        %v1247 = vunpack.c.l.s8.bf16 %v525
        %v1248 = vunpack.c.l.s8.bf16 %v526
        %v1249 = vunpack.c.h.s8.bf16 %v525
        %v1250 = vunpack.c.h.s8.bf16 %v526
        %v1251 = vunpack.c.l.s8.bf16 %v527
        %v1252 = vunpack.c.l.s8.bf16 %v528
        %v1253 = vunpack.c.h.s8.bf16 %v527
        %v1254 = vunpack.c.h.s8.bf16 %v528
        %v1255 = vunpack.c.l.s8.bf16 %v529
        %v1256 = vunpack.c.l.s8.bf16 %v530
        %v1257 = vunpack.c.h.s8.bf16 %v529
        %v1258 = vunpack.c.h.s8.bf16 %v530
        %v1259 = vunpack.c.l.s8.bf16 %v531
        %v1260 = vunpack.c.l.s8.bf16 %v532
        %v1261 = vunpack.c.h.s8.bf16 %v531
        %v1262 = vunpack.c.h.s8.bf16 %v532
        %v1263 = vunpack.c.l.s8.bf16 %v533
        %v1264 = vunpack.c.l.s8.bf16 %v534
        %v1265 = vunpack.c.h.s8.bf16 %v533
        %v1266 = vunpack.c.h.s8.bf16 %v534
        %v1267 = vunpack.c.l.s8.bf16 %v535
        %v1268 = vunpack.c.l.s8.bf16 %v536
        %v1269 = vunpack.c.h.s8.bf16 %v535
        %v1270 = vunpack.c.h.s8.bf16 %v536
        %v1271 = vunpack.c.l.s8.bf16 %v537
        %v1272 = vunpack.c.l.s8.bf16 %v538
        %v1273 = vunpack.c.h.s8.bf16 %v537
        %v1274 = vunpack.c.h.s8.bf16 %v538
        %v1275 = vunpack.c.l.s8.bf16 %v539
        %v1276 = vunpack.c.l.s8.bf16 %v540
        %v1277 = vunpack.c.h.s8.bf16 %v539
        %v1278 = vunpack.c.h.s8.bf16 %v540
        %v1279 = vunpack.c.l.s8.bf16 %v541
        %v1280 = vunpack.c.l.s8.bf16 %v542
        %v1281 = vunpack.c.h.s8.bf16 %v541
        %v1282 = vunpack.c.h.s8.bf16 %v542
        %v1283 = vunpack.c.l.s8.bf16 %v543
        %v1284 = vunpack.c.l.s8.bf16 %v544
        %v1285 = vunpack.c.h.s8.bf16 %v543
        %v1286 = vunpack.c.h.s8.bf16 %v544
        %v1287 = vunpack.c.l.s8.bf16 %v545
        %v1288 = vunpack.c.l.s8.bf16 %v546
        %v1289 = vunpack.c.h.s8.bf16 %v545
        %v1290 = vunpack.c.h.s8.bf16 %v546
        %v1291 = vunpack.c.l.s8.bf16 %v547
        %v1292 = vunpack.c.l.s8.bf16 %v548
        %v1293 = vunpack.c.h.s8.bf16 %v547
        %v1294 = vunpack.c.h.s8.bf16 %v548
        %v1295 = vunpack.c.l.s8.bf16 %v549
        %v1296 = vunpack.c.l.s8.bf16 %v550
        %v1297 = vunpack.c.h.s8.bf16 %v549
        %v1298 = vunpack.c.h.s8.bf16 %v550
        %v1299 = vunpack.c.l.s8.bf16 %v551
        %v1300 = vunpack.c.l.s8.bf16 %v552
        %v1301 = vunpack.c.h.s8.bf16 %v551
        %v1302 = vunpack.c.h.s8.bf16 %v552
        %v1303 = vunpack.c.l.s8.bf16 %v553
        %v1304 = vunpack.c.l.s8.bf16 %v554
        %v1305 = vunpack.c.h.s8.bf16 %v553
        %v1306 = vunpack.c.h.s8.bf16 %v554
        %v1307 = vunpack.c.l.s8.bf16 %v555
        %v1308 = vunpack.c.l.s8.bf16 %v556
        %v1309 = vunpack.c.h.s8.bf16 %v555
        %v1310 = vunpack.c.h.s8.bf16 %v556
        %v1311 = vunpack.c.l.s8.bf16 %v557
        %v1312 = vunpack.c.l.s8.bf16 %v558
        %v1313 = vunpack.c.h.s8.bf16 %v557
        %v1314 = vunpack.c.h.s8.bf16 %v558
        %v1315 = vunpack.c.l.s8.bf16 %v559
        %v1316 = vunpack.c.l.s8.bf16 %v560
        %v1317 = vunpack.c.h.s8.bf16 %v559
        %v1318 = vunpack.c.h.s8.bf16 %v560
        %v1319 = vunpack.c.l.s8.bf16 %v561
        %v1320 = vunpack.c.l.s8.bf16 %v562
        %v1321 = vunpack.c.h.s8.bf16 %v561
        %v1322 = vunpack.c.h.s8.bf16 %v562
        %v1323 = vunpack.c.l.s8.bf16 %v563
        %v1324 = vunpack.c.l.s8.bf16 %v564
        %v1325 = vunpack.c.h.s8.bf16 %v563
        %v1326 = vunpack.c.h.s8.bf16 %v564
        %v1327 = vunpack.c.l.s8.bf16 %v565
        %v1328 = vunpack.c.l.s8.bf16 %v566
        %v1329 = vunpack.c.h.s8.bf16 %v565
        %v1330 = vunpack.c.h.s8.bf16 %v566
        %v1331 = vunpack.c.l.s8.bf16 %v567
        %v1332 = vunpack.c.l.s8.bf16 %v568
        %v1333 = vunpack.c.h.s8.bf16 %v567
        %v1334 = vunpack.c.h.s8.bf16 %v568
        %v1335 = vunpack.c.l.s8.bf16 %v569
        %v1336 = vunpack.c.l.s8.bf16 %v570
        %v1337 = vunpack.c.h.s8.bf16 %v569
        %v1338 = vunpack.c.h.s8.bf16 %v570
        %v1339 = vunpack.c.l.s8.bf16 %v571
        %v1340 = vunpack.c.l.s8.bf16 %v572
        %v1341 = vunpack.c.h.s8.bf16 %v571
        %v1342 = vunpack.c.h.s8.bf16 %v572
        %v1343 = vunpack.c.l.s8.bf16 %v573
        %v1344 = vunpack.c.l.s8.bf16 %v574
        %v1345 = vunpack.c.h.s8.bf16 %v573
        %v1346 = vunpack.c.h.s8.bf16 %v574
        %v1347 = vunpack.c.l.s8.bf16 %v575
        %v1348 = vunpack.c.l.s8.bf16 %v576
        %v1349 = vunpack.c.h.s8.bf16 %v575
        %v1350 = vunpack.c.h.s8.bf16 %v576
        %v1351 = vunpack.c.l.s8.bf16 %v577
        %v1352 = vunpack.c.l.s8.bf16 %v578
        %v1353 = vunpack.c.h.s8.bf16 %v577
        %v1354 = vunpack.c.h.s8.bf16 %v578
        %v1355 = vunpack.c.l.s8.bf16 %v579
        %v1356 = vunpack.c.l.s8.bf16 %v580
        %v1357 = vunpack.c.h.s8.bf16 %v579
        %v1358 = vunpack.c.h.s8.bf16 %v580
        %v1359 = vunpack.c.l.s8.bf16 %v581
        %v1360 = vunpack.c.l.s8.bf16 %v582
        %v1361 = vunpack.c.h.s8.bf16 %v581
        %v1362 = vunpack.c.h.s8.bf16 %v582
        %v1363 = vunpack.c.l.s8.bf16 %v583
        %v1364 = vunpack.c.l.s8.bf16 %v584
        %v1365 = vunpack.c.h.s8.bf16 %v583
        %v1366 = vunpack.c.h.s8.bf16 %v584
        %v1367 = vunpack.c.l.s8.bf16 %v585
        %v1368 = vunpack.c.l.s8.bf16 %v586
        %v1369 = vunpack.c.h.s8.bf16 %v585
        %v1370 = vunpack.c.h.s8.bf16 %v586
        %v1371 = vunpack.c.l.s8.bf16 %v587
        %v1372 = vunpack.c.l.s8.bf16 %v588
        %v1373 = vunpack.c.h.s8.bf16 %v587
        %v1374 = vunpack.c.h.s8.bf16 %v588
        %v1375 = vunpack.c.l.s8.bf16 %v589
        %v1376 = vunpack.c.l.s8.bf16 %v590
        %v1377 = vunpack.c.h.s8.bf16 %v589
        %v1378 = vunpack.c.h.s8.bf16 %v590
        %v1379 = vunpack.c.l.s8.bf16 %v591
        %v1380 = vunpack.c.l.s8.bf16 %v592
        %v1381 = vunpack.c.h.s8.bf16 %v591
        %v1382 = vunpack.c.h.s8.bf16 %v592
        %v1383 = vunpack.c.l.s8.bf16 %v593
        %v1384 = vunpack.c.l.s8.bf16 %v594
        %v1385 = vunpack.c.h.s8.bf16 %v593
        %v1386 = vunpack.c.h.s8.bf16 %v594
        %v1387 = vunpack.c.l.s8.bf16 %v595
        %v1388 = vunpack.c.l.s8.bf16 %v596
        %v1389 = vunpack.c.h.s8.bf16 %v595
        %v1390 = vunpack.c.h.s8.bf16 %v596
        %v1391 = vunpack.c.l.s8.bf16 %v597
        %v1392 = vunpack.c.l.s8.bf16 %v598
        %v1393 = vunpack.c.h.s8.bf16 %v597
        %v1394 = vunpack.c.h.s8.bf16 %v598
        %v1395 = vunpack.c.l.s8.bf16 %v599
        %v1396 = vunpack.c.l.s8.bf16 %v600
        %v1397 = vunpack.c.h.s8.bf16 %v599
        %v1398 = vunpack.c.h.s8.bf16 %v600
        %v1399 = vunpack.c.l.s8.bf16 %v601
        %v1400 = vunpack.c.l.s8.bf16 %v602
        %v1401 = vunpack.c.h.s8.bf16 %v601
        %v1402 = vunpack.c.h.s8.bf16 %v602
        %v1403 = vunpack.c.l.s8.bf16 %v603
        %v1404 = vunpack.c.l.s8.bf16 %v604
        %v1405 = vunpack.c.h.s8.bf16 %v603
        %v1406 = vunpack.c.h.s8.bf16 %v604
        %v1407 = vunpack.c.l.s8.bf16 %v605
        %v1408 = vunpack.c.l.s8.bf16 %v606
        %v1409 = vunpack.c.h.s8.bf16 %v605
        %v1410 = vunpack.c.h.s8.bf16 %v606
        %v1411 = vunpack.c.l.s8.bf16 %v607
        %v1412 = vunpack.c.l.s8.bf16 %v608
        %v1413 = vunpack.c.h.s8.bf16 %v607
        %v1414 = vunpack.c.h.s8.bf16 %v608
        %v1415 = vunpack.c.l.s8.bf16 %v609
        %v1416 = vunpack.c.l.s8.bf16 %v610
        %v1417 = vunpack.c.h.s8.bf16 %v609
        %v1418 = vunpack.c.h.s8.bf16 %v610
        %v1419 = vunpack.c.l.s8.bf16 %v611
        %v1420 = vunpack.c.l.s8.bf16 %v612
        %v1421 = vunpack.c.h.s8.bf16 %v611
        %v1422 = vunpack.c.h.s8.bf16 %v612
        %v1423 = vunpack.c.l.s8.bf16 %v613
        %v1424 = vunpack.c.l.s8.bf16 %v614
        %v1425 = vunpack.c.h.s8.bf16 %v613
        %v1426 = vunpack.c.h.s8.bf16 %v614
        %v1427 = vunpack.c.l.s8.bf16 %v615
        %v1428 = vunpack.c.l.s8.bf16 %v616
        %v1429 = vunpack.c.h.s8.bf16 %v615
        %v1430 = vunpack.c.h.s8.bf16 %v616
        %v1431 = vunpack.c.l.s8.bf16 %v617
        %v1432 = vunpack.c.l.s8.bf16 %v618
        %v1433 = vunpack.c.h.s8.bf16 %v617
        %v1434 = vunpack.c.h.s8.bf16 %v618
        %v1435 = vunpack.c.l.s8.bf16 %v619
        %v1436 = vunpack.c.l.s8.bf16 %v620
        %v1437 = vunpack.c.h.s8.bf16 %v619
        %v1438 = vunpack.c.h.s8.bf16 %v620
        %v1439 = vunpack.c.l.s8.bf16 %v621
        %v1440 = vunpack.c.l.s8.bf16 %v622
        %v1441 = vunpack.c.h.s8.bf16 %v621
        %v1442 = vunpack.c.h.s8.bf16 %v622
        %v1443 = vunpack.c.l.s8.bf16 %v623
        %v1444 = vunpack.c.l.s8.bf16 %v624
        %v1445 = vunpack.c.h.s8.bf16 %v623
        %v1446 = vunpack.c.h.s8.bf16 %v624
        %v1447 = vunpack.c.l.s8.bf16 %v625
        %v1448 = vunpack.c.l.s8.bf16 %v626
        %v1449 = vunpack.c.h.s8.bf16 %v625
        %v1450 = vunpack.c.h.s8.bf16 %v626
        %v1451 = vunpack.c.l.s8.bf16 %v627
        %v1452 = vunpack.c.l.s8.bf16 %v628
        %v1453 = vunpack.c.h.s8.bf16 %v627
        %v1454 = vunpack.c.h.s8.bf16 %v628
        %v1455 = vunpack.c.l.s8.bf16 %v629
        %v1456 = vunpack.c.l.s8.bf16 %v630
        %v1457 = vunpack.c.h.s8.bf16 %v629
        %v1458 = vunpack.c.h.s8.bf16 %v630
        %v1459 = vunpack.c.l.s8.bf16 %v631
        %v1460 = vunpack.c.l.s8.bf16 %v632
        %v1461 = vunpack.c.h.s8.bf16 %v631
        %v1462 = vunpack.c.h.s8.bf16 %v632
        %v1463 = vunpack.c.l.s8.bf16 %v633
        %v1464 = vunpack.c.l.s8.bf16 %v634
        %v1465 = vunpack.c.h.s8.bf16 %v633
        %v1466 = vunpack.c.h.s8.bf16 %v634
        %v1467 = vunpack.c.l.s8.bf16 %v635
        %v1468 = vunpack.c.l.s8.bf16 %v636
        %v1469 = vunpack.c.h.s8.bf16 %v635
        %v1470 = vunpack.c.h.s8.bf16 %v636
        %v1471 = vunpack.c.l.s8.bf16 %v637
        %v1472 = vunpack.c.l.s8.bf16 %v638
        %v1473 = vunpack.c.h.s8.bf16 %v637
        %v1474 = vunpack.c.h.s8.bf16 %v638
        %v1475 = vunpack.c.l.s8.bf16 %v639
        %v1476 = vunpack.c.l.s8.bf16 %v640
        %v1477 = vunpack.c.h.s8.bf16 %v639
        %v1478 = vunpack.c.h.s8.bf16 %v640
        %v1479 = vunpack.c.l.s8.bf16 %v641
        %v1480 = vunpack.c.l.s8.bf16 %v642
        %v1481 = vunpack.c.h.s8.bf16 %v641
        %v1482 = vunpack.c.h.s8.bf16 %v642
        %v1483 = vunpack.c.l.s8.bf16 %v643
        %v1484 = vunpack.c.l.s8.bf16 %v644
        %v1485 = vunpack.c.h.s8.bf16 %v643
        %v1486 = vunpack.c.h.s8.bf16 %v644
        %v1487 = vunpack.c.l.s8.bf16 %v645
        %v1488 = vunpack.c.l.s8.bf16 %v646
        %v1489 = vunpack.c.h.s8.bf16 %v645
        %v1490 = vunpack.c.h.s8.bf16 %v646
        %v1491 = vunpack.c.l.s8.bf16 %v647
        %v1492 = vunpack.c.l.s8.bf16 %v648
        %v1493 = vunpack.c.h.s8.bf16 %v647
        %v1494 = vunpack.c.h.s8.bf16 %v648
        %v1495 = vunpack.c.l.s8.bf16 %v649
        %v1496 = vunpack.c.l.s8.bf16 %v650
        %v1497 = vunpack.c.h.s8.bf16 %v649
        %v1498 = vunpack.c.h.s8.bf16 %v650
        %v1499 = vunpack.c.l.s8.bf16 %v651
        %v1500 = vunpack.c.l.s8.bf16 %v652
        %v1501 = vunpack.c.h.s8.bf16 %v651
        %v1502 = vunpack.c.h.s8.bf16 %v652
        %v1503 = vunpack.c.l.s8.bf16 %v653
        %v1504 = vunpack.c.l.s8.bf16 %v654
        %v1505 = vunpack.c.h.s8.bf16 %v653
        %v1506 = vunpack.c.h.s8.bf16 %v654
        %v1507 = vunpack.c.l.s8.bf16 %v655
        %v1508 = vunpack.c.l.s8.bf16 %v656
        %v1509 = vunpack.c.h.s8.bf16 %v655
        %v1510 = vunpack.c.h.s8.bf16 %v656
        %v1511 = vunpack.c.l.s8.bf16 %v657
        %v1512 = vunpack.c.l.s8.bf16 %v658
        %v1513 = vunpack.c.h.s8.bf16 %v657
        %v1514 = vunpack.c.h.s8.bf16 %v658
        %v1515 = vunpack.c.l.s8.bf16 %v659
        %v1516 = vunpack.c.l.s8.bf16 %v660
        %v1517 = vunpack.c.h.s8.bf16 %v659
        %v1518 = vunpack.c.h.s8.bf16 %v660
        %v1519 = vunpack.c.l.s8.bf16 %v661
        %v1520 = vunpack.c.l.s8.bf16 %v662
        %v1521 = vunpack.c.h.s8.bf16 %v661
        %v1522 = vunpack.c.h.s8.bf16 %v662
        %v1523 = vunpack.c.l.s8.bf16 %v663
        %v1524 = vunpack.c.l.s8.bf16 %v664
        %v1525 = vunpack.c.h.s8.bf16 %v663
        %v1526 = vunpack.c.h.s8.bf16 %v664
        %v1527 = vunpack.c.l.s8.bf16 %v665
        %v1528 = vunpack.c.l.s8.bf16 %v666
        %v1529 = vunpack.c.h.s8.bf16 %v665
        %v1530 = vunpack.c.h.s8.bf16 %v666
        %v1531 = vunpack.c.l.s8.bf16 %v667
        %v1532 = vunpack.c.l.s8.bf16 %v668
        %v1533 = vunpack.c.h.s8.bf16 %v667
        %v1534 = vunpack.c.h.s8.bf16 %v668
        %v1535 = vunpack.c.l.s8.bf16 %v669
        %v1536 = vunpack.c.l.s8.bf16 %v670
        %v1537 = vunpack.c.h.s8.bf16 %v669
        %v1538 = vunpack.c.h.s8.bf16 %v670
        %v1539 = vunpack.c.l.s8.bf16 %v671
        %v1540 = vunpack.c.l.s8.bf16 %v672
        %v1541 = vunpack.c.h.s8.bf16 %v671
        %v1542 = vunpack.c.h.s8.bf16 %v672
        %v1543 = vunpack.c.l.s8.bf16 %v673
        %v1544 = vunpack.c.l.s8.bf16 %v674
        %v1545 = vunpack.c.h.s8.bf16 %v673
        %v1546 = vunpack.c.h.s8.bf16 %v674
        %v1547 = vunpack.c.l.s8.bf16 %v675
        %v1548 = vunpack.c.l.s8.bf16 %v676
        %v1549 = vunpack.c.h.s8.bf16 %v675
        %v1550 = vunpack.c.h.s8.bf16 %v676
        %v1551 = vunpack.c.l.s8.bf16 %v677
        %v1552 = vunpack.c.l.s8.bf16 %v678
        %v1553 = vunpack.c.h.s8.bf16 %v677
        %v1554 = vunpack.c.h.s8.bf16 %v678
        %v1555 = vunpack.c.l.s8.bf16 %v679
        %v1556 = vunpack.c.l.s8.bf16 %v680
        %v1557 = vunpack.c.h.s8.bf16 %v679
        %v1558 = vunpack.c.h.s8.bf16 %v680
        %v1559 = vunpack.c.l.s8.bf16 %v681
        %v1560 = vunpack.c.l.s8.bf16 %v682
        %v1561 = vunpack.c.h.s8.bf16 %v681
        %v1562 = vunpack.c.h.s8.bf16 %v682
        %v1563 = vunpack.c.l.s8.bf16 %v683
        %v1564 = vunpack.c.l.s8.bf16 %v684
        %v1565 = vunpack.c.h.s8.bf16 %v683
        %v1566 = vunpack.c.h.s8.bf16 %v684
        %v1567 = vunpack.c.l.s8.bf16 %v685
        %v1568 = vunpack.c.l.s8.bf16 %v686
        %v1569 = vunpack.c.h.s8.bf16 %v685
        %v1570 = vunpack.c.h.s8.bf16 %v686
        %v1571 = vunpack.c.l.s8.bf16 %v687
        %v1572 = vunpack.c.l.s8.bf16 %v688
        %v1573 = vunpack.c.h.s8.bf16 %v687
        %v1574 = vunpack.c.h.s8.bf16 %v688
        %v1575 = vunpack.c.l.s8.bf16 %v689
        %v1576 = vunpack.c.l.s8.bf16 %v690
        %v1577 = vunpack.c.h.s8.bf16 %v689
        %v1578 = vunpack.c.h.s8.bf16 %v690
        %v1579 = vunpack.c.l.s8.bf16 %v691
        %v1580 = vunpack.c.l.s8.bf16 %v692
        %v1581 = vunpack.c.h.s8.bf16 %v691
        %v1582 = vunpack.c.h.s8.bf16 %v692
        %v1583 = vunpack.c.l.s8.bf16 %v693
        %v1584 = vunpack.c.l.s8.bf16 %v694
        %v1585 = vunpack.c.h.s8.bf16 %v693
        %v1586 = vunpack.c.h.s8.bf16 %v694
        %v1587 = vunpack.c.l.s8.bf16 %v695
        %v1588 = vunpack.c.l.s8.bf16 %v696
        %v1589 = vunpack.c.h.s8.bf16 %v695
        %v1590 = vunpack.c.h.s8.bf16 %v696
        %v1591 = vunpack.c.l.s8.bf16 %v697
        %v1592 = vunpack.c.l.s8.bf16 %v698
        %v1593 = vunpack.c.h.s8.bf16 %v697
        %v1594 = vunpack.c.h.s8.bf16 %v698
        %v1595 = vunpack.c.l.s8.bf16 %v699
        %v1596 = vunpack.c.l.s8.bf16 %v700
        %v1597 = vunpack.c.h.s8.bf16 %v699
        %v1598 = vunpack.c.h.s8.bf16 %v700
        %v1599 = vunpack.c.l.s8.bf16 %v701
        %v1600 = vunpack.c.l.s8.bf16 %v702
        %v1601 = vunpack.c.h.s8.bf16 %v701
        %v1602 = vunpack.c.h.s8.bf16 %v702
        %v1603 = vunpack.c.l.s8.bf16 %v703
        %v1604 = vunpack.c.l.s8.bf16 %v704
        %v1605 = vunpack.c.h.s8.bf16 %v703
        %v1606 = vunpack.c.h.s8.bf16 %v704
        %v1607 = vunpack.c.l.s8.bf16 %v705
        %v1608 = vunpack.c.l.s8.bf16 %v706
        %v1609 = vunpack.c.h.s8.bf16 %v705
        %v1610 = vunpack.c.h.s8.bf16 %v706
        %v1611 = vunpack.c.l.s8.bf16 %v707
        %v1612 = vunpack.c.l.s8.bf16 %v708
        %v1613 = vunpack.c.h.s8.bf16 %v707
        %v1614 = vunpack.c.h.s8.bf16 %v708
        %v1615 = vunpack.c.l.s8.bf16 %v709
        %v1616 = vunpack.c.l.s8.bf16 %v710
        %v1617 = vunpack.c.h.s8.bf16 %v709
        %v1618 = vunpack.c.h.s8.bf16 %v710
        %v1619 = vunpack.c.l.s8.bf16 %v711
        %v1620 = vunpack.c.l.s8.bf16 %v712
        %v1621 = vunpack.c.h.s8.bf16 %v711
        %v1622 = vunpack.c.h.s8.bf16 %v712
        %v1623 = vunpack.c.l.s8.bf16 %v713
        %v1624 = vunpack.c.l.s8.bf16 %v714
        %v1625 = vunpack.c.h.s8.bf16 %v713
        %v1626 = vunpack.c.h.s8.bf16 %v714
        %v1627 = vunpack.c.l.s8.bf16 %v715
        %v1628 = vunpack.c.l.s8.bf16 %v716
        %v1629 = vunpack.c.h.s8.bf16 %v715
        %v1630 = vunpack.c.h.s8.bf16 %v716
        %v1631 = vunpack.c.l.s8.bf16 %v717
        %v1632 = vunpack.c.l.s8.bf16 %v718
        %v1633 = vunpack.c.h.s8.bf16 %v717
        %v1634 = vunpack.c.h.s8.bf16 %v718
        %v1635 = vunpack.c.l.s8.bf16 %v719
        %v1636 = vunpack.c.l.s8.bf16 %v720
        %v1637 = vunpack.c.h.s8.bf16 %v719
        %v1638 = vunpack.c.h.s8.bf16 %v720
        %v1639 = vunpack.c.l.s8.bf16 %v721
        %v1640 = vunpack.c.l.s8.bf16 %v722
        %v1641 = vunpack.c.h.s8.bf16 %v721
        %v1642 = vunpack.c.h.s8.bf16 %v722
        %v1643 = vunpack.c.l.s8.bf16 %v723
        %v1644 = vunpack.c.l.s8.bf16 %v724
        %v1645 = vunpack.c.h.s8.bf16 %v723
        %v1646 = vunpack.c.h.s8.bf16 %v724
        %v1647 = vunpack.c.l.s8.bf16 %v725
        %v1648 = vunpack.c.l.s8.bf16 %v726
        %v1649 = vunpack.c.h.s8.bf16 %v725
        %v1650 = vunpack.c.h.s8.bf16 %v726
        %v1651 = vunpack.c.l.s8.bf16 %v727
        %v1652 = vunpack.c.l.s8.bf16 %v728
        %v1653 = vunpack.c.h.s8.bf16 %v727
        %v1654 = vunpack.c.h.s8.bf16 %v728
        %v1655 = vunpack.c.l.s8.bf16 %v729
        %v1656 = vunpack.c.l.s8.bf16 %v730
        %v1657 = vunpack.c.h.s8.bf16 %v729
        %v1658 = vunpack.c.h.s8.bf16 %v730
        %v1659 = vunpack.c.l.s8.bf16 %v731
        %v1660 = vunpack.c.l.s8.bf16 %v732
        %v1661 = vunpack.c.h.s8.bf16 %v731
        %v1662 = vunpack.c.h.s8.bf16 %v732
        %v1663 = vunpack.c.l.s8.bf16 %v733
        %v1664 = vunpack.c.l.s8.bf16 %v734
        %v1665 = vunpack.c.h.s8.bf16 %v733
        %v1666 = vunpack.c.h.s8.bf16 %v734
        %v1667 = vunpack.c.l.s8.bf16 %v735
        %v1668 = vunpack.c.l.s8.bf16 %v736
        %v1669 = vunpack.c.h.s8.bf16 %v735
        %v1670 = vunpack.c.h.s8.bf16 %v736
        %v1671 = vunpack.c.l.s8.bf16 %v737
        %v1672 = vunpack.c.l.s8.bf16 %v738
        %v1673 = vunpack.c.h.s8.bf16 %v737
        %v1674 = vunpack.c.h.s8.bf16 %v738
        %v1675 = vunpack.c.l.s8.bf16 %v739
        %v1676 = vunpack.c.l.s8.bf16 %v740
        %v1677 = vunpack.c.h.s8.bf16 %v739
        %v1678 = vunpack.c.h.s8.bf16 %v740
        %v1679 = vunpack.c.l.s8.bf16 %v741
        %v1680 = vunpack.c.l.s8.bf16 %v742
        %v1681 = vunpack.c.h.s8.bf16 %v741
        %v1682 = vunpack.c.h.s8.bf16 %v742
        %v1683 = vunpack.c.l.s8.bf16 %v743
        %v1684 = vunpack.c.l.s8.bf16 %v744
        %v1685 = vunpack.c.h.s8.bf16 %v743
        %v1686 = vunpack.c.h.s8.bf16 %v744
        %v1687 = vunpack.c.l.s8.bf16 %v745
        %v1688 = vunpack.c.l.s8.bf16 %v746
        %v1689 = vunpack.c.h.s8.bf16 %v745
        %v1690 = vunpack.c.h.s8.bf16 %v746
        %v1691 = vunpack.c.l.s8.bf16 %v747
        %v1692 = vunpack.c.l.s8.bf16 %v748
        %v1693 = vunpack.c.h.s8.bf16 %v747
        %v1694 = vunpack.c.h.s8.bf16 %v748
        %v1695 = vunpack.c.l.s8.bf16 %v749
        %v1696 = vunpack.c.l.s8.bf16 %v750
        %v1697 = vunpack.c.h.s8.bf16 %v749
        %v1698 = vunpack.c.h.s8.bf16 %v750
        %v1699 = vunpack.c.l.s8.bf16 %v751
        %v1700 = vunpack.c.l.s8.bf16 %v752
        %v1701 = vunpack.c.h.s8.bf16 %v751
        %v1702 = vunpack.c.h.s8.bf16 %v752
        %v1703 = vunpack.c.l.s8.bf16 %v753
        %v1704 = vunpack.c.l.s8.bf16 %v754
        %v1705 = vunpack.c.h.s8.bf16 %v753
        %v1706 = vunpack.c.h.s8.bf16 %v754
        %v1707 = vunpack.c.l.s8.bf16 %v755
        %v1708 = vunpack.c.l.s8.bf16 %v756
        %v1709 = vunpack.c.h.s8.bf16 %v755
        %v1710 = vunpack.c.h.s8.bf16 %v756
        %v1711 = vunpack.c.l.s8.bf16 %v757
        %v1712 = vunpack.c.l.s8.bf16 %v758
        %v1713 = vunpack.c.h.s8.bf16 %v757
        %v1714 = vunpack.c.h.s8.bf16 %v758
        %v1715 = vunpack.c.l.s8.bf16 %v759
        %v1716 = vunpack.c.l.s8.bf16 %v760
        %v1717 = vunpack.c.h.s8.bf16 %v759
        %v1718 = vunpack.c.h.s8.bf16 %v760
        %v1719 = vunpack.c.l.s8.bf16 %v761
        %v1720 = vunpack.c.l.s8.bf16 %v762
        %v1721 = vunpack.c.h.s8.bf16 %v761
        %v1722 = vunpack.c.h.s8.bf16 %v762
        %v1723 = vunpack.c.l.s8.bf16 %v763
        %v1724 = vunpack.c.l.s8.bf16 %v764
        %v1725 = vunpack.c.h.s8.bf16 %v763
        %v1726 = vunpack.c.h.s8.bf16 %v764
        %v1727 = vunpack.c.l.s8.bf16 %v765
        %v1728 = vunpack.c.l.s8.bf16 %v766
        %v1729 = vunpack.c.h.s8.bf16 %v765
        %v1730 = vunpack.c.h.s8.bf16 %v766
        %v1731 = vunpack.c.l.s8.bf16 %v767
        %v1732 = vunpack.c.l.s8.bf16 %v768
        %v1733 = vunpack.c.h.s8.bf16 %v767
        %v1734 = vunpack.c.h.s8.bf16 %v768
        %v1735 = vunpack.c.l.s8.bf16 %v769
        %v1736 = vunpack.c.l.s8.bf16 %v770
        %v1737 = vunpack.c.h.s8.bf16 %v769
        %v1738 = vunpack.c.h.s8.bf16 %v770
        %v1739 = vunpack.c.l.s8.bf16 %v771
        %v1740 = vunpack.c.l.s8.bf16 %v772
        %v1741 = vunpack.c.h.s8.bf16 %v771
        %v1742 = vunpack.c.h.s8.bf16 %v772
        %v1743 = vunpack.c.l.s8.bf16 %v773
        %v1744 = vunpack.c.l.s8.bf16 %v774
        %v1745 = vunpack.c.h.s8.bf16 %v773
        %v1746 = vunpack.c.h.s8.bf16 %v774
        %v1747 = vunpack.c.l.s8.bf16 %v775
        %v1748 = vunpack.c.l.s8.bf16 %v776
        %v1749 = vunpack.c.h.s8.bf16 %v775
        %v1750 = vunpack.c.h.s8.bf16 %v776
        %v1751 = vunpack.c.l.s8.bf16 %v777
        %v1752 = vunpack.c.l.s8.bf16 %v778
        %v1753 = vunpack.c.h.s8.bf16 %v777
        %v1754 = vunpack.c.h.s8.bf16 %v778
        %v1755 = vunpack.c.l.s8.bf16 %v779
        %v1756 = vunpack.c.l.s8.bf16 %v780
        %v1757 = vunpack.c.h.s8.bf16 %v779
        %v1758 = vunpack.c.h.s8.bf16 %v780
        %v1759 = vunpack.c.l.s8.bf16 %v781
        %v1760 = vunpack.c.l.s8.bf16 %v782
        %v1761 = vunpack.c.h.s8.bf16 %v781
        %v1762 = vunpack.c.h.s8.bf16 %v782
        %v1763 = vunpack.c.l.s8.bf16 %v783
        %v1764 = vunpack.c.l.s8.bf16 %v784
        %v1765 = vunpack.c.h.s8.bf16 %v783
        %v1766 = vunpack.c.h.s8.bf16 %v784
        %v1767 = vunpack.c.l.s8.bf16 %v785
        %v1768 = vunpack.c.l.s8.bf16 %v786
        %v1769 = vunpack.c.h.s8.bf16 %v785
        %v1770 = vunpack.c.h.s8.bf16 %v786
        %v1771 = vunpack.c.l.s8.bf16 %v787
        %v1772 = vunpack.c.l.s8.bf16 %v788
        %v1773 = vunpack.c.h.s8.bf16 %v787
        %v1774 = vunpack.c.h.s8.bf16 %v788
        %v1775 = vunpack.c.l.s8.bf16 %v789
        %v1776 = vunpack.c.l.s8.bf16 %v790
        %v1777 = vunpack.c.h.s8.bf16 %v789
        %v1778 = vunpack.c.h.s8.bf16 %v790
        %v1779 = vunpack.c.l.s8.bf16 %v791
        %v1780 = vunpack.c.l.s8.bf16 %v792
        %v1781 = vunpack.c.h.s8.bf16 %v791
        %v1782 = vunpack.c.h.s8.bf16 %v792
        %v1783 = vunpack.c.l.s8.bf16 %v793
        %v1784 = vunpack.c.l.s8.bf16 %v794
        %v1785 = vunpack.c.h.s8.bf16 %v793
        %v1786 = vunpack.c.h.s8.bf16 %v794
        %v1787 = vunpack.c.l.s8.bf16 %v795
        %v1788 = vunpack.c.l.s8.bf16 %v796
        %v1789 = vunpack.c.h.s8.bf16 %v795
        %v1790 = vunpack.c.h.s8.bf16 %v796
        %v1791 = vunpack.c.l.s8.bf16 %v797
        %v1792 = vunpack.c.l.s8.bf16 %v798
        %v1793 = vunpack.c.h.s8.bf16 %v797
        %v1794 = vunpack.c.h.s8.bf16 %v798
        %v1795 = vunpack.c.l.s8.bf16 %v799
        %v1796 = vunpack.c.l.s8.bf16 %v800
        %v1797 = vunpack.c.h.s8.bf16 %v799
        %v1798 = vunpack.c.h.s8.bf16 %v800
        %v1799 = vunpack.c.l.s8.bf16 %v801
        %v1800 = vunpack.c.l.s8.bf16 %v802
        %v1801 = vunpack.c.h.s8.bf16 %v801
        %v1802 = vunpack.c.h.s8.bf16 %v802
        %v1803 = vunpack.c.l.s8.bf16 %v803
        %v1804 = vunpack.c.l.s8.bf16 %v804
        %v1805 = vunpack.c.h.s8.bf16 %v803
        %v1806 = vunpack.c.h.s8.bf16 %v804
        %v1807 = vunpack.c.l.s8.bf16 %v805
        %v1808 = vunpack.c.l.s8.bf16 %v806
        %v1809 = vunpack.c.h.s8.bf16 %v805
        %v1810 = vunpack.c.h.s8.bf16 %v806
        %v1811 = vunpack.c.l.s8.bf16 %v807
        %v1812 = vunpack.c.l.s8.bf16 %v808
        %v1813 = vunpack.c.h.s8.bf16 %v807
        %v1814 = vunpack.c.h.s8.bf16 %v808
        %v1815 = vunpack.c.l.s8.bf16 %v809
        %v1816 = vunpack.c.l.s8.bf16 %v810
        %v1817 = vunpack.c.h.s8.bf16 %v809
        %v1818 = vunpack.c.h.s8.bf16 %v810
        %v1819 = vunpack.c.l.s8.bf16 %v811
        %v1820 = vunpack.c.l.s8.bf16 %v812
        %v1821 = vunpack.c.h.s8.bf16 %v811
        %v1822 = vunpack.c.h.s8.bf16 %v812
        %v1823 = vunpack.c.l.s8.bf16 %v813
        %v1824 = vunpack.c.l.s8.bf16 %v814
        %v1825 = vunpack.c.h.s8.bf16 %v813
        %v1826 = vunpack.c.h.s8.bf16 %v814
        %v1827 = vunpack.c.l.s8.bf16 %v815
        %v1828 = vunpack.c.l.s8.bf16 %v816
        %v1829 = vunpack.c.h.s8.bf16 %v815
        %v1830 = vunpack.c.h.s8.bf16 %v816
        %v1831 = vunpack.c.l.s8.bf16 %v817
        %v1832 = vunpack.c.l.s8.bf16 %v818
        %v1833 = vunpack.c.h.s8.bf16 %v817
        %v1834 = vunpack.c.h.s8.bf16 %v818
        %v1835 = vunpack.c.l.s8.bf16 %v819
        %v1836 = vunpack.c.l.s8.bf16 %v820
        %v1837 = vunpack.c.h.s8.bf16 %v819
        %v1838 = vunpack.c.h.s8.bf16 %v820
        %v1839 = vunpack.c.l.s8.bf16 %v821
        %v1840 = vunpack.c.l.s8.bf16 %v822
        %v1841 = vunpack.c.h.s8.bf16 %v821
        %v1842 = vunpack.c.h.s8.bf16 %v822
        %v1843 = vunpack.c.l.s8.bf16 %v823
        %v1844 = vunpack.c.l.s8.bf16 %v824
        %v1845 = vunpack.c.h.s8.bf16 %v823
        %v1846 = vunpack.c.h.s8.bf16 %v824
        %v1847 = vunpack.c.l.s8.bf16 %v825
        %v1848 = vunpack.c.l.s8.bf16 %v826
        %v1849 = vunpack.c.h.s8.bf16 %v825
        %v1850 = vunpack.c.h.s8.bf16 %v826
        %v1851 = vunpack.c.l.s8.bf16 %v827
        %v1852 = vunpack.c.l.s8.bf16 %v828
        %v1853 = vunpack.c.h.s8.bf16 %v827
        %v1854 = vunpack.c.h.s8.bf16 %v828
        %v1855 = vunpack.c.l.s8.bf16 %v829
        %v1856 = vunpack.c.l.s8.bf16 %v830
        %v1857 = vunpack.c.h.s8.bf16 %v829
        %v1858 = vunpack.c.h.s8.bf16 %v830
        %v1859 = vunpack.c.l.s8.bf16 %v831
        %v1860 = vunpack.c.l.s8.bf16 %v832
        %v1861 = vunpack.c.h.s8.bf16 %v831
        %v1862 = vunpack.c.h.s8.bf16 %v832
        %v1863 = vunpack.c.l.s8.bf16 %v833
        %v1864 = vunpack.c.l.s8.bf16 %v834
        %v1865 = vunpack.c.h.s8.bf16 %v833
        %v1866 = vunpack.c.h.s8.bf16 %v834
        %v1867 = vunpack.c.l.s8.bf16 %v835
        %v1868 = vunpack.c.l.s8.bf16 %v836
        %v1869 = vunpack.c.h.s8.bf16 %v835
        %v1870 = vunpack.c.h.s8.bf16 %v836
        %v1871 = vunpack.c.l.s8.bf16 %v837
        %v1872 = vunpack.c.l.s8.bf16 %v838
        %v1873 = vunpack.c.h.s8.bf16 %v837
        %v1874 = vunpack.c.h.s8.bf16 %v838
        %v1875 = vunpack.c.l.s8.bf16 %v839
        %v1876 = vunpack.c.l.s8.bf16 %v840
        %v1877 = vunpack.c.h.s8.bf16 %v839
        %v1878 = vunpack.c.h.s8.bf16 %v840
        %v1879 = vunpack.c.l.s8.bf16 %v841
        %v1880 = vunpack.c.l.s8.bf16 %v842
        %v1881 = vunpack.c.h.s8.bf16 %v841
        %v1882 = vunpack.c.h.s8.bf16 %v842
        %v1883 = vunpack.c.l.s8.bf16 %v843
        %v1884 = vunpack.c.l.s8.bf16 %v844
        %v1885 = vunpack.c.h.s8.bf16 %v843
        %v1886 = vunpack.c.h.s8.bf16 %v844
        %v1887 = vunpack.c.l.s8.bf16 %v845
        %v1888 = vunpack.c.l.s8.bf16 %v846
        %v1889 = vunpack.c.h.s8.bf16 %v845
        %v1890 = vunpack.c.h.s8.bf16 %v846
        %v1891 = vunpack.c.l.s8.bf16 %v847
        %v1892 = vunpack.c.l.s8.bf16 %v848
        %v1893 = vunpack.c.h.s8.bf16 %v847
        %v1894 = vunpack.c.h.s8.bf16 %v848
        %v1895 = vunpack.c.l.s8.bf16 %v849
        %v1896 = vunpack.c.l.s8.bf16 %v850
        %v1897 = vunpack.c.h.s8.bf16 %v849
        %v1898 = vunpack.c.h.s8.bf16 %v850
        %v1899 = vunpack.c.l.s8.bf16 %v851
        %v1900 = vunpack.c.l.s8.bf16 %v852
        %v1901 = vunpack.c.h.s8.bf16 %v851
        %v1902 = vunpack.c.h.s8.bf16 %v852
        %v1903 = vunpack.c.l.s8.bf16 %v853
        %v1904 = vunpack.c.l.s8.bf16 %v854
        %v1905 = vunpack.c.h.s8.bf16 %v853
        %v1906 = vunpack.c.h.s8.bf16 %v854
        %v1907 = vunpack.c.l.s8.bf16 %v855
        %v1908 = vunpack.c.l.s8.bf16 %v856
        %v1909 = vunpack.c.h.s8.bf16 %v855
        %v1910 = vunpack.c.h.s8.bf16 %v856
        %v1911 = vunpack.c.l.s8.bf16 %v857
        %v1912 = vunpack.c.l.s8.bf16 %v858
        %v1913 = vunpack.c.h.s8.bf16 %v857
        %v1914 = vunpack.c.h.s8.bf16 %v858
        %v1915 = vunpack.c.l.s8.bf16 %v859
        %v1916 = vunpack.c.l.s8.bf16 %v860
        %v1917 = vunpack.c.h.s8.bf16 %v859
        %v1918 = vunpack.c.h.s8.bf16 %v860
        %v1919 = vunpack.c.l.s8.bf16 %v861
        %v1920 = vunpack.c.l.s8.bf16 %v862
        %v1921 = vunpack.c.h.s8.bf16 %v861
        %v1922 = vunpack.c.h.s8.bf16 %v862
        %v1923 = vunpack.c.l.s8.bf16 %v863
        %v1924 = vunpack.c.l.s8.bf16 %v864
        %v1925 = vunpack.c.h.s8.bf16 %v863
        %v1926 = vunpack.c.h.s8.bf16 %v864
        %v1927 = vunpack.c.l.s8.bf16 %v865
        %v1928 = vunpack.c.l.s8.bf16 %v866
        %v1929 = vunpack.c.h.s8.bf16 %v865
        %v1930 = vunpack.c.h.s8.bf16 %v866
        %v1931 = vunpack.c.l.s8.bf16 %v867
        %v1932 = vunpack.c.l.s8.bf16 %v868
        %v1933 = vunpack.c.h.s8.bf16 %v867
        %v1934 = vunpack.c.h.s8.bf16 %v868
        %v1935 = vunpack.c.l.s8.bf16 %v869
        %v1936 = vunpack.c.l.s8.bf16 %v870
        %v1937 = vunpack.c.h.s8.bf16 %v869
        %v1938 = vunpack.c.h.s8.bf16 %v870
        %v1939 = vunpack.c.l.s8.bf16 %v871
        %v1940 = vunpack.c.l.s8.bf16 %v872
        %v1941 = vunpack.c.h.s8.bf16 %v871
        %v1942 = vunpack.c.h.s8.bf16 %v872
        %v1943 = vunpack.c.l.s8.bf16 %v873
        %v1944 = vunpack.c.l.s8.bf16 %v874
        %v1945 = vunpack.c.h.s8.bf16 %v873
        %v1946 = vunpack.c.h.s8.bf16 %v874
        %v1947 = vunpack.c.l.s8.bf16 %v875
        %v1948 = vunpack.c.l.s8.bf16 %v876
        %v1949 = vunpack.c.h.s8.bf16 %v875
        %v1950 = vunpack.c.h.s8.bf16 %v876
        %v1951 = vunpack.c.l.s8.bf16 %v877
        %v1952 = vunpack.c.l.s8.bf16 %v878
        %v1953 = vunpack.c.h.s8.bf16 %v877
        %v1954 = vunpack.c.h.s8.bf16 %v878
        %v1955 = vunpack.c.l.s8.bf16 %v879
        %v1956 = vunpack.c.l.s8.bf16 %v880
        %v1957 = vunpack.c.h.s8.bf16 %v879
        %v1958 = vunpack.c.h.s8.bf16 %v880
        %v1959 = vunpack.c.l.s8.bf16 %v881
        %v1960 = vunpack.c.l.s8.bf16 %v882
        %v1961 = vunpack.c.h.s8.bf16 %v881
        %v1962 = vunpack.c.h.s8.bf16 %v882
        %v1963 = vunpack.c.l.s8.bf16 %v883
        %v1964 = vunpack.c.l.s8.bf16 %v884
        %v1965 = vunpack.c.h.s8.bf16 %v883
        %v1966 = vunpack.c.h.s8.bf16 %v884
        %v1967 = vunpack.c.l.s8.bf16 %v885
        %v1968 = vunpack.c.l.s8.bf16 %v886
        %v1969 = vunpack.c.h.s8.bf16 %v885
        %v1970 = vunpack.c.h.s8.bf16 %v886
        %v1971 = vunpack.c.l.s8.bf16 %v887
        %v1972 = vunpack.c.l.s8.bf16 %v888
        %v1973 = vunpack.c.h.s8.bf16 %v887
        %v1974 = vunpack.c.h.s8.bf16 %v888
        %v1975 = vunpack.c.l.s8.bf16 %v889
        %v1976 = vunpack.c.l.s8.bf16 %v890
        %v1977 = vunpack.c.h.s8.bf16 %v889
        %v1978 = vunpack.c.h.s8.bf16 %v890
        %v1979 = vunpack.c.l.s8.bf16 %v891
        %v1980 = vunpack.c.l.s8.bf16 %v892
        %v1981 = vunpack.c.h.s8.bf16 %v891
        %v1982 = vunpack.c.h.s8.bf16 %v892
        %v1983 = vunpack.c.l.s8.bf16 %v893
        %v1984 = vunpack.c.l.s8.bf16 %v894
        %v1985 = vunpack.c.h.s8.bf16 %v893
        %v1986 = vunpack.c.h.s8.bf16 %v894
        %v1987 = vunpack.c.l.s8.bf16 %v895
        %v1988 = vunpack.c.l.s8.bf16 %v896
        %v1989 = vunpack.c.h.s8.bf16 %v895
        %v1990 = vunpack.c.h.s8.bf16 %v896
        %v1991 = vunpack.c.l.s8.bf16 %v897
        %v1992 = vunpack.c.l.s8.bf16 %v898
        %v1993 = vunpack.c.h.s8.bf16 %v897
        %v1994 = vunpack.c.h.s8.bf16 %v898
        %v1995 = vunpack.c.l.s8.bf16 %v899
        %v1996 = vunpack.c.l.s8.bf16 %v900
        %v1997 = vunpack.c.h.s8.bf16 %v899
        %v1998 = vunpack.c.h.s8.bf16 %v900
        %v1999 = vunpack.c.l.s8.bf16 %v901
        %v2000 = vunpack.c.l.s8.bf16 %v902
        %v2001 = vunpack.c.h.s8.bf16 %v901
        %v2002 = vunpack.c.h.s8.bf16 %v902
        %v2003 = vunpack.c.l.s8.bf16 %v903
        %v2004 = vunpack.c.l.s8.bf16 %v904
        %v2005 = vunpack.c.h.s8.bf16 %v903
        %v2006 = vunpack.c.h.s8.bf16 %v904
        %v2007 = vunpack.c.l.s8.bf16 %v905
        %v2008 = vunpack.c.l.s8.bf16 %v906
        %v2009 = vunpack.c.h.s8.bf16 %v905
        %v2010 = vunpack.c.h.s8.bf16 %v906
        %v2011 = vunpack.c.l.s8.bf16 %v907
        %v2012 = vunpack.c.l.s8.bf16 %v908
        %v2013 = vunpack.c.h.s8.bf16 %v907
        %v2014 = vunpack.c.h.s8.bf16 %v908
        %v2015 = vunpack.c.l.s8.bf16 %v909
        %v2016 = vunpack.c.l.s8.bf16 %v910
        %v2017 = vunpack.c.h.s8.bf16 %v909
        %v2018 = vunpack.c.h.s8.bf16 %v910
        %v2019 = vunpack.c.l.s8.bf16 %v911
        %v2020 = vunpack.c.l.s8.bf16 %v912
        %v2021 = vunpack.c.h.s8.bf16 %v911
        %v2022 = vunpack.c.h.s8.bf16 %v912
        %v2023 = vunpack.c.l.s8.bf16 %v913
        %v2024 = vunpack.c.l.s8.bf16 %v914
        %v2025 = vunpack.c.h.s8.bf16 %v913
        %v2026 = vunpack.c.h.s8.bf16 %v914
        %v2027 = vunpack.c.l.s8.bf16 %v915
        %v2028 = vunpack.c.l.s8.bf16 %v916
        %v2029 = vunpack.c.h.s8.bf16 %v915
        %v2030 = vunpack.c.h.s8.bf16 %v916
        %v2031 = vunpack.c.l.s8.bf16 %v917
        %v2032 = vunpack.c.l.s8.bf16 %v918
        %v2033 = vunpack.c.h.s8.bf16 %v917
        %v2034 = vunpack.c.h.s8.bf16 %v918
        %v2035 = vunpack.c.l.s8.bf16 %v919
        %v2036 = vunpack.c.l.s8.bf16 %v920
        %v2037 = vunpack.c.h.s8.bf16 %v919
        %v2038 = vunpack.c.h.s8.bf16 %v920
        %v2039 = vunpack.c.l.s8.bf16 %v921
        %v2040 = vunpack.c.l.s8.bf16 %v922
        %v2041 = vunpack.c.h.s8.bf16 %v921
        %v2042 = vunpack.c.h.s8.bf16 %v922
        %v2043 = vunpack.c.l.s8.bf16 %v923
        %v2044 = vunpack.c.l.s8.bf16 %v924
        %v2045 = vunpack.c.h.s8.bf16 %v923
        %v2046 = vunpack.c.h.s8.bf16 %v924
        %v2047 = vunpack.c.l.s8.bf16 %v925
        %v2048 = vunpack.c.l.s8.bf16 %v926
        %v2049 = vunpack.c.h.s8.bf16 %v925
        %v2050 = vunpack.c.h.s8.bf16 %v926
        %v2051 = vunpack.c.l.s8.bf16 %v927
        %v2052 = vunpack.c.l.s8.bf16 %v928
        %v2053 = vunpack.c.h.s8.bf16 %v927
        %v2054 = vunpack.c.h.s8.bf16 %v928
        %v2055 = vunpack.c.l.s8.bf16 %v929
        %v2056 = vunpack.c.l.s8.bf16 %v930
        %v2057 = vunpack.c.h.s8.bf16 %v929
        %v2058 = vunpack.c.h.s8.bf16 %v930
        %v2059 = vunpack.c.l.s8.bf16 %v931
        %v2060 = vunpack.c.l.s8.bf16 %v932
        %v2061 = vunpack.c.h.s8.bf16 %v931
        %v2062 = vunpack.c.h.s8.bf16 %v932
        %v2063 = vunpack.c.l.s8.bf16 %v933
        %v2064 = vunpack.c.l.s8.bf16 %v934
        %v2065 = vunpack.c.h.s8.bf16 %v933
        %v2066 = vunpack.c.h.s8.bf16 %v934
        %v2067 = vunpack.c.l.s8.bf16 %v935
        %v2068 = vunpack.c.l.s8.bf16 %v936
        %v2069 = vunpack.c.h.s8.bf16 %v935
        %v2070 = vunpack.c.h.s8.bf16 %v936
        %v2071 = vunpack.c.l.s8.bf16 %v937
        %v2072 = vunpack.c.l.s8.bf16 %v938
        %v2073 = vunpack.c.h.s8.bf16 %v937
        %v2074 = vunpack.c.h.s8.bf16 %v938
        %v2075 = vunpack.c.l.s8.bf16 %v939
        %v2076 = vunpack.c.l.s8.bf16 %v940
        %v2077 = vunpack.c.h.s8.bf16 %v939
        %v2078 = vunpack.c.h.s8.bf16 %v940
        %v2079 = vunpack.c.l.s8.bf16 %v941
        %v2080 = vunpack.c.l.s8.bf16 %v942
        %v2081 = vunpack.c.h.s8.bf16 %v941
        %v2082 = vunpack.c.h.s8.bf16 %v942
        %v2083 = vunpack.c.l.s8.bf16 %v943
        %v2084 = vunpack.c.l.s8.bf16 %v944
        %v2085 = vunpack.c.h.s8.bf16 %v943
        %v2086 = vunpack.c.h.s8.bf16 %v944
        %v2087 = vunpack.c.l.s8.bf16 %v945
        %v2088 = vunpack.c.l.s8.bf16 %v946
        %v2089 = vunpack.c.h.s8.bf16 %v945
        %v2090 = vunpack.c.h.s8.bf16 %v946
        %v2091 = vunpack.c.l.s8.bf16 %v947
        %v2092 = vunpack.c.l.s8.bf16 %v948
        %v2093 = vunpack.c.h.s8.bf16 %v947
        %v2094 = vunpack.c.h.s8.bf16 %v948
        %v2095 = vunpack.c.l.s8.bf16 %v949
        %v2096 = vunpack.c.l.s8.bf16 %v950
        %v2097 = vunpack.c.h.s8.bf16 %v949
        %v2098 = vunpack.c.h.s8.bf16 %v950
        %v2099 = vunpack.c.l.s8.bf16 %v951
        %v2100 = vunpack.c.l.s8.bf16 %v952
        %v2101 = vunpack.c.h.s8.bf16 %v951
        %v2102 = vunpack.c.h.s8.bf16 %v952
        %v2103 = vunpack.c.l.s8.bf16 %v953
        %v2104 = vunpack.c.l.s8.bf16 %v954
        %v2105 = vunpack.c.h.s8.bf16 %v953
        %v2106 = vunpack.c.h.s8.bf16 %v954
        %v2107 = vunpack.c.l.s8.bf16 %v955
        %v2108 = vunpack.c.l.s8.bf16 %v956
        %v2109 = vunpack.c.h.s8.bf16 %v955
        %v2110 = vunpack.c.h.s8.bf16 %v956
        %v2111 = vunpack.c.l.s8.bf16 %v957
        %v2112 = vunpack.c.l.s8.bf16 %v958
        %v2113 = vunpack.c.h.s8.bf16 %v957
        %v2114 = vunpack.c.h.s8.bf16 %v958
        %v2115 = vunpack.c.l.s8.bf16 %v959
        %v2116 = vunpack.c.l.s8.bf16 %v960
        %v2117 = vunpack.c.h.s8.bf16 %v959
        %v2118 = vunpack.c.h.s8.bf16 %v960
        %v2119 = vunpack.c.l.s8.bf16 %v961
        %v2120 = vunpack.c.l.s8.bf16 %v962
        %v2121 = vunpack.c.h.s8.bf16 %v961
        %v2122 = vunpack.c.h.s8.bf16 %v962
        %v2123 = vunpack.c.l.s8.bf16 %v963
        %v2124 = vunpack.c.l.s8.bf16 %v964
        %v2125 = vunpack.c.h.s8.bf16 %v963
        %v2126 = vunpack.c.h.s8.bf16 %v964
        %v2127 = vunpack.c.l.s8.bf16 %v965
        %v2128 = vunpack.c.l.s8.bf16 %v966
        %v2129 = vunpack.c.h.s8.bf16 %v965
        %v2130 = vunpack.c.h.s8.bf16 %v966
        %v2131 = vunpack.c.l.s8.bf16 %v967
        %v2132 = vunpack.c.l.s8.bf16 %v968
        %v2133 = vunpack.c.h.s8.bf16 %v967
        %v2134 = vunpack.c.h.s8.bf16 %v968
        %v2135 = vunpack.c.l.s8.bf16 %v969
        %v2136 = vunpack.c.l.s8.bf16 %v970
        %v2137 = vunpack.c.h.s8.bf16 %v969
        %v2138 = vunpack.c.h.s8.bf16 %v970
        %v2139 = vunpack.c.l.s8.bf16 %v971
        %v2140 = vunpack.c.l.s8.bf16 %v972
        %v2141 = vunpack.c.h.s8.bf16 %v971
        %v2142 = vunpack.c.h.s8.bf16 %v972
        %v2143 = vunpack.c.l.s8.bf16 %v973
        %v2144 = vunpack.c.l.s8.bf16 %v974
        %v2145 = vunpack.c.h.s8.bf16 %v973
        %v2146 = vunpack.c.h.s8.bf16 %v974
        %v2147 = vunpack.c.l.s8.bf16 %v975
        %v2148 = vunpack.c.l.s8.bf16 %v976
        %v2149 = vunpack.c.h.s8.bf16 %v975
        %v2150 = vunpack.c.h.s8.bf16 %v976
        %v2151 = vunpack.c.l.s8.bf16 %v977
        %v2152 = vunpack.c.l.s8.bf16 %v978
        %v2153 = vunpack.c.h.s8.bf16 %v977
        %v2154 = vunpack.c.h.s8.bf16 %v978
        %v2155 = vunpack.c.l.s8.bf16 %v979
        %v2156 = vunpack.c.l.s8.bf16 %v980
        %v2157 = vunpack.c.h.s8.bf16 %v979
        %v2158 = vunpack.c.h.s8.bf16 %v980
        %v2159 = vunpack.c.l.s8.bf16 %v981
        %v2160 = vunpack.c.l.s8.bf16 %v982
        %v2161 = vunpack.c.h.s8.bf16 %v981
        %v2162 = vunpack.c.h.s8.bf16 %v982
        %v2163 = vunpack.c.l.s8.bf16 %v983
        %v2164 = vunpack.c.l.s8.bf16 %v984
        %v2165 = vunpack.c.h.s8.bf16 %v983
        %v2166 = vunpack.c.h.s8.bf16 %v984
        %v2167 = vunpack.c.l.s8.bf16 %v985
        %v2168 = vunpack.c.l.s8.bf16 %v986
        %v2169 = vunpack.c.h.s8.bf16 %v985
        %v2170 = vunpack.c.h.s8.bf16 %v986
        %v2171 = vunpack.c.l.s8.bf16 %v987
        %v2172 = vunpack.c.l.s8.bf16 %v988
        %v2173 = vunpack.c.h.s8.bf16 %v987
        %v2174 = vunpack.c.h.s8.bf16 %v988
        %v2175 = vunpack.c.l.s8.bf16 %v989
        %v2176 = vunpack.c.l.s8.bf16 %v990
        %v2177 = vunpack.c.h.s8.bf16 %v989
        %v2178 = vunpack.c.h.s8.bf16 %v990
        %v2179 = vunpack.c.l.s8.bf16 %v991
        %v2180 = vunpack.c.l.s8.bf16 %v992
        %v2181 = vunpack.c.h.s8.bf16 %v991
        %v2182 = vunpack.c.h.s8.bf16 %v992
        %v2183 = vunpack.c.l.s8.bf16 %v993
        %v2184 = vunpack.c.l.s8.bf16 %v994
        %v2185 = vunpack.c.h.s8.bf16 %v993
        %v2186 = vunpack.c.h.s8.bf16 %v994
        %v2187 = vunpack.c.l.s8.bf16 %v995
        %v2188 = vunpack.c.l.s8.bf16 %v996
        %v2189 = vunpack.c.h.s8.bf16 %v995
        %v2190 = vunpack.c.h.s8.bf16 %v996
        %v2191 = vunpack.c.l.s8.bf16 %v997
        %v2192 = vunpack.c.l.s8.bf16 %v998
        %v2193 = vunpack.c.h.s8.bf16 %v997
        %v2194 = vunpack.c.h.s8.bf16 %v998
        %v2195 = vunpack.c.l.s8.bf16 %v999
        %v2196 = vunpack.c.l.s8.bf16 %v1000
        %v2197 = vunpack.c.h.s8.bf16 %v999
        %v2198 = vunpack.c.h.s8.bf16 %v1000
        %v2199 = vunpack.c.l.s8.bf16 %v1001
        %v2200 = vunpack.c.l.s8.bf16 %v1002
        %v2201 = vunpack.c.h.s8.bf16 %v1001
        %v2202 = vunpack.c.h.s8.bf16 %v1002
        %v2203 = vunpack.c.l.s8.bf16 %v1003
        %v2204 = vunpack.c.l.s8.bf16 %v1004
        %v2205 = vunpack.c.h.s8.bf16 %v1003
        %v2206 = vunpack.c.h.s8.bf16 %v1004
        %v2207 = vunpack.c.l.s8.bf16 %v1005
        %v2208 = vunpack.c.l.s8.bf16 %v1006
        %v2209 = vunpack.c.h.s8.bf16 %v1005
        %v2210 = vunpack.c.h.s8.bf16 %v1006
        %v2211 = vunpack.c.l.s8.bf16 %v1007
        %v2212 = vunpack.c.l.s8.bf16 %v1008
        %v2213 = vunpack.c.h.s8.bf16 %v1007
        %v2214 = vunpack.c.h.s8.bf16 %v1008
        %v2215 = vunpack.c.l.s8.bf16 %v1009
        %v2216 = vunpack.c.l.s8.bf16 %v1010
        %v2217 = vunpack.c.h.s8.bf16 %v1009
        %v2218 = vunpack.c.h.s8.bf16 %v1010
        %v2219 = vunpack.c.l.s8.bf16 %v1011
        %v2220 = vunpack.c.l.s8.bf16 %v1012
        %v2221 = vunpack.c.h.s8.bf16 %v1011
        %v2222 = vunpack.c.h.s8.bf16 %v1012
        %v2223 = vunpack.c.l.s8.bf16 %v1013
        %v2224 = vunpack.c.l.s8.bf16 %v1014
        %v2225 = vunpack.c.h.s8.bf16 %v1013
        %v2226 = vunpack.c.h.s8.bf16 %v1014
        %v2227 = vunpack.c.l.s8.bf16 %v1015
        %v2228 = vunpack.c.l.s8.bf16 %v1016
        %v2229 = vunpack.c.h.s8.bf16 %v1015
        %v2230 = vunpack.c.h.s8.bf16 %v1016
        %v2231 = vunpack.c.l.s8.bf16 %v1017
        %v2232 = vunpack.c.l.s8.bf16 %v1018
        %v2233 = vunpack.c.h.s8.bf16 %v1017
        %v2234 = vunpack.c.h.s8.bf16 %v1018
        %v2235 = vunpack.c.l.s8.bf16 %v1019
        %v2236 = vunpack.c.l.s8.bf16 %v1020
        %v2237 = vunpack.c.h.s8.bf16 %v1019
        %v2238 = vunpack.c.h.s8.bf16 %v1020
        %v2239 = vunpack.c.l.s8.bf16 %v1021
        %v2240 = vunpack.c.l.s8.bf16 %v1022
        %v2241 = vunpack.c.h.s8.bf16 %v1021
        %v2242 = vunpack.c.h.s8.bf16 %v1022
        %v2243 = vunpack.c.l.s8.bf16 %v1023
        %v2244 = vunpack.c.l.s8.bf16 %v1024
        %v2245 = vunpack.c.h.s8.bf16 %v1023
        %v2246 = vunpack.c.h.s8.bf16 %v1024
        %v2247 = vunpack.c.l.s8.bf16 %v1025
        %v2248 = vunpack.c.l.s8.bf16 %v1026
        %v2249 = vunpack.c.h.s8.bf16 %v1025
        %v2250 = vunpack.c.h.s8.bf16 %v1026
        %v2251 = vunpack.c.l.s8.bf16 %v1027
        %v2252 = vunpack.c.l.s8.bf16 %v1028
        %v2253 = vunpack.c.h.s8.bf16 %v1027
        %v2254 = vunpack.c.h.s8.bf16 %v1028
        %v2255 = vunpack.c.l.s8.bf16 %v1029
        %v2256 = vunpack.c.l.s8.bf16 %v1030
        %v2257 = vunpack.c.h.s8.bf16 %v1029
        %v2258 = vunpack.c.h.s8.bf16 %v1030
        %v2259 = vunpack.c.l.s8.bf16 %v1031
        %v2260 = vunpack.c.l.s8.bf16 %v1032
        %v2261 = vunpack.c.h.s8.bf16 %v1031
        %v2262 = vunpack.c.h.s8.bf16 %v1032
        %v2263 = vunpack.c.l.s8.bf16 %v1033
        %v2264 = vunpack.c.l.s8.bf16 %v1034
        %v2265 = vunpack.c.h.s8.bf16 %v1033
        %v2266 = vunpack.c.h.s8.bf16 %v1034
        %v2267 = vunpack.c.l.s8.bf16 %v1035
        %v2268 = vunpack.c.l.s8.bf16 %v1036
        %v2269 = vunpack.c.h.s8.bf16 %v1035
        %v2270 = vunpack.c.h.s8.bf16 %v1036
        %v2271 = vunpack.c.l.s8.bf16 %v1037
        %v2272 = vunpack.c.l.s8.bf16 %v1038
        %v2273 = vunpack.c.h.s8.bf16 %v1037
        %v2274 = vunpack.c.h.s8.bf16 %v1038
        %v2275 = vunpack.c.l.s8.bf16 %v1039
        %v2276 = vunpack.c.l.s8.bf16 %v1040
        %v2277 = vunpack.c.h.s8.bf16 %v1039
        %v2278 = vunpack.c.h.s8.bf16 %v1040
        %v2279 = vunpack.c.l.s8.bf16 %v1041
        %v2280 = vunpack.c.l.s8.bf16 %v1042
        %v2281 = vunpack.c.h.s8.bf16 %v1041
        %v2282 = vunpack.c.h.s8.bf16 %v1042
        %v2283 = vunpack.c.l.s8.bf16 %v1043
        %v2284 = vunpack.c.l.s8.bf16 %v1044
        %v2285 = vunpack.c.h.s8.bf16 %v1043
        %v2286 = vunpack.c.h.s8.bf16 %v1044
        %v2287 = vunpack.c.l.s8.bf16 %v1045
        %v2288 = vunpack.c.l.s8.bf16 %v1046
        %v2289 = vunpack.c.h.s8.bf16 %v1045
        %v2290 = vunpack.c.h.s8.bf16 %v1046
        %v2291 = vunpack.c.l.s8.bf16 %v1047
        %v2292 = vunpack.c.l.s8.bf16 %v1048
        %v2293 = vunpack.c.h.s8.bf16 %v1047
        %v2294 = vunpack.c.h.s8.bf16 %v1048
        %v2295 = vunpack.c.l.s8.bf16 %v1049
        %v2296 = vunpack.c.l.s8.bf16 %v1050
        %v2297 = vunpack.c.h.s8.bf16 %v1049
        %v2298 = vunpack.c.h.s8.bf16 %v1050
        %v2299 = vunpack.c.l.s8.bf16 %v1051
        %v2300 = vunpack.c.l.s8.bf16 %v1052
        %v2301 = vunpack.c.h.s8.bf16 %v1051
        %v2302 = vunpack.c.h.s8.bf16 %v1052
        %v2303 = vunpack.c.l.s8.bf16 %v1053
        %v2304 = vunpack.c.l.s8.bf16 %v1054
        %v2305 = vunpack.c.h.s8.bf16 %v1053
        %v2306 = vunpack.c.h.s8.bf16 %v1054
        %v2307 = vunpack.c.l.s8.bf16 %v1055
        %v2308 = vunpack.c.l.s8.bf16 %v1056
        %v2309 = vunpack.c.h.s8.bf16 %v1055
        %v2310 = vunpack.c.h.s8.bf16 %v1056
        %v2311 = vunpack.c.l.s8.bf16 %v1057
        %v2312 = vunpack.c.l.s8.bf16 %v1058
        %v2313 = vunpack.c.h.s8.bf16 %v1057
        %v2314 = vunpack.c.h.s8.bf16 %v1058
        %v2315 = vunpack.c.l.s8.bf16 %v1059
        %v2316 = vunpack.c.l.s8.bf16 %v1060
        %v2317 = vunpack.c.h.s8.bf16 %v1059
        %v2318 = vunpack.c.h.s8.bf16 %v1060
        %v2319 = vunpack.c.l.s8.bf16 %v1061
        %v2320 = vunpack.c.l.s8.bf16 %v1062
        %v2321 = vunpack.c.h.s8.bf16 %v1061
        %v2322 = vunpack.c.h.s8.bf16 %v1062
        %v2323 = vunpack.c.l.s8.bf16 %v1063
        %v2324 = vunpack.c.l.s8.bf16 %v1064
        %v2325 = vunpack.c.h.s8.bf16 %v1063
        %v2326 = vunpack.c.h.s8.bf16 %v1064
        %v2327 = vunpack.c.l.s8.bf16 %v1065
        %v2328 = vunpack.c.l.s8.bf16 %v1066
        %v2329 = vunpack.c.h.s8.bf16 %v1065
        %v2330 = vunpack.c.h.s8.bf16 %v1066
        %v2331 = vunpack.c.l.s8.bf16 %v1067
        %v2332 = vunpack.c.l.s8.bf16 %v1068
        %v2333 = vunpack.c.h.s8.bf16 %v1067
        %v2334 = vunpack.c.h.s8.bf16 %v1068
        %v2335 = vunpack.c.l.s8.bf16 %v1069
        %v2336 = vunpack.c.l.s8.bf16 %v1070
        %v2337 = vunpack.c.h.s8.bf16 %v1069
        %v2338 = vunpack.c.h.s8.bf16 %v1070
        %v2339 = vunpack.c.l.s8.bf16 %v1071
        %v2340 = vunpack.c.l.s8.bf16 %v1072
        %v2341 = vunpack.c.h.s8.bf16 %v1071
        %v2342 = vunpack.c.h.s8.bf16 %v1072
        %v2343 = vunpack.c.l.s8.bf16 %v1073
        %v2344 = vunpack.c.l.s8.bf16 %v1074
        %v2345 = vunpack.c.h.s8.bf16 %v1073
        %v2346 = vunpack.c.h.s8.bf16 %v1074
        %v2347 = vunpack.c.l.s8.bf16 %v1075
        %v2348 = vunpack.c.l.s8.bf16 %v1076
        %v2349 = vunpack.c.h.s8.bf16 %v1075
        %v2350 = vunpack.c.h.s8.bf16 %v1076
        %v2351 = vunpack.c.l.s8.bf16 %v1077
        %v2352 = vunpack.c.l.s8.bf16 %v1078
        %v2353 = vunpack.c.h.s8.bf16 %v1077
        %v2354 = vunpack.c.h.s8.bf16 %v1078
        %v2355 = vunpack.c.l.s8.bf16 %v1079
        %v2356 = vunpack.c.l.s8.bf16 %v1080
        %v2357 = vunpack.c.h.s8.bf16 %v1079
        %v2358 = vunpack.c.h.s8.bf16 %v1080
        %v2359 = vunpack.c.l.s8.bf16 %v1081
        %v2360 = vunpack.c.l.s8.bf16 %v1082
        %v2361 = vunpack.c.h.s8.bf16 %v1081
        %v2362 = vunpack.c.h.s8.bf16 %v1082
        %v2363 = vunpack.c.l.s8.bf16 %v1083
        %v2364 = vunpack.c.l.s8.bf16 %v1084
        %v2365 = vunpack.c.h.s8.bf16 %v1083
        %v2366 = vunpack.c.h.s8.bf16 %v1084
        %v2367 = vunpack.c.l.s8.bf16 %v1085
        %v2368 = vunpack.c.l.s8.bf16 %v1086
        %v2369 = vunpack.c.h.s8.bf16 %v1085
        %v2370 = vunpack.c.h.s8.bf16 %v1086
        %v2371 = vunpack.c.l.s8.bf16 %v1087
        %v2372 = vunpack.c.l.s8.bf16 %v1088
        %v2373 = vunpack.c.h.s8.bf16 %v1087
        %v2374 = vunpack.c.h.s8.bf16 %v1088
        %v2375 = vunpack.c.l.s8.bf16 %v1089
        %v2376 = vunpack.c.l.s8.bf16 %v1090
        %v2377 = vunpack.c.h.s8.bf16 %v1089
        %v2378 = vunpack.c.h.s8.bf16 %v1090
        %v2379 = vunpack.c.l.s8.bf16 %v1091
        %v2380 = vunpack.c.l.s8.bf16 %v1092
        %v2381 = vunpack.c.h.s8.bf16 %v1091
        %v2382 = vunpack.c.h.s8.bf16 %v1092
        %v2383 = vunpack.c.l.s8.bf16 %v1093
        %v2384 = vunpack.c.l.s8.bf16 %v1094
        %v2385 = vunpack.c.h.s8.bf16 %v1093
        %v2386 = vunpack.c.h.s8.bf16 %v1094
        %v2387 = vunpack.c.l.s8.bf16 %v1095
        %v2388 = vunpack.c.l.s8.bf16 %v1096
        %v2389 = vunpack.c.h.s8.bf16 %v1095
        %v2390 = vunpack.c.h.s8.bf16 %v1096
        %v2391 = vunpack.c.l.s8.bf16 %v1097
        %v2392 = vunpack.c.l.s8.bf16 %v1098
        %v2393 = vunpack.c.h.s8.bf16 %v1097
        %v2394 = vunpack.c.h.s8.bf16 %v1098
        %v2395 = vunpack.c.l.s8.bf16 %v1099
        %v2396 = vunpack.c.l.s8.bf16 %v1100
        %v2397 = vunpack.c.h.s8.bf16 %v1099
        %v2398 = vunpack.c.h.s8.bf16 %v1100
        %v2399 = vunpack.c.l.s8.bf16 %v1101
        %v2400 = vunpack.c.l.s8.bf16 %v1102
        %v2401 = vunpack.c.h.s8.bf16 %v1101
        %v2402 = vunpack.c.h.s8.bf16 %v1102
        %v2403 = vunpack.c.l.s8.bf16 %v1103
        %v2404 = vunpack.c.l.s8.bf16 %v1104
        %v2405 = vunpack.c.h.s8.bf16 %v1103
        %v2406 = vunpack.c.h.s8.bf16 %v1104
        %v2407 = vunpack.c.l.s8.bf16 %v1105
        %v2408 = vunpack.c.l.s8.bf16 %v1106
        %v2409 = vunpack.c.h.s8.bf16 %v1105
        %v2410 = vunpack.c.h.s8.bf16 %v1106
        %v2411 = vunpack.c.l.s8.bf16 %v1107
        %v2412 = vunpack.c.l.s8.bf16 %v1108
        %v2413 = vunpack.c.h.s8.bf16 %v1107
        %v2414 = vunpack.c.h.s8.bf16 %v1108
        %v2415 = vunpack.c.l.s8.bf16 %v1109
        %v2416 = vunpack.c.l.s8.bf16 %v1110
        %v2417 = vunpack.c.h.s8.bf16 %v1109
        %v2418 = vunpack.c.h.s8.bf16 %v1110
        %v2419 = vunpack.c.l.s8.bf16 %v1111
        %v2420 = vunpack.c.l.s8.bf16 %v1112
        %v2421 = vunpack.c.h.s8.bf16 %v1111
        %v2422 = vunpack.c.h.s8.bf16 %v1112
        %v2423 = vunpack.c.l.s8.bf16 %v1113
        %v2424 = vunpack.c.l.s8.bf16 %v1114
        %v2425 = vunpack.c.h.s8.bf16 %v1113
        %v2426 = vunpack.c.h.s8.bf16 %v1114
        %v2427 = vunpack.c.l.s8.bf16 %v1115
        %v2428 = vunpack.c.l.s8.bf16 %v1116
        %v2429 = vunpack.c.h.s8.bf16 %v1115
        %v2430 = vunpack.c.h.s8.bf16 %v1116
        %v2431 = vunpack.c.l.s8.bf16 %v1117
        %v2432 = vunpack.c.l.s8.bf16 %v1118
        %v2433 = vunpack.c.h.s8.bf16 %v1117
        %v2434 = vunpack.c.h.s8.bf16 %v1118
        %v2435 = vunpack.c.l.s8.bf16 %v1119
        %v2436 = vunpack.c.l.s8.bf16 %v1120
        %v2437 = vunpack.c.h.s8.bf16 %v1119
        %v2438 = vunpack.c.h.s8.bf16 %v1120
        %v2439 = vunpack.c.l.s8.bf16 %v1121
        %v2440 = vunpack.c.l.s8.bf16 %v1122
        %v2441 = vunpack.c.h.s8.bf16 %v1121
        %v2442 = vunpack.c.h.s8.bf16 %v1122
        %v2443 = vunpack.c.l.s8.bf16 %v1123
        %v2444 = vunpack.c.l.s8.bf16 %v1124
        %v2445 = vunpack.c.h.s8.bf16 %v1123
        %v2446 = vunpack.c.h.s8.bf16 %v1124
        %v2447 = vunpack.c.l.s8.bf16 %v1125
        %v2448 = vunpack.c.l.s8.bf16 %v1126
        %v2449 = vunpack.c.h.s8.bf16 %v1125
        %v2450 = vunpack.c.h.s8.bf16 %v1126
        %v2451 = vunpack.c.l.s8.bf16 %v1127
        %v2452 = vunpack.c.l.s8.bf16 %v1128
        %v2453 = vunpack.c.h.s8.bf16 %v1127
        %v2454 = vunpack.c.h.s8.bf16 %v1128
        %v2455 = vunpack.c.l.s8.bf16 %v1129
        %v2456 = vunpack.c.l.s8.bf16 %v1130
        %v2457 = vunpack.c.h.s8.bf16 %v1129
        %v2458 = vunpack.c.h.s8.bf16 %v1130
        %v2459 = vunpack.c.l.s8.bf16 %v1131
        %v2460 = vunpack.c.l.s8.bf16 %v1132
        %v2461 = vunpack.c.h.s8.bf16 %v1131
        %v2462 = vunpack.c.h.s8.bf16 %v1132
        %v2463 = vunpack.c.l.s8.bf16 %v1133
        %v2464 = vunpack.c.l.s8.bf16 %v1134
        %v2465 = vunpack.c.h.s8.bf16 %v1133
        %v2466 = vunpack.c.h.s8.bf16 %v1134
        %v2467 = vunpack.c.l.s8.bf16 %v1135
        %v2468 = vunpack.c.l.s8.bf16 %v1136
        %v2469 = vunpack.c.h.s8.bf16 %v1135
        %v2470 = vunpack.c.h.s8.bf16 %v1136
        %v2471 = vunpack.c.l.s8.bf16 %v1137
        %v2472 = vunpack.c.l.s8.bf16 %v1138
        %v2473 = vunpack.c.h.s8.bf16 %v1137
        %v2474 = vunpack.c.h.s8.bf16 %v1138
        %v2475 = vunpack.c.l.s8.bf16 %v1139
        %v2476 = vunpack.c.l.s8.bf16 %v1140
        %v2477 = vunpack.c.h.s8.bf16 %v1139
        %v2478 = vunpack.c.h.s8.bf16 %v1140
        %v2479 = vunpack.c.l.s8.bf16 %v1141
        %v2480 = vunpack.c.l.s8.bf16 %v1142
        %v2481 = vunpack.c.h.s8.bf16 %v1141
        %v2482 = vunpack.c.h.s8.bf16 %v1142
        %v2483 = vunpack.c.l.s8.bf16 %v1143
        %v2484 = vunpack.c.l.s8.bf16 %v1144
        %v2485 = vunpack.c.h.s8.bf16 %v1143
        %v2486 = vunpack.c.h.s8.bf16 %v1144
        %v2487 = vunpack.c.l.s8.bf16 %v1145
        %v2488 = vunpack.c.l.s8.bf16 %v1146
        %v2489 = vunpack.c.h.s8.bf16 %v1145
        %v2490 = vunpack.c.h.s8.bf16 %v1146
        %v2575 = vunpack.c.l.b16 %v391
        %v2576 = vunpack.c.h.b16 %v391
        %v2577 = vunpack.c.l.b16 %v392
        %v2578 = vunpack.c.h.b16 %v392
        %v2579 = vunpack.c.l.b16 %v393
        %v2580 = vunpack.c.h.b16 %v393
        %v2581 = vunpack.c.l.b16 %v394
        %v2582 = vunpack.c.h.b16 %v394
        %v2583 = vunpack.c.l.b16 %v395
        %v2584 = vunpack.c.h.b16 %v395
        %v2585 = vunpack.c.l.b16 %v396
        %v2586 = vunpack.c.h.b16 %v396
        %v2587 = vunpack.c.l.b16 %v397
        %v2588 = vunpack.c.h.b16 %v397
        %v2589 = vunpack.c.l.b16 %v398
        %v2590 = vunpack.c.h.b16 %v398
        %v2591 = vunpack.c.l.b16 %v399
        %v2592 = vunpack.c.h.b16 %v399
        %v2593 = vunpack.c.l.b16 %v400
        %v2594 = vunpack.c.h.b16 %v400
        %v2595 = vunpack.c.l.b16 %v401
        %v2596 = vunpack.c.h.b16 %v401
        %v2597 = vunpack.c.l.b16 %v402
        %v2598 = vunpack.c.h.b16 %v402
        %v2599 = vunpack.c.l.b16 %v403
        %v2600 = vunpack.c.h.b16 %v403
        %v2601 = vunpack.c.l.b16 %v404
        %v2602 = vunpack.c.h.b16 %v404
        %v2603 = vunpack.c.l.b16 %v405
        %v2604 = vunpack.c.h.b16 %v405
        %v2605 = vunpack.c.l.b16 %v406
        %v2606 = vunpack.c.h.b16 %v406
        %v2607 = vunpack.c.l.b16 %v407
        %v2608 = vunpack.c.h.b16 %v407
        %v2609 = vunpack.c.l.b16 %v408
        %v2610 = vunpack.c.h.b16 %v408
        %v2611 = vunpack.c.l.b16 %v409
        %v2612 = vunpack.c.h.b16 %v409
        %v2613 = vunpack.c.l.b16 %v410
        %v2614 = vunpack.c.h.b16 %v410
        %v2615 = vunpack.c.l.b16 %v411
        %v2616 = vunpack.c.h.b16 %v411
        %v2617 = vunpack.c.l.b16 %v412
        %v2618 = vunpack.c.h.b16 %v412
        %v2619 = vunpack.c.l.b16 %v413
        %v2620 = vunpack.c.h.b16 %v413
        %v2621 = vunpack.c.l.b16 %v414
        %v2622 = vunpack.c.h.b16 %v414
        %v2623 = vunpack.c.l.b16 %v415
        %v2624 = vunpack.c.h.b16 %v415
        %v2625 = vunpack.c.l.b16 %v416
        %v2626 = vunpack.c.h.b16 %v416
        %v2627 = vunpack.c.l.b16 %v417
        %v2628 = vunpack.c.h.b16 %v417
        %v2629 = vunpack.c.l.b16 %v418
        %v2630 = vunpack.c.h.b16 %v418
        %v2631 = vunpack.c.l.b16 %v419
        %v2632 = vunpack.c.h.b16 %v419
        %v2633 = vunpack.c.l.b16 %v420
        %v2634 = vunpack.c.h.b16 %v420
        %v2635 = vunpack.c.l.b16 %v421
        %v2636 = vunpack.c.h.b16 %v421
        %v2637 = vunpack.c.l.b16 %v422
        %v2638 = vunpack.c.h.b16 %v422
        %v2639 = vunpack.c.l.b16 %v423
        %v2640 = vunpack.c.h.b16 %v423
        %v2641 = vunpack.c.l.b16 %v424
        %v2642 = vunpack.c.h.b16 %v424
        %v2643 = vunpack.c.l.b16 %v425
        %v2644 = vunpack.c.h.b16 %v425
        %v2645 = vunpack.c.l.b16 %v426
        %v2646 = vunpack.c.h.b16 %v426
        %v2647 = vunpack.c.l.b16 %v427
        %v2648 = vunpack.c.h.b16 %v427
        %v2649 = vunpack.c.l.b16 %v428
        %v2650 = vunpack.c.h.b16 %v428
        %v2651 = vunpack.c.l.b16 %v429
        %v2652 = vunpack.c.h.b16 %v429
        %v2653 = vunpack.c.l.b16 %v430
        %v2654 = vunpack.c.h.b16 %v430
        %v2655 = vunpack.c.l.b16 %v431
        %v2656 = vunpack.c.h.b16 %v431
        %v2657 = vunpack.c.l.b16 %v432
        %v2658 = vunpack.c.h.b16 %v432
        %v2659 = vunpack.c.l.b16 %v433
        %v2660 = vunpack.c.h.b16 %v433
        %v2661 = vunpack.c.l.b16 %v434
        %v2662 = vunpack.c.h.b16 %v434
        %v2663 = vunpack.c.l.b16 %v435
        %v2664 = vunpack.c.h.b16 %v435
        %v2665 = vunpack.c.l.b16 %v436
        %v2666 = vunpack.c.h.b16 %v436
        %v2667 = vunpack.c.l.b16 %v437
        %v2668 = vunpack.c.h.b16 %v437
        %v2669 = vunpack.c.l.b16 %v438
        %v2670 = vunpack.c.h.b16 %v438
        %v2671 = vunpack.c.l.b16 %v439
        %v2672 = vunpack.c.h.b16 %v439
        %v2673 = vunpack.c.l.b16 %v440
        %v2674 = vunpack.c.h.b16 %v440
        %v2675 = vunpack.c.l.b16 %v441
        %v2676 = vunpack.c.h.b16 %v441
        %v2677 = vunpack.c.l.b16 %v442
        %v2678 = vunpack.c.h.b16 %v442
        %v2679 = vunpack.c.l.b16 %v443
        %v2680 = vunpack.c.h.b16 %v443
        %v2681 = vunpack.c.l.b16 %v444
        %v2682 = vunpack.c.h.b16 %v444
        %v2683 = vunpack.c.l.b16 %v445
        %v2684 = vunpack.c.h.b16 %v445
        %v2685 = vunpack.c.l.b16 %v446
        %v2686 = vunpack.c.h.b16 %v446
        %v2687 = vunpack.c.l.b16 %v447
        %v2688 = vunpack.c.h.b16 %v447
        %v2689 = vunpack.c.l.b16 %v448
        %v2690 = vunpack.c.h.b16 %v448
        %v2691 = vunpack.c.l.b16 %v449
        %v2692 = vunpack.c.h.b16 %v449
        %v2693 = vunpack.c.l.b16 %v450
        %v2694 = vunpack.c.h.b16 %v450
        %v2695 = vunpack.c.l.b16 %v451
        %v2696 = vunpack.c.h.b16 %v451
        %v2697 = vunpack.c.l.b16 %v452
        %v2698 = vunpack.c.h.b16 %v452
        %v2699 = vunpack.c.l.b16 %v453
        %v2700 = vunpack.c.h.b16 %v453
        %v2701 = vunpack.c.l.b16 %v454
        %v2702 = vunpack.c.h.b16 %v454
        %v2703 = vunpack.c.l.b16 %v455
        %v2704 = vunpack.c.h.b16 %v455
        %v2705 = vunpack.c.l.b16 %v456
        %v2706 = vunpack.c.h.b16 %v456
        %v2707 = vunpack.c.l.b16 %v457
        %v2708 = vunpack.c.h.b16 %v457
        %v2709 = vunpack.c.l.b16 %v458
        %v2710 = vunpack.c.h.b16 %v458
        %v2711 = vunpack.c.l.b16 %v459
        %v2712 = vunpack.c.h.b16 %v459
        %v2713 = vunpack.c.l.b16 %v460
        %v2714 = vunpack.c.h.b16 %v460
        %v2715 = vunpack.c.l.b16 %v461
        %v2716 = vunpack.c.h.b16 %v461
        %v2717 = vunpack.c.l.b16 %v462
        %v2718 = vunpack.c.h.b16 %v462
        %v2719 = vunpack.c.l.b16 %v463
        %v2720 = vunpack.c.h.b16 %v463
        %v2721 = vunpack.c.l.b16 %v464
        %v2722 = vunpack.c.h.b16 %v464
        %v2723 = vunpack.c.l.b16 %v465
        %v2724 = vunpack.c.h.b16 %v465
        %v2725 = vunpack.c.l.b16 %v466
        %v2726 = vunpack.c.h.b16 %v466
        %v2727 = vunpack.c.l.b16 %v467
        %v2728 = vunpack.c.h.b16 %v467
        %v2729 = vunpack.c.l.b16 %v468
        %v2730 = vunpack.c.h.b16 %v468
        %v2731 = vunpack.c.l.b16 %v469
        %v2732 = vunpack.c.h.b16 %v469
        %v2733 = vunpack.c.l.b16 %v470
        %v2734 = vunpack.c.h.b16 %v470
        %v2735 = vunpack.c.l.b16 %v471
        %v2736 = vunpack.c.h.b16 %v471
        %v2737 = vunpack.c.l.b16 %v472
        %v2738 = vunpack.c.h.b16 %v472
        %v2739 = vunpack.c.l.b16 %v473
        %v2740 = vunpack.c.h.b16 %v473
        %v2741 = vunpack.c.l.b16 %v474
        %v2742 = vunpack.c.h.b16 %v474
        %v2743 = vpack.c.b16 %v2659, %v2575
        %v2744 = vpack.c.b16 %v2660, %v2576
        %v2745 = vpack.c.b16 %v2661, %v2577
        %v2746 = vpack.c.b16 %v2662, %v2578
        %v2747 = vpack.c.b16 %v2663, %v2579
        %v2748 = vpack.c.b16 %v2664, %v2580
        %v2749 = vpack.c.b16 %v2665, %v2581
        %v2750 = vpack.c.b16 %v2666, %v2582
        %v2751 = vpack.c.b16 %v2667, %v2583
        %v2752 = vpack.c.b16 %v2668, %v2584
        %v2753 = vpack.c.b16 %v2669, %v2585
        %v2754 = vpack.c.b16 %v2670, %v2586
        %v2755 = vpack.c.b16 %v2671, %v2587
        %v2756 = vpack.c.b16 %v2672, %v2588
        %v2757 = vpack.c.b16 %v2673, %v2589
        %v2758 = vpack.c.b16 %v2674, %v2590
        %v2759 = vpack.c.b16 %v2675, %v2591
        %v2760 = vpack.c.b16 %v2676, %v2592
        %v2761 = vpack.c.b16 %v2677, %v2593
        %v2762 = vpack.c.b16 %v2678, %v2594
        %v2763 = vpack.c.b16 %v2679, %v2595
        %v2764 = vpack.c.b16 %v2680, %v2596
        %v2765 = vpack.c.b16 %v2681, %v2597
        %v2766 = vpack.c.b16 %v2682, %v2598
        %v2767 = vpack.c.b16 %v2683, %v2599
        %v2768 = vpack.c.b16 %v2684, %v2600
        %v2769 = vpack.c.b16 %v2685, %v2601
        %v2770 = vpack.c.b16 %v2686, %v2602
        %v2771 = vpack.c.b16 %v2687, %v2603
        %v2772 = vpack.c.b16 %v2688, %v2604
        %v2773 = vpack.c.b16 %v2689, %v2605
        %v2774 = vpack.c.b16 %v2690, %v2606
        %v2775 = vpack.c.b16 %v2691, %v2607
        %v2776 = vpack.c.b16 %v2692, %v2608
        %v2777 = vpack.c.b16 %v2693, %v2609
        %v2778 = vpack.c.b16 %v2694, %v2610
        %v2779 = vpack.c.b16 %v2695, %v2611
        %v2780 = vpack.c.b16 %v2696, %v2612
        %v2781 = vpack.c.b16 %v2697, %v2613
        %v2782 = vpack.c.b16 %v2698, %v2614
        %v2783 = vpack.c.b16 %v2699, %v2615
        %v2784 = vpack.c.b16 %v2700, %v2616
        %v2785 = vpack.c.b16 %v2701, %v2617
        %v2786 = vpack.c.b16 %v2702, %v2618
        %v2787 = vpack.c.b16 %v2703, %v2619
        %v2788 = vpack.c.b16 %v2704, %v2620
        %v2789 = vpack.c.b16 %v2705, %v2621
        %v2790 = vpack.c.b16 %v2706, %v2622
        %v2791 = vpack.c.b16 %v2707, %v2623
        %v2792 = vpack.c.b16 %v2708, %v2624
        %v2793 = vpack.c.b16 %v2709, %v2625
        %v2794 = vpack.c.b16 %v2710, %v2626
        %v2795 = vpack.c.b16 %v2711, %v2627
        %v2796 = vpack.c.b16 %v2712, %v2628
        %v2797 = vpack.c.b16 %v2713, %v2629
        %v2798 = vpack.c.b16 %v2714, %v2630
        %v2799 = vpack.c.b16 %v2715, %v2631
        %v2800 = vpack.c.b16 %v2716, %v2632
        %v2801 = vpack.c.b16 %v2717, %v2633
        %v2802 = vpack.c.b16 %v2718, %v2634
        %v2803 = vpack.c.b16 %v2719, %v2635
        %v2804 = vpack.c.b16 %v2720, %v2636
        %v2805 = vpack.c.b16 %v2721, %v2637
        %v2806 = vpack.c.b16 %v2722, %v2638
        %v2807 = vpack.c.b16 %v2723, %v2639
        %v2808 = vpack.c.b16 %v2724, %v2640
        %v2809 = vpack.c.b16 %v2725, %v2641
        %v2810 = vpack.c.b16 %v2726, %v2642
        %v2811 = vpack.c.b16 %v2727, %v2643
        %v2812 = vpack.c.b16 %v2728, %v2644
        %v2813 = vpack.c.b16 %v2729, %v2645
        %v2814 = vpack.c.b16 %v2730, %v2646
        %v2815 = vpack.c.b16 %v2731, %v2647
        %v2816 = vpack.c.b16 %v2732, %v2648
        %v2817 = vpack.c.b16 %v2733, %v2649
        %v2818 = vpack.c.b16 %v2734, %v2650
        %v2819 = vpack.c.b16 %v2735, %v2651
        %v2820 = vpack.c.b16 %v2736, %v2652
        %v2821 = vpack.c.b16 %v2737, %v2653
        %v2822 = vpack.c.b16 %v2738, %v2654
        %v2823 = vpack.c.b16 %v2739, %v2655
        %v2824 = vpack.c.b16 %v2740, %v2656
        %v2825 = vpack.c.b16 %v2741, %v2657
        %v2826 = vpack.c.b16 %v2742, %v2658
        %2911 = vmatprep.subr.bf16.mxu0 %v1148
        %2912 = vmatpush1.bf16.msra.mxu0 %v1147
        %2913 = vmatprep.subr.bf16.mxu0 %v1150
        %2914 = vmatpush1.bf16.msra.mxu0 %v1149
        %2915 = vmatprep.subr.bf16.mxu0 %v1152
        %2916 = vmatpush1.bf16.msra.mxu0 %v1151
        %2917 = vmatprep.subr.bf16.mxu0 %v1154
        %2918 = vmatpush1.bf16.msra.mxu0 %v1153
        %2919 = vmatprep.subr.bf16.mxu0 %v1156
        %2920 = vmatpush1.bf16.msra.mxu0 %v1155
        %2921 = vmatprep.subr.bf16.mxu0 %v1158
        %2922 = vmatpush1.bf16.msra.mxu0 %v1157
        %2923 = vmatprep.subr.bf16.mxu0 %v1160
        %2924 = vmatpush1.bf16.msra.mxu0 %v1159
        %2925 = vmatprep.subr.bf16.mxu0 %v1162
        %2926 = vmatpush1.bf16.msra.mxu0 %v1161
        %2927 = vmatprep.subr.bf16.mxu0 %v1164
        %2928 = vmatpush1.bf16.msra.mxu0 %v1163
        %2929 = vmatprep.subr.bf16.mxu0 %v1166
        %2930 = vmatpush1.bf16.msra.mxu0 %v1165
        %2931 = vmatprep.subr.bf16.mxu0 %v1168
        %2932 = vmatpush1.bf16.msra.mxu0 %v1167
        %2933 = vmatprep.subr.bf16.mxu0 %v1170
        %2934 = vmatpush1.bf16.msra.mxu0 %v1169
        %2935 = vmatprep.subr.bf16.mxu0 %v1172
        %2936 = vmatpush1.bf16.msra.mxu0 %v1171
        %2937 = vmatprep.subr.bf16.mxu0 %v1174
        %2938 = vmatpush1.bf16.msra.mxu0 %v1173
        %2939 = vmatprep.subr.bf16.mxu0 %v1176
        %2940 = vmatpush1.bf16.msra.mxu0 %v1175
        %2941 = vmatprep.subr.bf16.mxu0 %v1178
        %2942 = vmatpush1.bf16.msra.mxu0 %v1177
        %2943 = vmatprep.mubr.bf16.mxu0 %v2744
        %2944 = vmatmul.mubr.bf16.gmra.mrb[0].mxu0 %v2743
        %v2945 = vpop.f32.mrb[0].mxu0
        %v2946 = vadd.f32 0.0, %v2945
        %v2947 = vpop.f32.mrb[0].mxu0
        %v2948 = vadd.f32 0.0, %v2947
        %v2949 = vpop.f32.mrb[0].mxu0
        %v2950 = vadd.f32 0.0, %v2949
        %v2951 = vpop.f32.mrb[0].mxu0
        %v2952 = vadd.f32 0.0, %v2951
        %2953 = vdwg.mxu0
        %2954 = vmatprep.subr.bf16.mxu0 %v1180
        %2955 = vmatpush1.bf16.msra.mxu0 %v1179
        %2956 = vmatprep.subr.bf16.mxu0 %v1182
        %2957 = vmatpush1.bf16.msra.mxu0 %v1181
        %2958 = vmatprep.subr.bf16.mxu0 %v1184
        %2959 = vmatpush1.bf16.msra.mxu0 %v1183
        %2960 = vmatprep.subr.bf16.mxu0 %v1186
        %2961 = vmatpush1.bf16.msra.mxu0 %v1185
        %2962 = vmatprep.subr.bf16.mxu0 %v1188
        %2963 = vmatpush1.bf16.msra.mxu0 %v1187
        %2964 = vmatprep.subr.bf16.mxu0 %v1190
        %2965 = vmatpush1.bf16.msra.mxu0 %v1189
        %2966 = vmatprep.subr.bf16.mxu0 %v1192
        %2967 = vmatpush1.bf16.msra.mxu0 %v1191
        %2968 = vmatprep.subr.bf16.mxu0 %v1194
        %2969 = vmatpush1.bf16.msra.mxu0 %v1193
        %2970 = vmatprep.subr.bf16.mxu0 %v1196
        %2971 = vmatpush1.bf16.msra.mxu0 %v1195
        %2972 = vmatprep.subr.bf16.mxu0 %v1198
        %2973 = vmatpush1.bf16.msra.mxu0 %v1197
        %2974 = vmatprep.subr.bf16.mxu0 %v1200
        %2975 = vmatpush1.bf16.msra.mxu0 %v1199
        %2976 = vmatprep.subr.bf16.mxu0 %v1202
        %2977 = vmatpush1.bf16.msra.mxu0 %v1201
        %2978 = vmatprep.subr.bf16.mxu0 %v1204
        %2979 = vmatpush1.bf16.msra.mxu0 %v1203
        %2980 = vmatprep.subr.bf16.mxu0 %v1206
        %2981 = vmatpush1.bf16.msra.mxu0 %v1205
        %2982 = vmatprep.subr.bf16.mxu0 %v1208
        %2983 = vmatpush1.bf16.msra.mxu0 %v1207
        %2984 = vmatprep.subr.bf16.mxu0 %v1210
        %2985 = vmatpush1.bf16.msra.mxu0 %v1209
        %2986 = vmatprep.mubr.bf16.mxu0 %v2746
        %2987 = vmatmul.mubr.bf16.gmra.mrb[0].mxu0 %v2745
        %v2988 = vpop.f32.mrb[0].mxu0
        %v2989 = vadd.f32 %v2946, %v2988
        %v2990 = vpop.f32.mrb[0].mxu0
        %v2991 = vadd.f32 %v2948, %v2990
        %v2992 = vpop.f32.mrb[0].mxu0
        %v2993 = vadd.f32 %v2950, %v2992
        %v2994 = vpop.f32.mrb[0].mxu0
        %v2995 = vadd.f32 %v2952, %v2994
        %2996 = vdwg.mxu0
        %2997 = vmatprep.subr.bf16.mxu0 %v1212
        %2998 = vmatpush1.bf16.msra.mxu0 %v1211
        %2999 = vmatprep.subr.bf16.mxu0 %v1214
        %3000 = vmatpush1.bf16.msra.mxu0 %v1213
        %3001 = vmatprep.subr.bf16.mxu0 %v1216
        %3002 = vmatpush1.bf16.msra.mxu0 %v1215
        %3003 = vmatprep.subr.bf16.mxu0 %v1218
        %3004 = vmatpush1.bf16.msra.mxu0 %v1217
        %3005 = vmatprep.subr.bf16.mxu0 %v1220
        %3006 = vmatpush1.bf16.msra.mxu0 %v1219
        %3007 = vmatprep.subr.bf16.mxu0 %v1222
        %3008 = vmatpush1.bf16.msra.mxu0 %v1221
        %3009 = vmatprep.subr.bf16.mxu0 %v1224
        %3010 = vmatpush1.bf16.msra.mxu0 %v1223
        %3011 = vmatprep.subr.bf16.mxu0 %v1226
        %3012 = vmatpush1.bf16.msra.mxu0 %v1225
        %3013 = vmatprep.subr.bf16.mxu0 %v1228
        %3014 = vmatpush1.bf16.msra.mxu0 %v1227
        %3015 = vmatprep.subr.bf16.mxu0 %v1230
        %3016 = vmatpush1.bf16.msra.mxu0 %v1229
        %3017 = vmatprep.subr.bf16.mxu0 %v1232
        %3018 = vmatpush1.bf16.msra.mxu0 %v1231
        %3019 = vmatprep.subr.bf16.mxu0 %v1234
        %3020 = vmatpush1.bf16.msra.mxu0 %v1233
        %3021 = vmatprep.subr.bf16.mxu0 %v1236
        %3022 = vmatpush1.bf16.msra.mxu0 %v1235
        %3023 = vmatprep.subr.bf16.mxu0 %v1238
        %3024 = vmatpush1.bf16.msra.mxu0 %v1237
        %3025 = vmatprep.subr.bf16.mxu0 %v1240
        %3026 = vmatpush1.bf16.msra.mxu0 %v1239
        %3027 = vmatprep.subr.bf16.mxu0 %v1242
        %3028 = vmatpush1.bf16.msra.mxu0 %v1241
        %3029 = vmatprep.mubr.bf16.mxu0 %v2748
        %3030 = vmatmul.mubr.bf16.gmra.mrb[0].mxu0 %v2747
        %v3031 = vpop.f32.mrb[0].mxu0
        %v3032 = vadd.f32 %v2989, %v3031
        %v3033 = vpop.f32.mrb[0].mxu0
        %v3034 = vadd.f32 %v2991, %v3033
        %v3035 = vpop.f32.mrb[0].mxu0
        %v3036 = vadd.f32 %v2993, %v3035
        %v3037 = vpop.f32.mrb[0].mxu0
        %v3038 = vadd.f32 %v2995, %v3037
        %3039 = vdwg.mxu0
        %3040 = vmatprep.subr.bf16.mxu0 %v1244
        %3041 = vmatpush1.bf16.msra.mxu0 %v1243
        %3042 = vmatprep.subr.bf16.mxu0 %v1246
        %3043 = vmatpush1.bf16.msra.mxu0 %v1245
        %3044 = vmatprep.subr.bf16.mxu0 %v1248
        %3045 = vmatpush1.bf16.msra.mxu0 %v1247
        %3046 = vmatprep.subr.bf16.mxu0 %v1250
        %3047 = vmatpush1.bf16.msra.mxu0 %v1249
        %3048 = vmatprep.subr.bf16.mxu0 %v1252
        %3049 = vmatpush1.bf16.msra.mxu0 %v1251
        %3050 = vmatprep.subr.bf16.mxu0 %v1254
        %3051 = vmatpush1.bf16.msra.mxu0 %v1253
        %3052 = vmatprep.subr.bf16.mxu0 %v1256
        %3053 = vmatpush1.bf16.msra.mxu0 %v1255
        %3054 = vmatprep.subr.bf16.mxu0 %v1258
        %3055 = vmatpush1.bf16.msra.mxu0 %v1257
        %3056 = vmatprep.subr.bf16.mxu0 %v1260
        %3057 = vmatpush1.bf16.msra.mxu0 %v1259
        %3058 = vmatprep.subr.bf16.mxu0 %v1262
        %3059 = vmatpush1.bf16.msra.mxu0 %v1261
        %3060 = vmatprep.subr.bf16.mxu0 %v1264
        %3061 = vmatpush1.bf16.msra.mxu0 %v1263
        %3062 = vmatprep.subr.bf16.mxu0 %v1266
        %3063 = vmatpush1.bf16.msra.mxu0 %v1265
        %3064 = vmatprep.subr.bf16.mxu0 %v1268
        %3065 = vmatpush1.bf16.msra.mxu0 %v1267
        %3066 = vmatprep.subr.bf16.mxu0 %v1270
        %3067 = vmatpush1.bf16.msra.mxu0 %v1269
        %3068 = vmatprep.subr.bf16.mxu0 %v1272
        %3069 = vmatpush1.bf16.msra.mxu0 %v1271
        %3070 = vmatprep.subr.bf16.mxu0 %v1274
        %3071 = vmatpush1.bf16.msra.mxu0 %v1273
        %3072 = vmatprep.mubr.bf16.mxu0 %v2750
        %3073 = vmatmul.mubr.bf16.gmra.mrb[0].mxu0 %v2749
        %v3074 = vpop.f32.mrb[0].mxu0
        %v3075 = vadd.f32 %v3032, %v3074
        %v3076 = vpop.f32.mrb[0].mxu0
        %v3077 = vadd.f32 %v3034, %v3076
        %v3078 = vpop.f32.mrb[0].mxu0
        %v3079 = vadd.f32 %v3036, %v3078
        %v3080 = vpop.f32.mrb[0].mxu0
        %v3081 = vadd.f32 %v3038, %v3080
        %3082 = vdwg.mxu0
        %3083 = vmatprep.subr.bf16.mxu0 %v1276
        %3084 = vmatpush1.bf16.msra.mxu0 %v1275
        %3085 = vmatprep.subr.bf16.mxu0 %v1278
        %3086 = vmatpush1.bf16.msra.mxu0 %v1277
        %3087 = vmatprep.subr.bf16.mxu0 %v1280
        %3088 = vmatpush1.bf16.msra.mxu0 %v1279
        %3089 = vmatprep.subr.bf16.mxu0 %v1282
        %3090 = vmatpush1.bf16.msra.mxu0 %v1281
        %3091 = vmatprep.subr.bf16.mxu0 %v1284
        %3092 = vmatpush1.bf16.msra.mxu0 %v1283
        %3093 = vmatprep.subr.bf16.mxu0 %v1286
        %3094 = vmatpush1.bf16.msra.mxu0 %v1285
        %3095 = vmatprep.subr.bf16.mxu0 %v1288
        %3096 = vmatpush1.bf16.msra.mxu0 %v1287
        %3097 = vmatprep.subr.bf16.mxu0 %v1290
        %3098 = vmatpush1.bf16.msra.mxu0 %v1289
        %3099 = vmatprep.subr.bf16.mxu0 %v1292
        %3100 = vmatpush1.bf16.msra.mxu0 %v1291
        %3101 = vmatprep.subr.bf16.mxu0 %v1294
        %3102 = vmatpush1.bf16.msra.mxu0 %v1293
        %3103 = vmatprep.subr.bf16.mxu0 %v1296
        %3104 = vmatpush1.bf16.msra.mxu0 %v1295
        %3105 = vmatprep.subr.bf16.mxu0 %v1298
        %3106 = vmatpush1.bf16.msra.mxu0 %v1297
        %3107 = vmatprep.subr.bf16.mxu0 %v1300
        %3108 = vmatpush1.bf16.msra.mxu0 %v1299
        %3109 = vmatprep.subr.bf16.mxu0 %v1302
        %3110 = vmatpush1.bf16.msra.mxu0 %v1301
        %3111 = vmatprep.subr.bf16.mxu0 %v1304
        %3112 = vmatpush1.bf16.msra.mxu0 %v1303
        %3113 = vmatprep.subr.bf16.mxu0 %v1306
        %3114 = vmatpush1.bf16.msra.mxu0 %v1305
        %3115 = vmatprep.mubr.bf16.mxu0 %v2752
        %3116 = vmatmul.mubr.bf16.gmra.mrb[0].mxu0 %v2751
        %v3117 = vpop.f32.mrb[0].mxu0
        %v3118 = vadd.f32 %v3075, %v3117
        %v3119 = vpop.f32.mrb[0].mxu0
        %v3120 = vadd.f32 %v3077, %v3119
        %v3121 = vpop.f32.mrb[0].mxu0
        %v3122 = vadd.f32 %v3079, %v3121
        %v3123 = vpop.f32.mrb[0].mxu0
        %v3124 = vadd.f32 %v3081, %v3123
        %3125 = vdwg.mxu0
        %3126 = vmatprep.subr.bf16.mxu0 %v1308
        %3127 = vmatpush1.bf16.msra.mxu0 %v1307
        %3128 = vmatprep.subr.bf16.mxu0 %v1310
        %3129 = vmatpush1.bf16.msra.mxu0 %v1309
        %3130 = vmatprep.subr.bf16.mxu0 %v1312
        %3131 = vmatpush1.bf16.msra.mxu0 %v1311
        %3132 = vmatprep.subr.bf16.mxu0 %v1314
        %3133 = vmatpush1.bf16.msra.mxu0 %v1313
        %3134 = vmatprep.subr.bf16.mxu0 %v1316
        %3135 = vmatpush1.bf16.msra.mxu0 %v1315
        %3136 = vmatprep.subr.bf16.mxu0 %v1318
        %3137 = vmatpush1.bf16.msra.mxu0 %v1317
        %3138 = vmatprep.subr.bf16.mxu0 %v1320
        %3139 = vmatpush1.bf16.msra.mxu0 %v1319
        %3140 = vmatprep.subr.bf16.mxu0 %v1322
        %3141 = vmatpush1.bf16.msra.mxu0 %v1321
        %3142 = vmatprep.subr.bf16.mxu0 %v1324
        %3143 = vmatpush1.bf16.msra.mxu0 %v1323
        %3144 = vmatprep.subr.bf16.mxu0 %v1326
        %3145 = vmatpush1.bf16.msra.mxu0 %v1325
        %3146 = vmatprep.subr.bf16.mxu0 %v1328
        %3147 = vmatpush1.bf16.msra.mxu0 %v1327
        %3148 = vmatprep.subr.bf16.mxu0 %v1330
        %3149 = vmatpush1.bf16.msra.mxu0 %v1329
        %3150 = vmatprep.subr.bf16.mxu0 %v1332
        %3151 = vmatpush1.bf16.msra.mxu0 %v1331
        %3152 = vmatprep.subr.bf16.mxu0 %v1334
        %3153 = vmatpush1.bf16.msra.mxu0 %v1333
        %3154 = vmatprep.subr.bf16.mxu0 %v1336
        %3155 = vmatpush1.bf16.msra.mxu0 %v1335
        %3156 = vmatprep.subr.bf16.mxu0 %v1338
        %3157 = vmatpush1.bf16.msra.mxu0 %v1337
        %3158 = vmatprep.mubr.bf16.mxu0 %v2754
        %3159 = vmatmul.mubr.bf16.gmra.mrb[0].mxu0 %v2753
        %v3160 = vpop.f32.mrb[0].mxu0
        %v3161 = vadd.f32 %v3118, %v3160
        %v3162 = vpop.f32.mrb[0].mxu0
        %v3163 = vadd.f32 %v3120, %v3162
        %v3164 = vpop.f32.mrb[0].mxu0
        %v3165 = vadd.f32 %v3122, %v3164
        %v3166 = vpop.f32.mrb[0].mxu0
        %v3167 = vadd.f32 %v3124, %v3166
        %3168 = vdwg.mxu0
        %3169 = vmatprep.subr.bf16.mxu0 %v1340
        %3170 = vmatpush1.bf16.msra.mxu0 %v1339
        %3171 = vmatprep.subr.bf16.mxu0 %v1342
        %3172 = vmatpush1.bf16.msra.mxu0 %v1341
        %3173 = vmatprep.subr.bf16.mxu0 %v1344
        %3174 = vmatpush1.bf16.msra.mxu0 %v1343
        %3175 = vmatprep.subr.bf16.mxu0 %v1346
        %3176 = vmatpush1.bf16.msra.mxu0 %v1345
        %3177 = vmatprep.subr.bf16.mxu0 %v1348
        %3178 = vmatpush1.bf16.msra.mxu0 %v1347
        %3179 = vmatprep.subr.bf16.mxu0 %v1350
        %3180 = vmatpush1.bf16.msra.mxu0 %v1349
        %3181 = vmatprep.subr.bf16.mxu0 %v1352
        %3182 = vmatpush1.bf16.msra.mxu0 %v1351
        %3183 = vmatprep.subr.bf16.mxu0 %v1354
        %3184 = vmatpush1.bf16.msra.mxu0 %v1353
        %3185 = vmatprep.subr.bf16.mxu0 %v1356
        %3186 = vmatpush1.bf16.msra.mxu0 %v1355
        %3187 = vmatprep.subr.bf16.mxu0 %v1358
        %3188 = vmatpush1.bf16.msra.mxu0 %v1357
        %3189 = vmatprep.subr.bf16.mxu0 %v1360
        %3190 = vmatpush1.bf16.msra.mxu0 %v1359
        %3191 = vmatprep.subr.bf16.mxu0 %v1362
        %3192 = vmatpush1.bf16.msra.mxu0 %v1361
        %3193 = vmatprep.subr.bf16.mxu0 %v1364
        %3194 = vmatpush1.bf16.msra.mxu0 %v1363
        %3195 = vmatprep.subr.bf16.mxu0 %v1366
        %3196 = vmatpush1.bf16.msra.mxu0 %v1365
        %3197 = vmatprep.subr.bf16.mxu0 %v1368
        %3198 = vmatpush1.bf16.msra.mxu0 %v1367
        %3199 = vmatprep.subr.bf16.mxu0 %v1370
        %3200 = vmatpush1.bf16.msra.mxu0 %v1369
        %3201 = vmatprep.mubr.bf16.mxu0 %v2756
        %3202 = vmatmul.mubr.bf16.gmra.mrb[0].mxu0 %v2755
        %v3203 = vpop.f32.mrb[0].mxu0
        %v3204 = vadd.f32 %v3161, %v3203
        %v3205 = vpop.f32.mrb[0].mxu0
        %v3206 = vadd.f32 %v3163, %v3205
        %v3207 = vpop.f32.mrb[0].mxu0
        %v3208 = vadd.f32 %v3165, %v3207
        %v3209 = vpop.f32.mrb[0].mxu0
        %v3210 = vadd.f32 %v3167, %v3209
        %3211 = vdwg.mxu0
        %3212 = vmatprep.subr.bf16.mxu0 %v1372
        %3213 = vmatpush1.bf16.msra.mxu0 %v1371
        %3214 = vmatprep.subr.bf16.mxu0 %v1374
        %3215 = vmatpush1.bf16.msra.mxu0 %v1373
        %3216 = vmatprep.subr.bf16.mxu0 %v1376
        %3217 = vmatpush1.bf16.msra.mxu0 %v1375
        %3218 = vmatprep.subr.bf16.mxu0 %v1378
        %3219 = vmatpush1.bf16.msra.mxu0 %v1377
        %3220 = vmatprep.subr.bf16.mxu0 %v1380
        %3221 = vmatpush1.bf16.msra.mxu0 %v1379
        %3222 = vmatprep.subr.bf16.mxu0 %v1382
        %3223 = vmatpush1.bf16.msra.mxu0 %v1381
        %3224 = vmatprep.subr.bf16.mxu0 %v1384
        %3225 = vmatpush1.bf16.msra.mxu0 %v1383
        %3226 = vmatprep.subr.bf16.mxu0 %v1386
        %3227 = vmatpush1.bf16.msra.mxu0 %v1385
        %3228 = vmatprep.subr.bf16.mxu0 %v1388
        %3229 = vmatpush1.bf16.msra.mxu0 %v1387
        %3230 = vmatprep.subr.bf16.mxu0 %v1390
        %3231 = vmatpush1.bf16.msra.mxu0 %v1389
        %3232 = vmatprep.subr.bf16.mxu0 %v1392
        %3233 = vmatpush1.bf16.msra.mxu0 %v1391
        %3234 = vmatprep.subr.bf16.mxu0 %v1394
        %3235 = vmatpush1.bf16.msra.mxu0 %v1393
        %3236 = vmatprep.subr.bf16.mxu0 %v1396
        %3237 = vmatpush1.bf16.msra.mxu0 %v1395
        %3238 = vmatprep.subr.bf16.mxu0 %v1398
        %3239 = vmatpush1.bf16.msra.mxu0 %v1397
        %3240 = vmatprep.subr.bf16.mxu0 %v1400
        %3241 = vmatpush1.bf16.msra.mxu0 %v1399
        %3242 = vmatprep.subr.bf16.mxu0 %v1402
        %3243 = vmatpush1.bf16.msra.mxu0 %v1401
        %3244 = vmatprep.mubr.bf16.mxu0 %v2758
        %3245 = vmatmul.mubr.bf16.gmra.mrb[0].mxu0 %v2757
        %v3246 = vpop.f32.mrb[0].mxu0
        %v3247 = vadd.f32 %v3204, %v3246
        %v3248 = vpop.f32.mrb[0].mxu0
        %v3249 = vadd.f32 %v3206, %v3248
        %v3250 = vpop.f32.mrb[0].mxu0
        %v3251 = vadd.f32 %v3208, %v3250
        %v3252 = vpop.f32.mrb[0].mxu0
        %v3253 = vadd.f32 %v3210, %v3252
        %3254 = vdwg.mxu0
        %3255 = vmatprep.subr.bf16.mxu0 %v1404
        %3256 = vmatpush1.bf16.msra.mxu0 %v1403
        %3257 = vmatprep.subr.bf16.mxu0 %v1406
        %3258 = vmatpush1.bf16.msra.mxu0 %v1405
        %3259 = vmatprep.subr.bf16.mxu0 %v1408
        %3260 = vmatpush1.bf16.msra.mxu0 %v1407
        %3261 = vmatprep.subr.bf16.mxu0 %v1410
        %3262 = vmatpush1.bf16.msra.mxu0 %v1409
        %3263 = vmatprep.subr.bf16.mxu0 %v1412
        %3264 = vmatpush1.bf16.msra.mxu0 %v1411
        %3265 = vmatprep.subr.bf16.mxu0 %v1414
        %3266 = vmatpush1.bf16.msra.mxu0 %v1413
        %3267 = vmatprep.subr.bf16.mxu0 %v1416
        %3268 = vmatpush1.bf16.msra.mxu0 %v1415
        %3269 = vmatprep.subr.bf16.mxu0 %v1418
        %3270 = vmatpush1.bf16.msra.mxu0 %v1417
        %3271 = vmatprep.subr.bf16.mxu0 %v1420
        %3272 = vmatpush1.bf16.msra.mxu0 %v1419
        %3273 = vmatprep.subr.bf16.mxu0 %v1422
        %3274 = vmatpush1.bf16.msra.mxu0 %v1421
        %3275 = vmatprep.subr.bf16.mxu0 %v1424
        %3276 = vmatpush1.bf16.msra.mxu0 %v1423
        %3277 = vmatprep.subr.bf16.mxu0 %v1426
        %3278 = vmatpush1.bf16.msra.mxu0 %v1425
        %3279 = vmatprep.subr.bf16.mxu0 %v1428
        %3280 = vmatpush1.bf16.msra.mxu0 %v1427
        %3281 = vmatprep.subr.bf16.mxu0 %v1430
        %3282 = vmatpush1.bf16.msra.mxu0 %v1429
        %3283 = vmatprep.subr.bf16.mxu0 %v1432
        %3284 = vmatpush1.bf16.msra.mxu0 %v1431
        %3285 = vmatprep.subr.bf16.mxu0 %v1434
        %3286 = vmatpush1.bf16.msra.mxu0 %v1433
        %3287 = vmatprep.mubr.bf16.mxu0 %v2760
        %3288 = vmatmul.mubr.bf16.gmra.mrb[0].mxu0 %v2759
        %v3289 = vpop.f32.mrb[0].mxu0
        %v3290 = vadd.f32 %v3247, %v3289
        %v3291 = vpop.f32.mrb[0].mxu0
        %v3292 = vadd.f32 %v3249, %v3291
        %v3293 = vpop.f32.mrb[0].mxu0
        %v3294 = vadd.f32 %v3251, %v3293
        %v3295 = vpop.f32.mrb[0].mxu0
        %v3296 = vadd.f32 %v3253, %v3295
        %3297 = vdwg.mxu0
        %3298 = vmatprep.subr.bf16.mxu0 %v1436
        %3299 = vmatpush1.bf16.msra.mxu0 %v1435
        %3300 = vmatprep.subr.bf16.mxu0 %v1438
        %3301 = vmatpush1.bf16.msra.mxu0 %v1437
        %3302 = vmatprep.subr.bf16.mxu0 %v1440
        %3303 = vmatpush1.bf16.msra.mxu0 %v1439
        %3304 = vmatprep.subr.bf16.mxu0 %v1442
        %3305 = vmatpush1.bf16.msra.mxu0 %v1441
        %3306 = vmatprep.subr.bf16.mxu0 %v1444
        %3307 = vmatpush1.bf16.msra.mxu0 %v1443
        %3308 = vmatprep.subr.bf16.mxu0 %v1446
        %3309 = vmatpush1.bf16.msra.mxu0 %v1445
        %3310 = vmatprep.subr.bf16.mxu0 %v1448
        %3311 = vmatpush1.bf16.msra.mxu0 %v1447
        %3312 = vmatprep.subr.bf16.mxu0 %v1450
        %3313 = vmatpush1.bf16.msra.mxu0 %v1449
        %3314 = vmatprep.subr.bf16.mxu0 %v1452
        %3315 = vmatpush1.bf16.msra.mxu0 %v1451
        %3316 = vmatprep.subr.bf16.mxu0 %v1454
        %3317 = vmatpush1.bf16.msra.mxu0 %v1453
        %3318 = vmatprep.subr.bf16.mxu0 %v1456
        %3319 = vmatpush1.bf16.msra.mxu0 %v1455
        %3320 = vmatprep.subr.bf16.mxu0 %v1458
        %3321 = vmatpush1.bf16.msra.mxu0 %v1457
        %3322 = vmatprep.subr.bf16.mxu0 %v1460
        %3323 = vmatpush1.bf16.msra.mxu0 %v1459
        %3324 = vmatprep.subr.bf16.mxu0 %v1462
        %3325 = vmatpush1.bf16.msra.mxu0 %v1461
        %3326 = vmatprep.subr.bf16.mxu0 %v1464
        %3327 = vmatpush1.bf16.msra.mxu0 %v1463
        %3328 = vmatprep.subr.bf16.mxu0 %v1466
        %3329 = vmatpush1.bf16.msra.mxu0 %v1465
        %3330 = vmatprep.mubr.bf16.mxu0 %v2762
        %3331 = vmatmul.mubr.bf16.gmra.mrb[0].mxu0 %v2761
        %v3332 = vpop.f32.mrb[0].mxu0
        %v3333 = vadd.f32 %v3290, %v3332
        %v3334 = vpop.f32.mrb[0].mxu0
        %v3335 = vadd.f32 %v3292, %v3334
        %v3336 = vpop.f32.mrb[0].mxu0
        %v3337 = vadd.f32 %v3294, %v3336
        %v3338 = vpop.f32.mrb[0].mxu0
        %v3339 = vadd.f32 %v3296, %v3338
        %3340 = vdwg.mxu0
        %3341 = vmatprep.subr.bf16.mxu0 %v1468
        %3342 = vmatpush1.bf16.msra.mxu0 %v1467
        %3343 = vmatprep.subr.bf16.mxu0 %v1470
        %3344 = vmatpush1.bf16.msra.mxu0 %v1469
        %3345 = vmatprep.subr.bf16.mxu0 %v1472
        %3346 = vmatpush1.bf16.msra.mxu0 %v1471
        %3347 = vmatprep.subr.bf16.mxu0 %v1474
        %3348 = vmatpush1.bf16.msra.mxu0 %v1473
        %3349 = vmatprep.subr.bf16.mxu0 %v1476
        %3350 = vmatpush1.bf16.msra.mxu0 %v1475
        %3351 = vmatprep.subr.bf16.mxu0 %v1478
        %3352 = vmatpush1.bf16.msra.mxu0 %v1477
        %3353 = vmatprep.subr.bf16.mxu0 %v1480
        %3354 = vmatpush1.bf16.msra.mxu0 %v1479
        %3355 = vmatprep.subr.bf16.mxu0 %v1482
        %3356 = vmatpush1.bf16.msra.mxu0 %v1481
        %3357 = vmatprep.subr.bf16.mxu0 %v1484
        %3358 = vmatpush1.bf16.msra.mxu0 %v1483
        %3359 = vmatprep.subr.bf16.mxu0 %v1486
        %3360 = vmatpush1.bf16.msra.mxu0 %v1485
        %3361 = vmatprep.subr.bf16.mxu0 %v1488
        %3362 = vmatpush1.bf16.msra.mxu0 %v1487
        %3363 = vmatprep.subr.bf16.mxu0 %v1490
        %3364 = vmatpush1.bf16.msra.mxu0 %v1489
        %3365 = vmatprep.subr.bf16.mxu0 %v1492
        %3366 = vmatpush1.bf16.msra.mxu0 %v1491
        %3367 = vmatprep.subr.bf16.mxu0 %v1494
        %3368 = vmatpush1.bf16.msra.mxu0 %v1493
        %3369 = vmatprep.subr.bf16.mxu0 %v1496
        %3370 = vmatpush1.bf16.msra.mxu0 %v1495
        %3371 = vmatprep.subr.bf16.mxu0 %v1498
        %3372 = vmatpush1.bf16.msra.mxu0 %v1497
        %3373 = vmatprep.mubr.bf16.mxu0 %v2764
        %3374 = vmatmul.mubr.bf16.gmra.mrb[0].mxu0 %v2763
        %v3375 = vpop.f32.mrb[0].mxu0
        %v3376 = vadd.f32 %v3333, %v3375
        %v3377 = vpop.f32.mrb[0].mxu0
        %v3378 = vadd.f32 %v3335, %v3377
        %v3379 = vpop.f32.mrb[0].mxu0
        %v3380 = vadd.f32 %v3337, %v3379
        %v3381 = vpop.f32.mrb[0].mxu0
        %v3382 = vadd.f32 %v3339, %v3381
        %3383 = vdwg.mxu0
        %3384 = vmatprep.subr.bf16.mxu0 %v1500
        %3385 = vmatpush1.bf16.msra.mxu0 %v1499
        %3386 = vmatprep.subr.bf16.mxu0 %v1502
        %3387 = vmatpush1.bf16.msra.mxu0 %v1501
        %3388 = vmatprep.subr.bf16.mxu0 %v1504
        %3389 = vmatpush1.bf16.msra.mxu0 %v1503
        %3390 = vmatprep.subr.bf16.mxu0 %v1506
        %3391 = vmatpush1.bf16.msra.mxu0 %v1505
        %3392 = vmatprep.subr.bf16.mxu0 %v1508
        %3393 = vmatpush1.bf16.msra.mxu0 %v1507
        %3394 = vmatprep.subr.bf16.mxu0 %v1510
        %3395 = vmatpush1.bf16.msra.mxu0 %v1509
        %3396 = vmatprep.subr.bf16.mxu0 %v1512
        %3397 = vmatpush1.bf16.msra.mxu0 %v1511
        %3398 = vmatprep.subr.bf16.mxu0 %v1514
        %3399 = vmatpush1.bf16.msra.mxu0 %v1513
        %3400 = vmatprep.subr.bf16.mxu0 %v1516
        %3401 = vmatpush1.bf16.msra.mxu0 %v1515
        %3402 = vmatprep.subr.bf16.mxu0 %v1518
        %3403 = vmatpush1.bf16.msra.mxu0 %v1517
        %3404 = vmatprep.subr.bf16.mxu0 %v1520
        %3405 = vmatpush1.bf16.msra.mxu0 %v1519
        %3406 = vmatprep.subr.bf16.mxu0 %v1522
        %3407 = vmatpush1.bf16.msra.mxu0 %v1521
        %3408 = vmatprep.subr.bf16.mxu0 %v1524
        %3409 = vmatpush1.bf16.msra.mxu0 %v1523
        %3410 = vmatprep.subr.bf16.mxu0 %v1526
        %3411 = vmatpush1.bf16.msra.mxu0 %v1525
        %3412 = vmatprep.subr.bf16.mxu0 %v1528
        %3413 = vmatpush1.bf16.msra.mxu0 %v1527
        %3414 = vmatprep.subr.bf16.mxu0 %v1530
        %3415 = vmatpush1.bf16.msra.mxu0 %v1529
        %3416 = vmatprep.mubr.bf16.mxu0 %v2766
        %3417 = vmatmul.mubr.bf16.gmra.mrb[0].mxu0 %v2765
        %v3418 = vpop.f32.mrb[0].mxu0
        %v3419 = vadd.f32 %v3376, %v3418
        %v3420 = vpop.f32.mrb[0].mxu0
        %v3421 = vadd.f32 %v3378, %v3420
        %v3422 = vpop.f32.mrb[0].mxu0
        %v3423 = vadd.f32 %v3380, %v3422
        %v3424 = vpop.f32.mrb[0].mxu0
        %v3425 = vadd.f32 %v3382, %v3424
        %3426 = vdwg.mxu0
        %3427 = vmatprep.subr.bf16.mxu0 %v1532
        %3428 = vmatpush1.bf16.msra.mxu0 %v1531
        %3429 = vmatprep.subr.bf16.mxu0 %v1534
        %3430 = vmatpush1.bf16.msra.mxu0 %v1533
        %3431 = vmatprep.subr.bf16.mxu0 %v1536
        %3432 = vmatpush1.bf16.msra.mxu0 %v1535
        %3433 = vmatprep.subr.bf16.mxu0 %v1538
        %3434 = vmatpush1.bf16.msra.mxu0 %v1537
        %3435 = vmatprep.subr.bf16.mxu0 %v1540
        %3436 = vmatpush1.bf16.msra.mxu0 %v1539
        %3437 = vmatprep.subr.bf16.mxu0 %v1542
        %3438 = vmatpush1.bf16.msra.mxu0 %v1541
        %3439 = vmatprep.subr.bf16.mxu0 %v1544
        %3440 = vmatpush1.bf16.msra.mxu0 %v1543
        %3441 = vmatprep.subr.bf16.mxu0 %v1546
        %3442 = vmatpush1.bf16.msra.mxu0 %v1545
        %3443 = vmatprep.subr.bf16.mxu0 %v1548
        %3444 = vmatpush1.bf16.msra.mxu0 %v1547
        %3445 = vmatprep.subr.bf16.mxu0 %v1550
        %3446 = vmatpush1.bf16.msra.mxu0 %v1549
        %3447 = vmatprep.subr.bf16.mxu0 %v1552
        %3448 = vmatpush1.bf16.msra.mxu0 %v1551
        %3449 = vmatprep.subr.bf16.mxu0 %v1554
        %3450 = vmatpush1.bf16.msra.mxu0 %v1553
        %3451 = vmatprep.subr.bf16.mxu0 %v1556
        %3452 = vmatpush1.bf16.msra.mxu0 %v1555
        %3453 = vmatprep.subr.bf16.mxu0 %v1558
        %3454 = vmatpush1.bf16.msra.mxu0 %v1557
        %3455 = vmatprep.subr.bf16.mxu0 %v1560
        %3456 = vmatpush1.bf16.msra.mxu0 %v1559
        %3457 = vmatprep.subr.bf16.mxu0 %v1562
        %3458 = vmatpush1.bf16.msra.mxu0 %v1561
        %3459 = vmatprep.mubr.bf16.mxu0 %v2768
        %3460 = vmatmul.mubr.bf16.gmra.mrb[0].mxu0 %v2767
        %v3461 = vpop.f32.mrb[0].mxu0
        %v3462 = vadd.f32 %v3419, %v3461
        %v3463 = vpop.f32.mrb[0].mxu0
        %v3464 = vadd.f32 %v3421, %v3463
        %v3465 = vpop.f32.mrb[0].mxu0
        %v3466 = vadd.f32 %v3423, %v3465
        %v3467 = vpop.f32.mrb[0].mxu0
        %v3468 = vadd.f32 %v3425, %v3467
        %3469 = vdwg.mxu0
        %3470 = vmatprep.subr.bf16.mxu0 %v1564
        %3471 = vmatpush1.bf16.msra.mxu0 %v1563
        %3472 = vmatprep.subr.bf16.mxu0 %v1566
        %3473 = vmatpush1.bf16.msra.mxu0 %v1565
        %3474 = vmatprep.subr.bf16.mxu0 %v1568
        %3475 = vmatpush1.bf16.msra.mxu0 %v1567
        %3476 = vmatprep.subr.bf16.mxu0 %v1570
        %3477 = vmatpush1.bf16.msra.mxu0 %v1569
        %3478 = vmatprep.subr.bf16.mxu0 %v1572
        %3479 = vmatpush1.bf16.msra.mxu0 %v1571
        %3480 = vmatprep.subr.bf16.mxu0 %v1574
        %3481 = vmatpush1.bf16.msra.mxu0 %v1573
        %3482 = vmatprep.subr.bf16.mxu0 %v1576
        %3483 = vmatpush1.bf16.msra.mxu0 %v1575
        %3484 = vmatprep.subr.bf16.mxu0 %v1578
        %3485 = vmatpush1.bf16.msra.mxu0 %v1577
        %3486 = vmatprep.subr.bf16.mxu0 %v1580
        %3487 = vmatpush1.bf16.msra.mxu0 %v1579
        %3488 = vmatprep.subr.bf16.mxu0 %v1582
        %3489 = vmatpush1.bf16.msra.mxu0 %v1581
        %3490 = vmatprep.subr.bf16.mxu0 %v1584
        %3491 = vmatpush1.bf16.msra.mxu0 %v1583
        %3492 = vmatprep.subr.bf16.mxu0 %v1586
        %3493 = vmatpush1.bf16.msra.mxu0 %v1585
        %3494 = vmatprep.subr.bf16.mxu0 %v1588
        %3495 = vmatpush1.bf16.msra.mxu0 %v1587
        %3496 = vmatprep.subr.bf16.mxu0 %v1590
        %3497 = vmatpush1.bf16.msra.mxu0 %v1589
        %3498 = vmatprep.subr.bf16.mxu0 %v1592
        %3499 = vmatpush1.bf16.msra.mxu0 %v1591
        %3500 = vmatprep.subr.bf16.mxu0 %v1594
        %3501 = vmatpush1.bf16.msra.mxu0 %v1593
        %3502 = vmatprep.mubr.bf16.mxu0 %v2770
        %3503 = vmatmul.mubr.bf16.gmra.mrb[0].mxu0 %v2769
        %v3504 = vpop.f32.mrb[0].mxu0
        %v3505 = vadd.f32 %v3462, %v3504
        %v3506 = vpop.f32.mrb[0].mxu0
        %v3507 = vadd.f32 %v3464, %v3506
        %v3508 = vpop.f32.mrb[0].mxu0
        %v3509 = vadd.f32 %v3466, %v3508
        %v3510 = vpop.f32.mrb[0].mxu0
        %v3511 = vadd.f32 %v3468, %v3510
        %3512 = vdwg.mxu0
        %3513 = vmatprep.subr.bf16.mxu0 %v1596
        %3514 = vmatpush1.bf16.msra.mxu0 %v1595
        %3515 = vmatprep.subr.bf16.mxu0 %v1598
        %3516 = vmatpush1.bf16.msra.mxu0 %v1597
        %3517 = vmatprep.subr.bf16.mxu0 %v1600
        %3518 = vmatpush1.bf16.msra.mxu0 %v1599
        %3519 = vmatprep.subr.bf16.mxu0 %v1602
        %3520 = vmatpush1.bf16.msra.mxu0 %v1601
        %3521 = vmatprep.subr.bf16.mxu0 %v1604
        %3522 = vmatpush1.bf16.msra.mxu0 %v1603
        %3523 = vmatprep.subr.bf16.mxu0 %v1606
        %3524 = vmatpush1.bf16.msra.mxu0 %v1605
        %3525 = vmatprep.subr.bf16.mxu0 %v1608
        %3526 = vmatpush1.bf16.msra.mxu0 %v1607
        %3527 = vmatprep.subr.bf16.mxu0 %v1610
        %3528 = vmatpush1.bf16.msra.mxu0 %v1609
        %3529 = vmatprep.subr.bf16.mxu0 %v1612
        %3530 = vmatpush1.bf16.msra.mxu0 %v1611
        %3531 = vmatprep.subr.bf16.mxu0 %v1614
        %3532 = vmatpush1.bf16.msra.mxu0 %v1613
        %3533 = vmatprep.subr.bf16.mxu0 %v1616
        %3534 = vmatpush1.bf16.msra.mxu0 %v1615
        %3535 = vmatprep.subr.bf16.mxu0 %v1618
        %3536 = vmatpush1.bf16.msra.mxu0 %v1617
        %3537 = vmatprep.subr.bf16.mxu0 %v1620
        %3538 = vmatpush1.bf16.msra.mxu0 %v1619
        %3539 = vmatprep.subr.bf16.mxu0 %v1622
        %3540 = vmatpush1.bf16.msra.mxu0 %v1621
        %3541 = vmatprep.subr.bf16.mxu0 %v1624
        %3542 = vmatpush1.bf16.msra.mxu0 %v1623
        %3543 = vmatprep.subr.bf16.mxu0 %v1626
        %3544 = vmatpush1.bf16.msra.mxu0 %v1625
        %3545 = vmatprep.mubr.bf16.mxu0 %v2772
        %3546 = vmatmul.mubr.bf16.gmra.mrb[0].mxu0 %v2771
        %v3547 = vpop.f32.mrb[0].mxu0
        %v3548 = vadd.f32 %v3505, %v3547
        %v3549 = vpop.f32.mrb[0].mxu0
        %v3550 = vadd.f32 %v3507, %v3549
        %v3551 = vpop.f32.mrb[0].mxu0
        %v3552 = vadd.f32 %v3509, %v3551
        %v3553 = vpop.f32.mrb[0].mxu0
        %v3554 = vadd.f32 %v3511, %v3553
        %3555 = vdwg.mxu0
        %3556 = vmatprep.subr.bf16.mxu0 %v1628
        %3557 = vmatpush1.bf16.msra.mxu0 %v1627
        %3558 = vmatprep.subr.bf16.mxu0 %v1630
        %3559 = vmatpush1.bf16.msra.mxu0 %v1629
        %3560 = vmatprep.subr.bf16.mxu0 %v1632
        %3561 = vmatpush1.bf16.msra.mxu0 %v1631
        %3562 = vmatprep.subr.bf16.mxu0 %v1634
        %3563 = vmatpush1.bf16.msra.mxu0 %v1633
        %3564 = vmatprep.subr.bf16.mxu0 %v1636
        %3565 = vmatpush1.bf16.msra.mxu0 %v1635
        %3566 = vmatprep.subr.bf16.mxu0 %v1638
        %3567 = vmatpush1.bf16.msra.mxu0 %v1637
        %3568 = vmatprep.subr.bf16.mxu0 %v1640
        %3569 = vmatpush1.bf16.msra.mxu0 %v1639
        %3570 = vmatprep.subr.bf16.mxu0 %v1642
        %3571 = vmatpush1.bf16.msra.mxu0 %v1641
        %3572 = vmatprep.subr.bf16.mxu0 %v1644
        %3573 = vmatpush1.bf16.msra.mxu0 %v1643
        %3574 = vmatprep.subr.bf16.mxu0 %v1646
        %3575 = vmatpush1.bf16.msra.mxu0 %v1645
        %3576 = vmatprep.subr.bf16.mxu0 %v1648
        %3577 = vmatpush1.bf16.msra.mxu0 %v1647
        %3578 = vmatprep.subr.bf16.mxu0 %v1650
        %3579 = vmatpush1.bf16.msra.mxu0 %v1649
        %3580 = vmatprep.subr.bf16.mxu0 %v1652
        %3581 = vmatpush1.bf16.msra.mxu0 %v1651
        %3582 = vmatprep.subr.bf16.mxu0 %v1654
        %3583 = vmatpush1.bf16.msra.mxu0 %v1653
        %3584 = vmatprep.subr.bf16.mxu0 %v1656
        %3585 = vmatpush1.bf16.msra.mxu0 %v1655
        %3586 = vmatprep.subr.bf16.mxu0 %v1658
        %3587 = vmatpush1.bf16.msra.mxu0 %v1657
        %3588 = vmatprep.mubr.bf16.mxu0 %v2774
        %3589 = vmatmul.mubr.bf16.gmra.mrb[0].mxu0 %v2773
        %v3590 = vpop.f32.mrb[0].mxu0
        %v3591 = vadd.f32 %v3548, %v3590
        %v3592 = vpop.f32.mrb[0].mxu0
        %v3593 = vadd.f32 %v3550, %v3592
        %v3594 = vpop.f32.mrb[0].mxu0
        %v3595 = vadd.f32 %v3552, %v3594
        %v3596 = vpop.f32.mrb[0].mxu0
        %v3597 = vadd.f32 %v3554, %v3596
        %3598 = vdwg.mxu0
        %3599 = vmatprep.subr.bf16.mxu0 %v1660
        %3600 = vmatpush1.bf16.msra.mxu0 %v1659
        %3601 = vmatprep.subr.bf16.mxu0 %v1662
        %3602 = vmatpush1.bf16.msra.mxu0 %v1661
        %3603 = vmatprep.subr.bf16.mxu0 %v1664
        %3604 = vmatpush1.bf16.msra.mxu0 %v1663
        %3605 = vmatprep.subr.bf16.mxu0 %v1666
        %3606 = vmatpush1.bf16.msra.mxu0 %v1665
        %3607 = vmatprep.subr.bf16.mxu0 %v1668
        %3608 = vmatpush1.bf16.msra.mxu0 %v1667
        %3609 = vmatprep.subr.bf16.mxu0 %v1670
        %3610 = vmatpush1.bf16.msra.mxu0 %v1669
        %3611 = vmatprep.subr.bf16.mxu0 %v1672
        %3612 = vmatpush1.bf16.msra.mxu0 %v1671
        %3613 = vmatprep.subr.bf16.mxu0 %v1674
        %3614 = vmatpush1.bf16.msra.mxu0 %v1673
        %3615 = vmatprep.subr.bf16.mxu0 %v1676
        %3616 = vmatpush1.bf16.msra.mxu0 %v1675
        %3617 = vmatprep.subr.bf16.mxu0 %v1678
        %3618 = vmatpush1.bf16.msra.mxu0 %v1677
        %3619 = vmatprep.subr.bf16.mxu0 %v1680
        %3620 = vmatpush1.bf16.msra.mxu0 %v1679
        %3621 = vmatprep.subr.bf16.mxu0 %v1682
        %3622 = vmatpush1.bf16.msra.mxu0 %v1681
        %3623 = vmatprep.subr.bf16.mxu0 %v1684
        %3624 = vmatpush1.bf16.msra.mxu0 %v1683
        %3625 = vmatprep.subr.bf16.mxu0 %v1686
        %3626 = vmatpush1.bf16.msra.mxu0 %v1685
        %3627 = vmatprep.subr.bf16.mxu0 %v1688
        %3628 = vmatpush1.bf16.msra.mxu0 %v1687
        %3629 = vmatprep.subr.bf16.mxu0 %v1690
        %3630 = vmatpush1.bf16.msra.mxu0 %v1689
        %3631 = vmatprep.mubr.bf16.mxu0 %v2776
        %3632 = vmatmul.mubr.bf16.gmra.mrb[0].mxu0 %v2775
        %v3633 = vpop.f32.mrb[0].mxu0
        %v3634 = vadd.f32 %v3591, %v3633
        %v3635 = vpop.f32.mrb[0].mxu0
        %v3636 = vadd.f32 %v3593, %v3635
        %v3637 = vpop.f32.mrb[0].mxu0
        %v3638 = vadd.f32 %v3595, %v3637
        %v3639 = vpop.f32.mrb[0].mxu0
        %v3640 = vadd.f32 %v3597, %v3639
        %3641 = vdwg.mxu0
        %3642 = vmatprep.subr.bf16.mxu0 %v1692
        %3643 = vmatpush1.bf16.msra.mxu0 %v1691
        %3644 = vmatprep.subr.bf16.mxu0 %v1694
        %3645 = vmatpush1.bf16.msra.mxu0 %v1693
        %3646 = vmatprep.subr.bf16.mxu0 %v1696
        %3647 = vmatpush1.bf16.msra.mxu0 %v1695
        %3648 = vmatprep.subr.bf16.mxu0 %v1698
        %3649 = vmatpush1.bf16.msra.mxu0 %v1697
        %3650 = vmatprep.subr.bf16.mxu0 %v1700
        %3651 = vmatpush1.bf16.msra.mxu0 %v1699
        %3652 = vmatprep.subr.bf16.mxu0 %v1702
        %3653 = vmatpush1.bf16.msra.mxu0 %v1701
        %3654 = vmatprep.subr.bf16.mxu0 %v1704
        %3655 = vmatpush1.bf16.msra.mxu0 %v1703
        %3656 = vmatprep.subr.bf16.mxu0 %v1706
        %3657 = vmatpush1.bf16.msra.mxu0 %v1705
        %3658 = vmatprep.subr.bf16.mxu0 %v1708
        %3659 = vmatpush1.bf16.msra.mxu0 %v1707
        %3660 = vmatprep.subr.bf16.mxu0 %v1710
        %3661 = vmatpush1.bf16.msra.mxu0 %v1709
        %3662 = vmatprep.subr.bf16.mxu0 %v1712
        %3663 = vmatpush1.bf16.msra.mxu0 %v1711
        %3664 = vmatprep.subr.bf16.mxu0 %v1714
        %3665 = vmatpush1.bf16.msra.mxu0 %v1713
        %3666 = vmatprep.subr.bf16.mxu0 %v1716
        %3667 = vmatpush1.bf16.msra.mxu0 %v1715
        %3668 = vmatprep.subr.bf16.mxu0 %v1718
        %3669 = vmatpush1.bf16.msra.mxu0 %v1717
        %3670 = vmatprep.subr.bf16.mxu0 %v1720
        %3671 = vmatpush1.bf16.msra.mxu0 %v1719
        %3672 = vmatprep.subr.bf16.mxu0 %v1722
        %3673 = vmatpush1.bf16.msra.mxu0 %v1721
        %3674 = vmatprep.mubr.bf16.mxu0 %v2778
        %3675 = vmatmul.mubr.bf16.gmra.mrb[0].mxu0 %v2777
        %v3676 = vpop.f32.mrb[0].mxu0
        %v3677 = vadd.f32 %v3634, %v3676
        %v3678 = vpop.f32.mrb[0].mxu0
        %v3679 = vadd.f32 %v3636, %v3678
        %v3680 = vpop.f32.mrb[0].mxu0
        %v3681 = vadd.f32 %v3638, %v3680
        %v3682 = vpop.f32.mrb[0].mxu0
        %v3683 = vadd.f32 %v3640, %v3682
        %3684 = vdwg.mxu0
        %3685 = vmatprep.subr.bf16.mxu0 %v1724
        %3686 = vmatpush1.bf16.msra.mxu0 %v1723
        %3687 = vmatprep.subr.bf16.mxu0 %v1726
        %3688 = vmatpush1.bf16.msra.mxu0 %v1725
        %3689 = vmatprep.subr.bf16.mxu0 %v1728
        %3690 = vmatpush1.bf16.msra.mxu0 %v1727
        %3691 = vmatprep.subr.bf16.mxu0 %v1730
        %3692 = vmatpush1.bf16.msra.mxu0 %v1729
        %3693 = vmatprep.subr.bf16.mxu0 %v1732
        %3694 = vmatpush1.bf16.msra.mxu0 %v1731
        %3695 = vmatprep.subr.bf16.mxu0 %v1734
        %3696 = vmatpush1.bf16.msra.mxu0 %v1733
        %3697 = vmatprep.subr.bf16.mxu0 %v1736
        %3698 = vmatpush1.bf16.msra.mxu0 %v1735
        %3699 = vmatprep.subr.bf16.mxu0 %v1738
        %3700 = vmatpush1.bf16.msra.mxu0 %v1737
        %3701 = vmatprep.subr.bf16.mxu0 %v1740
        %3702 = vmatpush1.bf16.msra.mxu0 %v1739
        %3703 = vmatprep.subr.bf16.mxu0 %v1742
        %3704 = vmatpush1.bf16.msra.mxu0 %v1741
        %3705 = vmatprep.subr.bf16.mxu0 %v1744
        %3706 = vmatpush1.bf16.msra.mxu0 %v1743
        %3707 = vmatprep.subr.bf16.mxu0 %v1746
        %3708 = vmatpush1.bf16.msra.mxu0 %v1745
        %3709 = vmatprep.subr.bf16.mxu0 %v1748
        %3710 = vmatpush1.bf16.msra.mxu0 %v1747
        %3711 = vmatprep.subr.bf16.mxu0 %v1750
        %3712 = vmatpush1.bf16.msra.mxu0 %v1749
        %3713 = vmatprep.subr.bf16.mxu0 %v1752
        %3714 = vmatpush1.bf16.msra.mxu0 %v1751
        %3715 = vmatprep.subr.bf16.mxu0 %v1754
        %3716 = vmatpush1.bf16.msra.mxu0 %v1753
        %3717 = vmatprep.mubr.bf16.mxu0 %v2780
        %3718 = vmatmul.mubr.bf16.gmra.mrb[0].mxu0 %v2779
        %v3719 = vpop.f32.mrb[0].mxu0
        %v3720 = vadd.f32 %v3677, %v3719
        %v3721 = vpop.f32.mrb[0].mxu0
        %v3722 = vadd.f32 %v3679, %v3721
        %v3723 = vpop.f32.mrb[0].mxu0
        %v3724 = vadd.f32 %v3681, %v3723
        %v3725 = vpop.f32.mrb[0].mxu0
        %v3726 = vadd.f32 %v3683, %v3725
        %3727 = vdwg.mxu0
        %3728 = vmatprep.subr.bf16.mxu0 %v1756
        %3729 = vmatpush1.bf16.msra.mxu0 %v1755
        %3730 = vmatprep.subr.bf16.mxu0 %v1758
        %3731 = vmatpush1.bf16.msra.mxu0 %v1757
        %3732 = vmatprep.subr.bf16.mxu0 %v1760
        %3733 = vmatpush1.bf16.msra.mxu0 %v1759
        %3734 = vmatprep.subr.bf16.mxu0 %v1762
        %3735 = vmatpush1.bf16.msra.mxu0 %v1761
        %3736 = vmatprep.subr.bf16.mxu0 %v1764
        %3737 = vmatpush1.bf16.msra.mxu0 %v1763
        %3738 = vmatprep.subr.bf16.mxu0 %v1766
        %3739 = vmatpush1.bf16.msra.mxu0 %v1765
        %3740 = vmatprep.subr.bf16.mxu0 %v1768
        %3741 = vmatpush1.bf16.msra.mxu0 %v1767
        %3742 = vmatprep.subr.bf16.mxu0 %v1770
        %3743 = vmatpush1.bf16.msra.mxu0 %v1769
        %3744 = vmatprep.subr.bf16.mxu0 %v1772
        %3745 = vmatpush1.bf16.msra.mxu0 %v1771
        %3746 = vmatprep.subr.bf16.mxu0 %v1774
        %3747 = vmatpush1.bf16.msra.mxu0 %v1773
        %3748 = vmatprep.subr.bf16.mxu0 %v1776
        %3749 = vmatpush1.bf16.msra.mxu0 %v1775
        %3750 = vmatprep.subr.bf16.mxu0 %v1778
        %3751 = vmatpush1.bf16.msra.mxu0 %v1777
        %3752 = vmatprep.subr.bf16.mxu0 %v1780
        %3753 = vmatpush1.bf16.msra.mxu0 %v1779
        %3754 = vmatprep.subr.bf16.mxu0 %v1782
        %3755 = vmatpush1.bf16.msra.mxu0 %v1781
        %3756 = vmatprep.subr.bf16.mxu0 %v1784
        %3757 = vmatpush1.bf16.msra.mxu0 %v1783
        %3758 = vmatprep.subr.bf16.mxu0 %v1786
        %3759 = vmatpush1.bf16.msra.mxu0 %v1785
        %3760 = vmatprep.mubr.bf16.mxu0 %v2782
        %3761 = vmatmul.mubr.bf16.gmra.mrb[0].mxu0 %v2781
        %v3762 = vpop.f32.mrb[0].mxu0
        %v3763 = vadd.f32 %v3720, %v3762
        %v3764 = vpop.f32.mrb[0].mxu0
        %v3765 = vadd.f32 %v3722, %v3764
        %v3766 = vpop.f32.mrb[0].mxu0
        %v3767 = vadd.f32 %v3724, %v3766
        %v3768 = vpop.f32.mrb[0].mxu0
        %v3769 = vadd.f32 %v3726, %v3768
        %3770 = vdwg.mxu0
        %3771 = vmatprep.subr.bf16.mxu0 %v1788
        %3772 = vmatpush1.bf16.msra.mxu0 %v1787
        %3773 = vmatprep.subr.bf16.mxu0 %v1790
        %3774 = vmatpush1.bf16.msra.mxu0 %v1789
        %3775 = vmatprep.subr.bf16.mxu0 %v1792
        %3776 = vmatpush1.bf16.msra.mxu0 %v1791
        %3777 = vmatprep.subr.bf16.mxu0 %v1794
        %3778 = vmatpush1.bf16.msra.mxu0 %v1793
        %3779 = vmatprep.subr.bf16.mxu0 %v1796
        %3780 = vmatpush1.bf16.msra.mxu0 %v1795
        %3781 = vmatprep.subr.bf16.mxu0 %v1798
        %3782 = vmatpush1.bf16.msra.mxu0 %v1797
        %3783 = vmatprep.subr.bf16.mxu0 %v1800
        %3784 = vmatpush1.bf16.msra.mxu0 %v1799
        %3785 = vmatprep.subr.bf16.mxu0 %v1802
        %3786 = vmatpush1.bf16.msra.mxu0 %v1801
        %3787 = vmatprep.subr.bf16.mxu0 %v1804
        %3788 = vmatpush1.bf16.msra.mxu0 %v1803
        %3789 = vmatprep.subr.bf16.mxu0 %v1806
        %3790 = vmatpush1.bf16.msra.mxu0 %v1805
        %3791 = vmatprep.subr.bf16.mxu0 %v1808
        %3792 = vmatpush1.bf16.msra.mxu0 %v1807
        %3793 = vmatprep.subr.bf16.mxu0 %v1810
        %3794 = vmatpush1.bf16.msra.mxu0 %v1809
        %3795 = vmatprep.subr.bf16.mxu0 %v1812
        %3796 = vmatpush1.bf16.msra.mxu0 %v1811
        %3797 = vmatprep.subr.bf16.mxu0 %v1814
        %3798 = vmatpush1.bf16.msra.mxu0 %v1813
        %3799 = vmatprep.subr.bf16.mxu0 %v1816
        %3800 = vmatpush1.bf16.msra.mxu0 %v1815
        %3801 = vmatprep.subr.bf16.mxu0 %v1818
        %3802 = vmatpush1.bf16.msra.mxu0 %v1817
        %3803 = vmatprep.mubr.bf16.mxu0 %v2784
        %3804 = vmatmul.mubr.bf16.gmra.mrb[0].mxu0 %v2783
        %v3805 = vpop.f32.mrb[0].mxu0
        %v3806 = vadd.f32 %v3763, %v3805
        %v3807 = vpop.f32.mrb[0].mxu0
        %v3808 = vadd.f32 %v3765, %v3807
        %v3809 = vpop.f32.mrb[0].mxu0
        %v3810 = vadd.f32 %v3767, %v3809
        %v3811 = vpop.f32.mrb[0].mxu0
        %v3812 = vadd.f32 %v3769, %v3811
        %3813 = vdwg.mxu0
        %3814 = vmatprep.subr.bf16.mxu0 %v1820
        %3815 = vmatpush1.bf16.msra.mxu0 %v1819
        %3816 = vmatprep.subr.bf16.mxu0 %v1822
        %3817 = vmatpush1.bf16.msra.mxu0 %v1821
        %3818 = vmatprep.subr.bf16.mxu0 %v1824
        %3819 = vmatpush1.bf16.msra.mxu0 %v1823
        %3820 = vmatprep.subr.bf16.mxu0 %v1826
        %3821 = vmatpush1.bf16.msra.mxu0 %v1825
        %3822 = vmatprep.subr.bf16.mxu0 %v1828
        %3823 = vmatpush1.bf16.msra.mxu0 %v1827
        %3824 = vmatprep.subr.bf16.mxu0 %v1830
        %3825 = vmatpush1.bf16.msra.mxu0 %v1829
        %3826 = vmatprep.subr.bf16.mxu0 %v1832
        %3827 = vmatpush1.bf16.msra.mxu0 %v1831
        %3828 = vmatprep.subr.bf16.mxu0 %v1834
        %3829 = vmatpush1.bf16.msra.mxu0 %v1833
        %3830 = vmatprep.subr.bf16.mxu0 %v1836
        %3831 = vmatpush1.bf16.msra.mxu0 %v1835
        %3832 = vmatprep.subr.bf16.mxu0 %v1838
        %3833 = vmatpush1.bf16.msra.mxu0 %v1837
        %3834 = vmatprep.subr.bf16.mxu0 %v1840
        %3835 = vmatpush1.bf16.msra.mxu0 %v1839
        %3836 = vmatprep.subr.bf16.mxu0 %v1842
        %3837 = vmatpush1.bf16.msra.mxu0 %v1841
        %3838 = vmatprep.subr.bf16.mxu0 %v1844
        %3839 = vmatpush1.bf16.msra.mxu0 %v1843
        %3840 = vmatprep.subr.bf16.mxu0 %v1846
        %3841 = vmatpush1.bf16.msra.mxu0 %v1845
        %3842 = vmatprep.subr.bf16.mxu0 %v1848
        %3843 = vmatpush1.bf16.msra.mxu0 %v1847
        %3844 = vmatprep.subr.bf16.mxu0 %v1850
        %3845 = vmatpush1.bf16.msra.mxu0 %v1849
        %3846 = vmatprep.mubr.bf16.mxu0 %v2786
        %3847 = vmatmul.mubr.bf16.gmra.mrb[0].mxu0 %v2785
        %v3848 = vpop.f32.mrb[0].mxu0
        %v3849 = vadd.f32 %v3806, %v3848
        %v3850 = vpop.f32.mrb[0].mxu0
        %v3851 = vadd.f32 %v3808, %v3850
        %v3852 = vpop.f32.mrb[0].mxu0
        %v3853 = vadd.f32 %v3810, %v3852
        %v3854 = vpop.f32.mrb[0].mxu0
        %v3855 = vadd.f32 %v3812, %v3854
        %3856 = vdwg.mxu0
        %3857 = vmatprep.subr.bf16.mxu0 %v1852
        %3858 = vmatpush1.bf16.msra.mxu0 %v1851
        %3859 = vmatprep.subr.bf16.mxu0 %v1854
        %3860 = vmatpush1.bf16.msra.mxu0 %v1853
        %3861 = vmatprep.subr.bf16.mxu0 %v1856
        %3862 = vmatpush1.bf16.msra.mxu0 %v1855
        %3863 = vmatprep.subr.bf16.mxu0 %v1858
        %3864 = vmatpush1.bf16.msra.mxu0 %v1857
        %3865 = vmatprep.subr.bf16.mxu0 %v1860
        %3866 = vmatpush1.bf16.msra.mxu0 %v1859
        %3867 = vmatprep.subr.bf16.mxu0 %v1862
        %3868 = vmatpush1.bf16.msra.mxu0 %v1861
        %3869 = vmatprep.subr.bf16.mxu0 %v1864
        %3870 = vmatpush1.bf16.msra.mxu0 %v1863
        %3871 = vmatprep.subr.bf16.mxu0 %v1866
        %3872 = vmatpush1.bf16.msra.mxu0 %v1865
        %3873 = vmatprep.subr.bf16.mxu0 %v1868
        %3874 = vmatpush1.bf16.msra.mxu0 %v1867
        %3875 = vmatprep.subr.bf16.mxu0 %v1870
        %3876 = vmatpush1.bf16.msra.mxu0 %v1869
        %3877 = vmatprep.subr.bf16.mxu0 %v1872
        %3878 = vmatpush1.bf16.msra.mxu0 %v1871
        %3879 = vmatprep.subr.bf16.mxu0 %v1874
        %3880 = vmatpush1.bf16.msra.mxu0 %v1873
        %3881 = vmatprep.subr.bf16.mxu0 %v1876
        %3882 = vmatpush1.bf16.msra.mxu0 %v1875
        %3883 = vmatprep.subr.bf16.mxu0 %v1878
        %3884 = vmatpush1.bf16.msra.mxu0 %v1877
        %3885 = vmatprep.subr.bf16.mxu0 %v1880
        %3886 = vmatpush1.bf16.msra.mxu0 %v1879
        %3887 = vmatprep.subr.bf16.mxu0 %v1882
        %3888 = vmatpush1.bf16.msra.mxu0 %v1881
        %3889 = vmatprep.mubr.bf16.mxu0 %v2788
        %3890 = vmatmul.mubr.bf16.gmra.mrb[0].mxu0 %v2787
        %v3891 = vpop.f32.mrb[0].mxu0
        %v3892 = vadd.f32 %v3849, %v3891
        %v3893 = vpop.f32.mrb[0].mxu0
        %v3894 = vadd.f32 %v3851, %v3893
        %v3895 = vpop.f32.mrb[0].mxu0
        %v3896 = vadd.f32 %v3853, %v3895
        %v3897 = vpop.f32.mrb[0].mxu0
        %v3898 = vadd.f32 %v3855, %v3897
        %3899 = vdwg.mxu0
        %3900 = vmatprep.subr.bf16.mxu0 %v1884
        %3901 = vmatpush1.bf16.msra.mxu0 %v1883
        %3902 = vmatprep.subr.bf16.mxu0 %v1886
        %3903 = vmatpush1.bf16.msra.mxu0 %v1885
        %3904 = vmatprep.subr.bf16.mxu0 %v1888
        %3905 = vmatpush1.bf16.msra.mxu0 %v1887
        %3906 = vmatprep.subr.bf16.mxu0 %v1890
        %3907 = vmatpush1.bf16.msra.mxu0 %v1889
        %3908 = vmatprep.subr.bf16.mxu0 %v1892
        %3909 = vmatpush1.bf16.msra.mxu0 %v1891
        %3910 = vmatprep.subr.bf16.mxu0 %v1894
        %3911 = vmatpush1.bf16.msra.mxu0 %v1893
        %3912 = vmatprep.subr.bf16.mxu0 %v1896
        %3913 = vmatpush1.bf16.msra.mxu0 %v1895
        %3914 = vmatprep.subr.bf16.mxu0 %v1898
        %3915 = vmatpush1.bf16.msra.mxu0 %v1897
        %3916 = vmatprep.subr.bf16.mxu0 %v1900
        %3917 = vmatpush1.bf16.msra.mxu0 %v1899
        %3918 = vmatprep.subr.bf16.mxu0 %v1902
        %3919 = vmatpush1.bf16.msra.mxu0 %v1901
        %3920 = vmatprep.subr.bf16.mxu0 %v1904
        %3921 = vmatpush1.bf16.msra.mxu0 %v1903
        %3922 = vmatprep.subr.bf16.mxu0 %v1906
        %3923 = vmatpush1.bf16.msra.mxu0 %v1905
        %3924 = vmatprep.subr.bf16.mxu0 %v1908
        %3925 = vmatpush1.bf16.msra.mxu0 %v1907
        %3926 = vmatprep.subr.bf16.mxu0 %v1910
        %3927 = vmatpush1.bf16.msra.mxu0 %v1909
        %3928 = vmatprep.subr.bf16.mxu0 %v1912
        %3929 = vmatpush1.bf16.msra.mxu0 %v1911
        %3930 = vmatprep.subr.bf16.mxu0 %v1914
        %3931 = vmatpush1.bf16.msra.mxu0 %v1913
        %3932 = vmatprep.mubr.bf16.mxu0 %v2790
        %3933 = vmatmul.mubr.bf16.gmra.mrb[0].mxu0 %v2789
        %v3934 = vpop.f32.mrb[0].mxu0
        %v3935 = vadd.f32 %v3892, %v3934
        %v3936 = vpop.f32.mrb[0].mxu0
        %v3937 = vadd.f32 %v3894, %v3936
        %v3938 = vpop.f32.mrb[0].mxu0
        %v3939 = vadd.f32 %v3896, %v3938
        %v3940 = vpop.f32.mrb[0].mxu0
        %v3941 = vadd.f32 %v3898, %v3940
        %3942 = vdwg.mxu0
        %3943 = vmatprep.subr.bf16.mxu0 %v1916
        %3944 = vmatpush1.bf16.msra.mxu0 %v1915
        %3945 = vmatprep.subr.bf16.mxu0 %v1918
        %3946 = vmatpush1.bf16.msra.mxu0 %v1917
        %3947 = vmatprep.subr.bf16.mxu0 %v1920
        %3948 = vmatpush1.bf16.msra.mxu0 %v1919
        %3949 = vmatprep.subr.bf16.mxu0 %v1922
        %3950 = vmatpush1.bf16.msra.mxu0 %v1921
        %3951 = vmatprep.subr.bf16.mxu0 %v1924
        %3952 = vmatpush1.bf16.msra.mxu0 %v1923
        %3953 = vmatprep.subr.bf16.mxu0 %v1926
        %3954 = vmatpush1.bf16.msra.mxu0 %v1925
        %3955 = vmatprep.subr.bf16.mxu0 %v1928
        %3956 = vmatpush1.bf16.msra.mxu0 %v1927
        %3957 = vmatprep.subr.bf16.mxu0 %v1930
        %3958 = vmatpush1.bf16.msra.mxu0 %v1929
        %3959 = vmatprep.subr.bf16.mxu0 %v1932
        %3960 = vmatpush1.bf16.msra.mxu0 %v1931
        %3961 = vmatprep.subr.bf16.mxu0 %v1934
        %3962 = vmatpush1.bf16.msra.mxu0 %v1933
        %3963 = vmatprep.subr.bf16.mxu0 %v1936
        %3964 = vmatpush1.bf16.msra.mxu0 %v1935
        %3965 = vmatprep.subr.bf16.mxu0 %v1938
        %3966 = vmatpush1.bf16.msra.mxu0 %v1937
        %3967 = vmatprep.subr.bf16.mxu0 %v1940
        %3968 = vmatpush1.bf16.msra.mxu0 %v1939
        %3969 = vmatprep.subr.bf16.mxu0 %v1942
        %3970 = vmatpush1.bf16.msra.mxu0 %v1941
        %3971 = vmatprep.subr.bf16.mxu0 %v1944
        %3972 = vmatpush1.bf16.msra.mxu0 %v1943
        %3973 = vmatprep.subr.bf16.mxu0 %v1946
        %3974 = vmatpush1.bf16.msra.mxu0 %v1945
        %3975 = vmatprep.mubr.bf16.mxu0 %v2792
        %3976 = vmatmul.mubr.bf16.gmra.mrb[0].mxu0 %v2791
        %v3977 = vpop.f32.mrb[0].mxu0
        %v3978 = vadd.f32 %v3935, %v3977
        %v3979 = vpop.f32.mrb[0].mxu0
        %v3980 = vadd.f32 %v3937, %v3979
        %v3981 = vpop.f32.mrb[0].mxu0
        %v3982 = vadd.f32 %v3939, %v3981
        %v3983 = vpop.f32.mrb[0].mxu0
        %v3984 = vadd.f32 %v3941, %v3983
        %3985 = vdwg.mxu0
        %3986 = vmatprep.subr.bf16.mxu0 %v1948
        %3987 = vmatpush1.bf16.msra.mxu0 %v1947
        %3988 = vmatprep.subr.bf16.mxu0 %v1950
        %3989 = vmatpush1.bf16.msra.mxu0 %v1949
        %3990 = vmatprep.subr.bf16.mxu0 %v1952
        %3991 = vmatpush1.bf16.msra.mxu0 %v1951
        %3992 = vmatprep.subr.bf16.mxu0 %v1954
        %3993 = vmatpush1.bf16.msra.mxu0 %v1953
        %3994 = vmatprep.subr.bf16.mxu0 %v1956
        %3995 = vmatpush1.bf16.msra.mxu0 %v1955
        %3996 = vmatprep.subr.bf16.mxu0 %v1958
        %3997 = vmatpush1.bf16.msra.mxu0 %v1957
        %3998 = vmatprep.subr.bf16.mxu0 %v1960
        %3999 = vmatpush1.bf16.msra.mxu0 %v1959
        %4000 = vmatprep.subr.bf16.mxu0 %v1962
        %4001 = vmatpush1.bf16.msra.mxu0 %v1961
        %4002 = vmatprep.subr.bf16.mxu0 %v1964
        %4003 = vmatpush1.bf16.msra.mxu0 %v1963
        %4004 = vmatprep.subr.bf16.mxu0 %v1966
        %4005 = vmatpush1.bf16.msra.mxu0 %v1965
        %4006 = vmatprep.subr.bf16.mxu0 %v1968
        %4007 = vmatpush1.bf16.msra.mxu0 %v1967
        %4008 = vmatprep.subr.bf16.mxu0 %v1970
        %4009 = vmatpush1.bf16.msra.mxu0 %v1969
        %4010 = vmatprep.subr.bf16.mxu0 %v1972
        %4011 = vmatpush1.bf16.msra.mxu0 %v1971
        %4012 = vmatprep.subr.bf16.mxu0 %v1974
        %4013 = vmatpush1.bf16.msra.mxu0 %v1973
        %4014 = vmatprep.subr.bf16.mxu0 %v1976
        %4015 = vmatpush1.bf16.msra.mxu0 %v1975
        %4016 = vmatprep.subr.bf16.mxu0 %v1978
        %4017 = vmatpush1.bf16.msra.mxu0 %v1977
        %4018 = vmatprep.mubr.bf16.mxu0 %v2794
        %4019 = vmatmul.mubr.bf16.gmra.mrb[0].mxu0 %v2793
        %v4020 = vpop.f32.mrb[0].mxu0
        %v4021 = vadd.f32 %v3978, %v4020
        %v4022 = vpop.f32.mrb[0].mxu0
        %v4023 = vadd.f32 %v3980, %v4022
        %v4024 = vpop.f32.mrb[0].mxu0
        %v4025 = vadd.f32 %v3982, %v4024
        %v4026 = vpop.f32.mrb[0].mxu0
        %v4027 = vadd.f32 %v3984, %v4026
        %4028 = vdwg.mxu0
        %4029 = vmatprep.subr.bf16.mxu0 %v1980
        %4030 = vmatpush1.bf16.msra.mxu0 %v1979
        %4031 = vmatprep.subr.bf16.mxu0 %v1982
        %4032 = vmatpush1.bf16.msra.mxu0 %v1981
        %4033 = vmatprep.subr.bf16.mxu0 %v1984
        %4034 = vmatpush1.bf16.msra.mxu0 %v1983
        %4035 = vmatprep.subr.bf16.mxu0 %v1986
        %4036 = vmatpush1.bf16.msra.mxu0 %v1985
        %4037 = vmatprep.subr.bf16.mxu0 %v1988
        %4038 = vmatpush1.bf16.msra.mxu0 %v1987
        %4039 = vmatprep.subr.bf16.mxu0 %v1990
        %4040 = vmatpush1.bf16.msra.mxu0 %v1989
        %4041 = vmatprep.subr.bf16.mxu0 %v1992
        %4042 = vmatpush1.bf16.msra.mxu0 %v1991
        %4043 = vmatprep.subr.bf16.mxu0 %v1994
        %4044 = vmatpush1.bf16.msra.mxu0 %v1993
        %4045 = vmatprep.subr.bf16.mxu0 %v1996
        %4046 = vmatpush1.bf16.msra.mxu0 %v1995
        %4047 = vmatprep.subr.bf16.mxu0 %v1998
        %4048 = vmatpush1.bf16.msra.mxu0 %v1997
        %4049 = vmatprep.subr.bf16.mxu0 %v2000
        %4050 = vmatpush1.bf16.msra.mxu0 %v1999
        %4051 = vmatprep.subr.bf16.mxu0 %v2002
        %4052 = vmatpush1.bf16.msra.mxu0 %v2001
        %4053 = vmatprep.subr.bf16.mxu0 %v2004
        %4054 = vmatpush1.bf16.msra.mxu0 %v2003
        %4055 = vmatprep.subr.bf16.mxu0 %v2006
        %4056 = vmatpush1.bf16.msra.mxu0 %v2005
        %4057 = vmatprep.subr.bf16.mxu0 %v2008
        %4058 = vmatpush1.bf16.msra.mxu0 %v2007
        %4059 = vmatprep.subr.bf16.mxu0 %v2010
        %4060 = vmatpush1.bf16.msra.mxu0 %v2009
        %4061 = vmatprep.mubr.bf16.mxu0 %v2796
        %4062 = vmatmul.mubr.bf16.gmra.mrb[0].mxu0 %v2795
        %v4063 = vpop.f32.mrb[0].mxu0
        %v4064 = vadd.f32 %v4021, %v4063
        %v4065 = vpop.f32.mrb[0].mxu0
        %v4066 = vadd.f32 %v4023, %v4065
        %v4067 = vpop.f32.mrb[0].mxu0
        %v4068 = vadd.f32 %v4025, %v4067
        %v4069 = vpop.f32.mrb[0].mxu0
        %v4070 = vadd.f32 %v4027, %v4069
        %4071 = vdwg.mxu0
        %4072 = vmatprep.subr.bf16.mxu0 %v2012
        %4073 = vmatpush1.bf16.msra.mxu0 %v2011
        %4074 = vmatprep.subr.bf16.mxu0 %v2014
        %4075 = vmatpush1.bf16.msra.mxu0 %v2013
        %4076 = vmatprep.subr.bf16.mxu0 %v2016
        %4077 = vmatpush1.bf16.msra.mxu0 %v2015
        %4078 = vmatprep.subr.bf16.mxu0 %v2018
        %4079 = vmatpush1.bf16.msra.mxu0 %v2017
        %4080 = vmatprep.subr.bf16.mxu0 %v2020
        %4081 = vmatpush1.bf16.msra.mxu0 %v2019
        %4082 = vmatprep.subr.bf16.mxu0 %v2022
        %4083 = vmatpush1.bf16.msra.mxu0 %v2021
        %4084 = vmatprep.subr.bf16.mxu0 %v2024
        %4085 = vmatpush1.bf16.msra.mxu0 %v2023
        %4086 = vmatprep.subr.bf16.mxu0 %v2026
        %4087 = vmatpush1.bf16.msra.mxu0 %v2025
        %4088 = vmatprep.subr.bf16.mxu0 %v2028
        %4089 = vmatpush1.bf16.msra.mxu0 %v2027
        %4090 = vmatprep.subr.bf16.mxu0 %v2030
        %4091 = vmatpush1.bf16.msra.mxu0 %v2029
        %4092 = vmatprep.subr.bf16.mxu0 %v2032
        %4093 = vmatpush1.bf16.msra.mxu0 %v2031
        %4094 = vmatprep.subr.bf16.mxu0 %v2034
        %4095 = vmatpush1.bf16.msra.mxu0 %v2033
        %4096 = vmatprep.subr.bf16.mxu0 %v2036
        %4097 = vmatpush1.bf16.msra.mxu0 %v2035
        %4098 = vmatprep.subr.bf16.mxu0 %v2038
        %4099 = vmatpush1.bf16.msra.mxu0 %v2037
        %4100 = vmatprep.subr.bf16.mxu0 %v2040
        %4101 = vmatpush1.bf16.msra.mxu0 %v2039
        %4102 = vmatprep.subr.bf16.mxu0 %v2042
        %4103 = vmatpush1.bf16.msra.mxu0 %v2041
        %4104 = vmatprep.mubr.bf16.mxu0 %v2798
        %4105 = vmatmul.mubr.bf16.gmra.mrb[0].mxu0 %v2797
        %v4106 = vpop.f32.mrb[0].mxu0
        %v4107 = vadd.f32 %v4064, %v4106
        %v4108 = vpop.f32.mrb[0].mxu0
        %v4109 = vadd.f32 %v4066, %v4108
        %v4110 = vpop.f32.mrb[0].mxu0
        %v4111 = vadd.f32 %v4068, %v4110
        %v4112 = vpop.f32.mrb[0].mxu0
        %v4113 = vadd.f32 %v4070, %v4112
        %4114 = vdwg.mxu0
        %4115 = vmatprep.subr.bf16.mxu0 %v2044
        %4116 = vmatpush1.bf16.msra.mxu0 %v2043
        %4117 = vmatprep.subr.bf16.mxu0 %v2046
        %4118 = vmatpush1.bf16.msra.mxu0 %v2045
        %4119 = vmatprep.subr.bf16.mxu0 %v2048
        %4120 = vmatpush1.bf16.msra.mxu0 %v2047
        %4121 = vmatprep.subr.bf16.mxu0 %v2050
        %4122 = vmatpush1.bf16.msra.mxu0 %v2049
        %4123 = vmatprep.subr.bf16.mxu0 %v2052
        %4124 = vmatpush1.bf16.msra.mxu0 %v2051
        %4125 = vmatprep.subr.bf16.mxu0 %v2054
        %4126 = vmatpush1.bf16.msra.mxu0 %v2053
        %4127 = vmatprep.subr.bf16.mxu0 %v2056
        %4128 = vmatpush1.bf16.msra.mxu0 %v2055
        %4129 = vmatprep.subr.bf16.mxu0 %v2058
        %4130 = vmatpush1.bf16.msra.mxu0 %v2057
        %4131 = vmatprep.subr.bf16.mxu0 %v2060
        %4132 = vmatpush1.bf16.msra.mxu0 %v2059
        %4133 = vmatprep.subr.bf16.mxu0 %v2062
        %4134 = vmatpush1.bf16.msra.mxu0 %v2061
        %4135 = vmatprep.subr.bf16.mxu0 %v2064
        %4136 = vmatpush1.bf16.msra.mxu0 %v2063
        %4137 = vmatprep.subr.bf16.mxu0 %v2066
        %4138 = vmatpush1.bf16.msra.mxu0 %v2065
        %4139 = vmatprep.subr.bf16.mxu0 %v2068
        %4140 = vmatpush1.bf16.msra.mxu0 %v2067
        %4141 = vmatprep.subr.bf16.mxu0 %v2070
        %4142 = vmatpush1.bf16.msra.mxu0 %v2069
        %4143 = vmatprep.subr.bf16.mxu0 %v2072
        %4144 = vmatpush1.bf16.msra.mxu0 %v2071
        %4145 = vmatprep.subr.bf16.mxu0 %v2074
        %4146 = vmatpush1.bf16.msra.mxu0 %v2073
        %4147 = vmatprep.mubr.bf16.mxu0 %v2800
        %4148 = vmatmul.mubr.bf16.gmra.mrb[0].mxu0 %v2799
        %v4149 = vpop.f32.mrb[0].mxu0
        %v4150 = vadd.f32 %v4107, %v4149
        %v4151 = vpop.f32.mrb[0].mxu0
        %v4152 = vadd.f32 %v4109, %v4151
        %v4153 = vpop.f32.mrb[0].mxu0
        %v4154 = vadd.f32 %v4111, %v4153
        %v4155 = vpop.f32.mrb[0].mxu0
        %v4156 = vadd.f32 %v4113, %v4155
        %4157 = vdwg.mxu0
        %4158 = vmatprep.subr.bf16.mxu0 %v2076
        %4159 = vmatpush1.bf16.msra.mxu0 %v2075
        %4160 = vmatprep.subr.bf16.mxu0 %v2078
        %4161 = vmatpush1.bf16.msra.mxu0 %v2077
        %4162 = vmatprep.subr.bf16.mxu0 %v2080
        %4163 = vmatpush1.bf16.msra.mxu0 %v2079
        %4164 = vmatprep.subr.bf16.mxu0 %v2082
        %4165 = vmatpush1.bf16.msra.mxu0 %v2081
        %4166 = vmatprep.subr.bf16.mxu0 %v2084
        %4167 = vmatpush1.bf16.msra.mxu0 %v2083
        %4168 = vmatprep.subr.bf16.mxu0 %v2086
        %4169 = vmatpush1.bf16.msra.mxu0 %v2085
        %4170 = vmatprep.subr.bf16.mxu0 %v2088
        %4171 = vmatpush1.bf16.msra.mxu0 %v2087
        %4172 = vmatprep.subr.bf16.mxu0 %v2090
        %4173 = vmatpush1.bf16.msra.mxu0 %v2089
        %4174 = vmatprep.subr.bf16.mxu0 %v2092
        %4175 = vmatpush1.bf16.msra.mxu0 %v2091
        %4176 = vmatprep.subr.bf16.mxu0 %v2094
        %4177 = vmatpush1.bf16.msra.mxu0 %v2093
        %4178 = vmatprep.subr.bf16.mxu0 %v2096
        %4179 = vmatpush1.bf16.msra.mxu0 %v2095
        %4180 = vmatprep.subr.bf16.mxu0 %v2098
        %4181 = vmatpush1.bf16.msra.mxu0 %v2097
        %4182 = vmatprep.subr.bf16.mxu0 %v2100
        %4183 = vmatpush1.bf16.msra.mxu0 %v2099
        %4184 = vmatprep.subr.bf16.mxu0 %v2102
        %4185 = vmatpush1.bf16.msra.mxu0 %v2101
        %4186 = vmatprep.subr.bf16.mxu0 %v2104
        %4187 = vmatpush1.bf16.msra.mxu0 %v2103
        %4188 = vmatprep.subr.bf16.mxu0 %v2106
        %4189 = vmatpush1.bf16.msra.mxu0 %v2105
        %4190 = vmatprep.mubr.bf16.mxu0 %v2802
        %4191 = vmatmul.mubr.bf16.gmra.mrb[0].mxu0 %v2801
        %v4192 = vpop.f32.mrb[0].mxu0
        %v4193 = vadd.f32 %v4150, %v4192
        %v4194 = vpop.f32.mrb[0].mxu0
        %v4195 = vadd.f32 %v4152, %v4194
        %v4196 = vpop.f32.mrb[0].mxu0
        %v4197 = vadd.f32 %v4154, %v4196
        %v4198 = vpop.f32.mrb[0].mxu0
        %v4199 = vadd.f32 %v4156, %v4198
        %4200 = vdwg.mxu0
        %4201 = vmatprep.subr.bf16.mxu0 %v2108
        %4202 = vmatpush1.bf16.msra.mxu0 %v2107
        %4203 = vmatprep.subr.bf16.mxu0 %v2110
        %4204 = vmatpush1.bf16.msra.mxu0 %v2109
        %4205 = vmatprep.subr.bf16.mxu0 %v2112
        %4206 = vmatpush1.bf16.msra.mxu0 %v2111
        %4207 = vmatprep.subr.bf16.mxu0 %v2114
        %4208 = vmatpush1.bf16.msra.mxu0 %v2113
        %4209 = vmatprep.subr.bf16.mxu0 %v2116
        %4210 = vmatpush1.bf16.msra.mxu0 %v2115
        %4211 = vmatprep.subr.bf16.mxu0 %v2118
        %4212 = vmatpush1.bf16.msra.mxu0 %v2117
        %4213 = vmatprep.subr.bf16.mxu0 %v2120
        %4214 = vmatpush1.bf16.msra.mxu0 %v2119
        %4215 = vmatprep.subr.bf16.mxu0 %v2122
        %4216 = vmatpush1.bf16.msra.mxu0 %v2121
        %4217 = vmatprep.subr.bf16.mxu0 %v2124
        %4218 = vmatpush1.bf16.msra.mxu0 %v2123
        %4219 = vmatprep.subr.bf16.mxu0 %v2126
        %4220 = vmatpush1.bf16.msra.mxu0 %v2125
        %4221 = vmatprep.subr.bf16.mxu0 %v2128
        %4222 = vmatpush1.bf16.msra.mxu0 %v2127
        %4223 = vmatprep.subr.bf16.mxu0 %v2130
        %4224 = vmatpush1.bf16.msra.mxu0 %v2129
        %4225 = vmatprep.subr.bf16.mxu0 %v2132
        %4226 = vmatpush1.bf16.msra.mxu0 %v2131
        %4227 = vmatprep.subr.bf16.mxu0 %v2134
        %4228 = vmatpush1.bf16.msra.mxu0 %v2133
        %4229 = vmatprep.subr.bf16.mxu0 %v2136
        %4230 = vmatpush1.bf16.msra.mxu0 %v2135
        %4231 = vmatprep.subr.bf16.mxu0 %v2138
        %4232 = vmatpush1.bf16.msra.mxu0 %v2137
        %4233 = vmatprep.mubr.bf16.mxu0 %v2804
        %4234 = vmatmul.mubr.bf16.gmra.mrb[0].mxu0 %v2803
        %v4235 = vpop.f32.mrb[0].mxu0
        %v4236 = vadd.f32 %v4193, %v4235
        %v4237 = vpop.f32.mrb[0].mxu0
        %v4238 = vadd.f32 %v4195, %v4237
        %v4239 = vpop.f32.mrb[0].mxu0
        %v4240 = vadd.f32 %v4197, %v4239
        %v4241 = vpop.f32.mrb[0].mxu0
        %v4242 = vadd.f32 %v4199, %v4241
        %4243 = vdwg.mxu0
        %4244 = vmatprep.subr.bf16.mxu0 %v2140
        %4245 = vmatpush1.bf16.msra.mxu0 %v2139
        %4246 = vmatprep.subr.bf16.mxu0 %v2142
        %4247 = vmatpush1.bf16.msra.mxu0 %v2141
        %4248 = vmatprep.subr.bf16.mxu0 %v2144
        %4249 = vmatpush1.bf16.msra.mxu0 %v2143
        %4250 = vmatprep.subr.bf16.mxu0 %v2146
        %4251 = vmatpush1.bf16.msra.mxu0 %v2145
        %4252 = vmatprep.subr.bf16.mxu0 %v2148
        %4253 = vmatpush1.bf16.msra.mxu0 %v2147
        %4254 = vmatprep.subr.bf16.mxu0 %v2150
        %4255 = vmatpush1.bf16.msra.mxu0 %v2149
        %4256 = vmatprep.subr.bf16.mxu0 %v2152
        %4257 = vmatpush1.bf16.msra.mxu0 %v2151
        %4258 = vmatprep.subr.bf16.mxu0 %v2154
        %4259 = vmatpush1.bf16.msra.mxu0 %v2153
        %4260 = vmatprep.subr.bf16.mxu0 %v2156
        %4261 = vmatpush1.bf16.msra.mxu0 %v2155
        %4262 = vmatprep.subr.bf16.mxu0 %v2158
        %4263 = vmatpush1.bf16.msra.mxu0 %v2157
        %4264 = vmatprep.subr.bf16.mxu0 %v2160
        %4265 = vmatpush1.bf16.msra.mxu0 %v2159
        %4266 = vmatprep.subr.bf16.mxu0 %v2162
        %4267 = vmatpush1.bf16.msra.mxu0 %v2161
        %4268 = vmatprep.subr.bf16.mxu0 %v2164
        %4269 = vmatpush1.bf16.msra.mxu0 %v2163
        %4270 = vmatprep.subr.bf16.mxu0 %v2166
        %4271 = vmatpush1.bf16.msra.mxu0 %v2165
        %4272 = vmatprep.subr.bf16.mxu0 %v2168
        %4273 = vmatpush1.bf16.msra.mxu0 %v2167
        %4274 = vmatprep.subr.bf16.mxu0 %v2170
        %4275 = vmatpush1.bf16.msra.mxu0 %v2169
        %4276 = vmatprep.mubr.bf16.mxu0 %v2806
        %4277 = vmatmul.mubr.bf16.gmra.mrb[0].mxu0 %v2805
        %v4278 = vpop.f32.mrb[0].mxu0
        %v4279 = vadd.f32 %v4236, %v4278
        %v4280 = vpop.f32.mrb[0].mxu0
        %v4281 = vadd.f32 %v4238, %v4280
        %v4282 = vpop.f32.mrb[0].mxu0
        %v4283 = vadd.f32 %v4240, %v4282
        %v4284 = vpop.f32.mrb[0].mxu0
        %v4285 = vadd.f32 %v4242, %v4284
        %4286 = vdwg.mxu0
        %4287 = vmatprep.subr.bf16.mxu0 %v2172
        %4288 = vmatpush1.bf16.msra.mxu0 %v2171
        %4289 = vmatprep.subr.bf16.mxu0 %v2174
        %4290 = vmatpush1.bf16.msra.mxu0 %v2173
        %4291 = vmatprep.subr.bf16.mxu0 %v2176
        %4292 = vmatpush1.bf16.msra.mxu0 %v2175
        %4293 = vmatprep.subr.bf16.mxu0 %v2178
        %4294 = vmatpush1.bf16.msra.mxu0 %v2177
        %4295 = vmatprep.subr.bf16.mxu0 %v2180
        %4296 = vmatpush1.bf16.msra.mxu0 %v2179
        %4297 = vmatprep.subr.bf16.mxu0 %v2182
        %4298 = vmatpush1.bf16.msra.mxu0 %v2181
        %4299 = vmatprep.subr.bf16.mxu0 %v2184
        %4300 = vmatpush1.bf16.msra.mxu0 %v2183
        %4301 = vmatprep.subr.bf16.mxu0 %v2186
        %4302 = vmatpush1.bf16.msra.mxu0 %v2185
        %4303 = vmatprep.subr.bf16.mxu0 %v2188
        %4304 = vmatpush1.bf16.msra.mxu0 %v2187
        %4305 = vmatprep.subr.bf16.mxu0 %v2190
        %4306 = vmatpush1.bf16.msra.mxu0 %v2189
        %4307 = vmatprep.subr.bf16.mxu0 %v2192
        %4308 = vmatpush1.bf16.msra.mxu0 %v2191
        %4309 = vmatprep.subr.bf16.mxu0 %v2194
        %4310 = vmatpush1.bf16.msra.mxu0 %v2193
        %4311 = vmatprep.subr.bf16.mxu0 %v2196
        %4312 = vmatpush1.bf16.msra.mxu0 %v2195
        %4313 = vmatprep.subr.bf16.mxu0 %v2198
        %4314 = vmatpush1.bf16.msra.mxu0 %v2197
        %4315 = vmatprep.subr.bf16.mxu0 %v2200
        %4316 = vmatpush1.bf16.msra.mxu0 %v2199
        %4317 = vmatprep.subr.bf16.mxu0 %v2202
        %4318 = vmatpush1.bf16.msra.mxu0 %v2201
        %4319 = vmatprep.mubr.bf16.mxu0 %v2808
        %4320 = vmatmul.mubr.bf16.gmra.mrb[0].mxu0 %v2807
        %v4321 = vpop.f32.mrb[0].mxu0
        %v4322 = vadd.f32 %v4279, %v4321
        %v4323 = vpop.f32.mrb[0].mxu0
        %v4324 = vadd.f32 %v4281, %v4323
        %v4325 = vpop.f32.mrb[0].mxu0
        %v4326 = vadd.f32 %v4283, %v4325
        %v4327 = vpop.f32.mrb[0].mxu0
        %v4328 = vadd.f32 %v4285, %v4327
        %4329 = vdwg.mxu0
        %4330 = vmatprep.subr.bf16.mxu0 %v2204
        %4331 = vmatpush1.bf16.msra.mxu0 %v2203
        %4332 = vmatprep.subr.bf16.mxu0 %v2206
        %4333 = vmatpush1.bf16.msra.mxu0 %v2205
        %4334 = vmatprep.subr.bf16.mxu0 %v2208
        %4335 = vmatpush1.bf16.msra.mxu0 %v2207
        %4336 = vmatprep.subr.bf16.mxu0 %v2210
        %4337 = vmatpush1.bf16.msra.mxu0 %v2209
        %4338 = vmatprep.subr.bf16.mxu0 %v2212
        %4339 = vmatpush1.bf16.msra.mxu0 %v2211
        %4340 = vmatprep.subr.bf16.mxu0 %v2214
        %4341 = vmatpush1.bf16.msra.mxu0 %v2213
        %4342 = vmatprep.subr.bf16.mxu0 %v2216
        %4343 = vmatpush1.bf16.msra.mxu0 %v2215
        %4344 = vmatprep.subr.bf16.mxu0 %v2218
        %4345 = vmatpush1.bf16.msra.mxu0 %v2217
        %4346 = vmatprep.subr.bf16.mxu0 %v2220
        %4347 = vmatpush1.bf16.msra.mxu0 %v2219
        %4348 = vmatprep.subr.bf16.mxu0 %v2222
        %4349 = vmatpush1.bf16.msra.mxu0 %v2221
        %4350 = vmatprep.subr.bf16.mxu0 %v2224
        %4351 = vmatpush1.bf16.msra.mxu0 %v2223
        %4352 = vmatprep.subr.bf16.mxu0 %v2226
        %4353 = vmatpush1.bf16.msra.mxu0 %v2225
        %4354 = vmatprep.subr.bf16.mxu0 %v2228
        %4355 = vmatpush1.bf16.msra.mxu0 %v2227
        %4356 = vmatprep.subr.bf16.mxu0 %v2230
        %4357 = vmatpush1.bf16.msra.mxu0 %v2229
        %4358 = vmatprep.subr.bf16.mxu0 %v2232
        %4359 = vmatpush1.bf16.msra.mxu0 %v2231
        %4360 = vmatprep.subr.bf16.mxu0 %v2234
        %4361 = vmatpush1.bf16.msra.mxu0 %v2233
        %4362 = vmatprep.mubr.bf16.mxu0 %v2810
        %4363 = vmatmul.mubr.bf16.gmra.mrb[0].mxu0 %v2809
        %v4364 = vpop.f32.mrb[0].mxu0
        %v4365 = vadd.f32 %v4322, %v4364
        %v4366 = vpop.f32.mrb[0].mxu0
        %v4367 = vadd.f32 %v4324, %v4366
        %v4368 = vpop.f32.mrb[0].mxu0
        %v4369 = vadd.f32 %v4326, %v4368
        %v4370 = vpop.f32.mrb[0].mxu0
        %v4371 = vadd.f32 %v4328, %v4370
        %4372 = vdwg.mxu0
        %4373 = vmatprep.subr.bf16.mxu0 %v2236
        %4374 = vmatpush1.bf16.msra.mxu0 %v2235
        %4375 = vmatprep.subr.bf16.mxu0 %v2238
        %4376 = vmatpush1.bf16.msra.mxu0 %v2237
        %4377 = vmatprep.subr.bf16.mxu0 %v2240
        %4378 = vmatpush1.bf16.msra.mxu0 %v2239
        %4379 = vmatprep.subr.bf16.mxu0 %v2242
        %4380 = vmatpush1.bf16.msra.mxu0 %v2241
        %4381 = vmatprep.subr.bf16.mxu0 %v2244
        %4382 = vmatpush1.bf16.msra.mxu0 %v2243
        %4383 = vmatprep.subr.bf16.mxu0 %v2246
        %4384 = vmatpush1.bf16.msra.mxu0 %v2245
        %4385 = vmatprep.subr.bf16.mxu0 %v2248
        %4386 = vmatpush1.bf16.msra.mxu0 %v2247
        %4387 = vmatprep.subr.bf16.mxu0 %v2250
        %4388 = vmatpush1.bf16.msra.mxu0 %v2249
        %4389 = vmatprep.subr.bf16.mxu0 %v2252
        %4390 = vmatpush1.bf16.msra.mxu0 %v2251
        %4391 = vmatprep.subr.bf16.mxu0 %v2254
        %4392 = vmatpush1.bf16.msra.mxu0 %v2253
        %4393 = vmatprep.subr.bf16.mxu0 %v2256
        %4394 = vmatpush1.bf16.msra.mxu0 %v2255
        %4395 = vmatprep.subr.bf16.mxu0 %v2258
        %4396 = vmatpush1.bf16.msra.mxu0 %v2257
        %4397 = vmatprep.subr.bf16.mxu0 %v2260
        %4398 = vmatpush1.bf16.msra.mxu0 %v2259
        %4399 = vmatprep.subr.bf16.mxu0 %v2262
        %4400 = vmatpush1.bf16.msra.mxu0 %v2261
        %4401 = vmatprep.subr.bf16.mxu0 %v2264
        %4402 = vmatpush1.bf16.msra.mxu0 %v2263
        %4403 = vmatprep.subr.bf16.mxu0 %v2266
        %4404 = vmatpush1.bf16.msra.mxu0 %v2265
        %4405 = vmatprep.mubr.bf16.mxu0 %v2812
        %4406 = vmatmul.mubr.bf16.gmra.mrb[0].mxu0 %v2811
        %v4407 = vpop.f32.mrb[0].mxu0
        %v4408 = vadd.f32 %v4365, %v4407
        %v4409 = vpop.f32.mrb[0].mxu0
        %v4410 = vadd.f32 %v4367, %v4409
        %v4411 = vpop.f32.mrb[0].mxu0
        %v4412 = vadd.f32 %v4369, %v4411
        %v4413 = vpop.f32.mrb[0].mxu0
        %v4414 = vadd.f32 %v4371, %v4413
        %4415 = vdwg.mxu0
        %4416 = vmatprep.subr.bf16.mxu0 %v2268
        %4417 = vmatpush1.bf16.msra.mxu0 %v2267
        %4418 = vmatprep.subr.bf16.mxu0 %v2270
        %4419 = vmatpush1.bf16.msra.mxu0 %v2269
        %4420 = vmatprep.subr.bf16.mxu0 %v2272
        %4421 = vmatpush1.bf16.msra.mxu0 %v2271
        %4422 = vmatprep.subr.bf16.mxu0 %v2274
        %4423 = vmatpush1.bf16.msra.mxu0 %v2273
        %4424 = vmatprep.subr.bf16.mxu0 %v2276
        %4425 = vmatpush1.bf16.msra.mxu0 %v2275
        %4426 = vmatprep.subr.bf16.mxu0 %v2278
        %4427 = vmatpush1.bf16.msra.mxu0 %v2277
        %4428 = vmatprep.subr.bf16.mxu0 %v2280
        %4429 = vmatpush1.bf16.msra.mxu0 %v2279
        %4430 = vmatprep.subr.bf16.mxu0 %v2282
        %4431 = vmatpush1.bf16.msra.mxu0 %v2281
        %4432 = vmatprep.subr.bf16.mxu0 %v2284
        %4433 = vmatpush1.bf16.msra.mxu0 %v2283
        %4434 = vmatprep.subr.bf16.mxu0 %v2286
        %4435 = vmatpush1.bf16.msra.mxu0 %v2285
        %4436 = vmatprep.subr.bf16.mxu0 %v2288
        %4437 = vmatpush1.bf16.msra.mxu0 %v2287
        %4438 = vmatprep.subr.bf16.mxu0 %v2290
        %4439 = vmatpush1.bf16.msra.mxu0 %v2289
        %4440 = vmatprep.subr.bf16.mxu0 %v2292
        %4441 = vmatpush1.bf16.msra.mxu0 %v2291
        %4442 = vmatprep.subr.bf16.mxu0 %v2294
        %4443 = vmatpush1.bf16.msra.mxu0 %v2293
        %4444 = vmatprep.subr.bf16.mxu0 %v2296
        %4445 = vmatpush1.bf16.msra.mxu0 %v2295
        %4446 = vmatprep.subr.bf16.mxu0 %v2298
        %4447 = vmatpush1.bf16.msra.mxu0 %v2297
        %4448 = vmatprep.mubr.bf16.mxu0 %v2814
        %4449 = vmatmul.mubr.bf16.gmra.mrb[0].mxu0 %v2813
        %v4450 = vpop.f32.mrb[0].mxu0
        %v4451 = vadd.f32 %v4408, %v4450
        %v4452 = vpop.f32.mrb[0].mxu0
        %v4453 = vadd.f32 %v4410, %v4452
        %v4454 = vpop.f32.mrb[0].mxu0
        %v4455 = vadd.f32 %v4412, %v4454
        %v4456 = vpop.f32.mrb[0].mxu0
        %v4457 = vadd.f32 %v4414, %v4456
        %4458 = vdwg.mxu0
        %4459 = vmatprep.subr.bf16.mxu0 %v2300
        %4460 = vmatpush1.bf16.msra.mxu0 %v2299
        %4461 = vmatprep.subr.bf16.mxu0 %v2302
        %4462 = vmatpush1.bf16.msra.mxu0 %v2301
        %4463 = vmatprep.subr.bf16.mxu0 %v2304
        %4464 = vmatpush1.bf16.msra.mxu0 %v2303
        %4465 = vmatprep.subr.bf16.mxu0 %v2306
        %4466 = vmatpush1.bf16.msra.mxu0 %v2305
        %4467 = vmatprep.subr.bf16.mxu0 %v2308
        %4468 = vmatpush1.bf16.msra.mxu0 %v2307
        %4469 = vmatprep.subr.bf16.mxu0 %v2310
        %4470 = vmatpush1.bf16.msra.mxu0 %v2309
        %4471 = vmatprep.subr.bf16.mxu0 %v2312
        %4472 = vmatpush1.bf16.msra.mxu0 %v2311
        %4473 = vmatprep.subr.bf16.mxu0 %v2314
        %4474 = vmatpush1.bf16.msra.mxu0 %v2313
        %4475 = vmatprep.subr.bf16.mxu0 %v2316
        %4476 = vmatpush1.bf16.msra.mxu0 %v2315
        %4477 = vmatprep.subr.bf16.mxu0 %v2318
        %4478 = vmatpush1.bf16.msra.mxu0 %v2317
        %4479 = vmatprep.subr.bf16.mxu0 %v2320
        %4480 = vmatpush1.bf16.msra.mxu0 %v2319
        %4481 = vmatprep.subr.bf16.mxu0 %v2322
        %4482 = vmatpush1.bf16.msra.mxu0 %v2321
        %4483 = vmatprep.subr.bf16.mxu0 %v2324
        %4484 = vmatpush1.bf16.msra.mxu0 %v2323
        %4485 = vmatprep.subr.bf16.mxu0 %v2326
        %4486 = vmatpush1.bf16.msra.mxu0 %v2325
        %4487 = vmatprep.subr.bf16.mxu0 %v2328
        %4488 = vmatpush1.bf16.msra.mxu0 %v2327
        %4489 = vmatprep.subr.bf16.mxu0 %v2330
        %4490 = vmatpush1.bf16.msra.mxu0 %v2329
        %4491 = vmatprep.mubr.bf16.mxu0 %v2816
        %4492 = vmatmul.mubr.bf16.gmra.mrb[0].mxu0 %v2815
        %v4493 = vpop.f32.mrb[0].mxu0
        %v4494 = vadd.f32 %v4451, %v4493
        %v4495 = vpop.f32.mrb[0].mxu0
        %v4496 = vadd.f32 %v4453, %v4495
        %v4497 = vpop.f32.mrb[0].mxu0
        %v4498 = vadd.f32 %v4455, %v4497
        %v4499 = vpop.f32.mrb[0].mxu0
        %v4500 = vadd.f32 %v4457, %v4499
        %4501 = vdwg.mxu0
        %4502 = vmatprep.subr.bf16.mxu0 %v2332
        %4503 = vmatpush1.bf16.msra.mxu0 %v2331
        %4504 = vmatprep.subr.bf16.mxu0 %v2334
        %4505 = vmatpush1.bf16.msra.mxu0 %v2333
        %4506 = vmatprep.subr.bf16.mxu0 %v2336
        %4507 = vmatpush1.bf16.msra.mxu0 %v2335
        %4508 = vmatprep.subr.bf16.mxu0 %v2338
        %4509 = vmatpush1.bf16.msra.mxu0 %v2337
        %4510 = vmatprep.subr.bf16.mxu0 %v2340
        %4511 = vmatpush1.bf16.msra.mxu0 %v2339
        %4512 = vmatprep.subr.bf16.mxu0 %v2342
        %4513 = vmatpush1.bf16.msra.mxu0 %v2341
        %4514 = vmatprep.subr.bf16.mxu0 %v2344
        %4515 = vmatpush1.bf16.msra.mxu0 %v2343
        %4516 = vmatprep.subr.bf16.mxu0 %v2346
        %4517 = vmatpush1.bf16.msra.mxu0 %v2345
        %4518 = vmatprep.subr.bf16.mxu0 %v2348
        %4519 = vmatpush1.bf16.msra.mxu0 %v2347
        %4520 = vmatprep.subr.bf16.mxu0 %v2350
        %4521 = vmatpush1.bf16.msra.mxu0 %v2349
        %4522 = vmatprep.subr.bf16.mxu0 %v2352
        %4523 = vmatpush1.bf16.msra.mxu0 %v2351
        %4524 = vmatprep.subr.bf16.mxu0 %v2354
        %4525 = vmatpush1.bf16.msra.mxu0 %v2353
        %4526 = vmatprep.subr.bf16.mxu0 %v2356
        %4527 = vmatpush1.bf16.msra.mxu0 %v2355
        %4528 = vmatprep.subr.bf16.mxu0 %v2358
        %4529 = vmatpush1.bf16.msra.mxu0 %v2357
        %4530 = vmatprep.subr.bf16.mxu0 %v2360
        %4531 = vmatpush1.bf16.msra.mxu0 %v2359
        %4532 = vmatprep.subr.bf16.mxu0 %v2362
        %4533 = vmatpush1.bf16.msra.mxu0 %v2361
        %4534 = vmatprep.mubr.bf16.mxu0 %v2818
        %4535 = vmatmul.mubr.bf16.gmra.mrb[0].mxu0 %v2817
        %v4536 = vpop.f32.mrb[0].mxu0
        %v4537 = vadd.f32 %v4494, %v4536
        %v4538 = vpop.f32.mrb[0].mxu0
        %v4539 = vadd.f32 %v4496, %v4538
        %v4540 = vpop.f32.mrb[0].mxu0
        %v4541 = vadd.f32 %v4498, %v4540
        %v4542 = vpop.f32.mrb[0].mxu0
        %v4543 = vadd.f32 %v4500, %v4542
        %4544 = vdwg.mxu0
        %4545 = vmatprep.subr.bf16.mxu0 %v2364
        %4546 = vmatpush1.bf16.msra.mxu0 %v2363
        %4547 = vmatprep.subr.bf16.mxu0 %v2366
        %4548 = vmatpush1.bf16.msra.mxu0 %v2365
        %4549 = vmatprep.subr.bf16.mxu0 %v2368
        %4550 = vmatpush1.bf16.msra.mxu0 %v2367
        %4551 = vmatprep.subr.bf16.mxu0 %v2370
        %4552 = vmatpush1.bf16.msra.mxu0 %v2369
        %4553 = vmatprep.subr.bf16.mxu0 %v2372
        %4554 = vmatpush1.bf16.msra.mxu0 %v2371
        %4555 = vmatprep.subr.bf16.mxu0 %v2374
        %4556 = vmatpush1.bf16.msra.mxu0 %v2373
        %4557 = vmatprep.subr.bf16.mxu0 %v2376
        %4558 = vmatpush1.bf16.msra.mxu0 %v2375
        %4559 = vmatprep.subr.bf16.mxu0 %v2378
        %4560 = vmatpush1.bf16.msra.mxu0 %v2377
        %4561 = vmatprep.subr.bf16.mxu0 %v2380
        %4562 = vmatpush1.bf16.msra.mxu0 %v2379
        %4563 = vmatprep.subr.bf16.mxu0 %v2382
        %4564 = vmatpush1.bf16.msra.mxu0 %v2381
        %4565 = vmatprep.subr.bf16.mxu0 %v2384
        %4566 = vmatpush1.bf16.msra.mxu0 %v2383
        %4567 = vmatprep.subr.bf16.mxu0 %v2386
        %4568 = vmatpush1.bf16.msra.mxu0 %v2385
        %4569 = vmatprep.subr.bf16.mxu0 %v2388
        %4570 = vmatpush1.bf16.msra.mxu0 %v2387
        %4571 = vmatprep.subr.bf16.mxu0 %v2390
        %4572 = vmatpush1.bf16.msra.mxu0 %v2389
        %4573 = vmatprep.subr.bf16.mxu0 %v2392
        %4574 = vmatpush1.bf16.msra.mxu0 %v2391
        %4575 = vmatprep.subr.bf16.mxu0 %v2394
        %4576 = vmatpush1.bf16.msra.mxu0 %v2393
        %4577 = vmatprep.mubr.bf16.mxu0 %v2820
        %4578 = vmatmul.mubr.bf16.gmra.mrb[0].mxu0 %v2819
        %v4579 = vpop.f32.mrb[0].mxu0
        %v4580 = vadd.f32 %v4537, %v4579
        %v4581 = vpop.f32.mrb[0].mxu0
        %v4582 = vadd.f32 %v4539, %v4581
        %v4583 = vpop.f32.mrb[0].mxu0
        %v4584 = vadd.f32 %v4541, %v4583
        %v4585 = vpop.f32.mrb[0].mxu0
        %v4586 = vadd.f32 %v4543, %v4585
        %4587 = vdwg.mxu0
        %4588 = vmatprep.subr.bf16.mxu0 %v2396
        %4589 = vmatpush1.bf16.msra.mxu0 %v2395
        %4590 = vmatprep.subr.bf16.mxu0 %v2398
        %4591 = vmatpush1.bf16.msra.mxu0 %v2397
        %4592 = vmatprep.subr.bf16.mxu0 %v2400
        %4593 = vmatpush1.bf16.msra.mxu0 %v2399
        %4594 = vmatprep.subr.bf16.mxu0 %v2402
        %4595 = vmatpush1.bf16.msra.mxu0 %v2401
        %4596 = vmatprep.subr.bf16.mxu0 %v2404
        %4597 = vmatpush1.bf16.msra.mxu0 %v2403
        %4598 = vmatprep.subr.bf16.mxu0 %v2406
        %4599 = vmatpush1.bf16.msra.mxu0 %v2405
        %4600 = vmatprep.subr.bf16.mxu0 %v2408
        %4601 = vmatpush1.bf16.msra.mxu0 %v2407
        %4602 = vmatprep.subr.bf16.mxu0 %v2410
        %4603 = vmatpush1.bf16.msra.mxu0 %v2409
        %4604 = vmatprep.subr.bf16.mxu0 %v2412
        %4605 = vmatpush1.bf16.msra.mxu0 %v2411
        %4606 = vmatprep.subr.bf16.mxu0 %v2414
        %4607 = vmatpush1.bf16.msra.mxu0 %v2413
        %4608 = vmatprep.subr.bf16.mxu0 %v2416
        %4609 = vmatpush1.bf16.msra.mxu0 %v2415
        %4610 = vmatprep.subr.bf16.mxu0 %v2418
        %4611 = vmatpush1.bf16.msra.mxu0 %v2417
        %4612 = vmatprep.subr.bf16.mxu0 %v2420
        %4613 = vmatpush1.bf16.msra.mxu0 %v2419
        %4614 = vmatprep.subr.bf16.mxu0 %v2422
        %4615 = vmatpush1.bf16.msra.mxu0 %v2421
        %4616 = vmatprep.subr.bf16.mxu0 %v2424
        %4617 = vmatpush1.bf16.msra.mxu0 %v2423
        %4618 = vmatprep.subr.bf16.mxu0 %v2426
        %4619 = vmatpush1.bf16.msra.mxu0 %v2425
        %4620 = vmatprep.mubr.bf16.mxu0 %v2822
        %4621 = vmatmul.mubr.bf16.gmra.mrb[0].mxu0 %v2821
        %v4622 = vpop.f32.mrb[0].mxu0
        %v4623 = vadd.f32 %v4580, %v4622
        %v4624 = vpop.f32.mrb[0].mxu0
        %v4625 = vadd.f32 %v4582, %v4624
        %v4626 = vpop.f32.mrb[0].mxu0
        %v4627 = vadd.f32 %v4584, %v4626
        %v4628 = vpop.f32.mrb[0].mxu0
        %v4629 = vadd.f32 %v4586, %v4628
        %4630 = vdwg.mxu0
        %4631 = vmatprep.subr.bf16.mxu0 %v2428
        %4632 = vmatpush1.bf16.msra.mxu0 %v2427
        %4633 = vmatprep.subr.bf16.mxu0 %v2430
        %4634 = vmatpush1.bf16.msra.mxu0 %v2429
        %4635 = vmatprep.subr.bf16.mxu0 %v2432
        %4636 = vmatpush1.bf16.msra.mxu0 %v2431
        %4637 = vmatprep.subr.bf16.mxu0 %v2434
        %4638 = vmatpush1.bf16.msra.mxu0 %v2433
        %4639 = vmatprep.subr.bf16.mxu0 %v2436
        %4640 = vmatpush1.bf16.msra.mxu0 %v2435
        %4641 = vmatprep.subr.bf16.mxu0 %v2438
        %4642 = vmatpush1.bf16.msra.mxu0 %v2437
        %4643 = vmatprep.subr.bf16.mxu0 %v2440
        %4644 = vmatpush1.bf16.msra.mxu0 %v2439
        %4645 = vmatprep.subr.bf16.mxu0 %v2442
        %4646 = vmatpush1.bf16.msra.mxu0 %v2441
        %4647 = vmatprep.subr.bf16.mxu0 %v2444
        %4648 = vmatpush1.bf16.msra.mxu0 %v2443
        %4649 = vmatprep.subr.bf16.mxu0 %v2446
        %4650 = vmatpush1.bf16.msra.mxu0 %v2445
        %4651 = vmatprep.subr.bf16.mxu0 %v2448
        %4652 = vmatpush1.bf16.msra.mxu0 %v2447
        %4653 = vmatprep.subr.bf16.mxu0 %v2450
        %4654 = vmatpush1.bf16.msra.mxu0 %v2449
        %4655 = vmatprep.subr.bf16.mxu0 %v2452
        %4656 = vmatpush1.bf16.msra.mxu0 %v2451
        %4657 = vmatprep.subr.bf16.mxu0 %v2454
        %4658 = vmatpush1.bf16.msra.mxu0 %v2453
        %4659 = vmatprep.subr.bf16.mxu0 %v2456
        %4660 = vmatpush1.bf16.msra.mxu0 %v2455
        %4661 = vmatprep.subr.bf16.mxu0 %v2458
        %4662 = vmatpush1.bf16.msra.mxu0 %v2457
        %4663 = vmatprep.mubr.bf16.mxu0 %v2824
        %4664 = vmatmul.mubr.bf16.gmra.mrb[0].mxu0 %v2823
        %v4665 = vpop.f32.mrb[0].mxu0
        %v4666 = vadd.f32 %v4623, %v4665
        %v4667 = vpop.f32.mrb[0].mxu0
        %v4668 = vadd.f32 %v4625, %v4667
        %v4669 = vpop.f32.mrb[0].mxu0
        %v4670 = vadd.f32 %v4627, %v4669
        %v4671 = vpop.f32.mrb[0].mxu0
        %v4672 = vadd.f32 %v4629, %v4671
        %4673 = vdwg.mxu0
        %4674 = vmatprep.subr.bf16.mxu0 %v2460
        %4675 = vmatpush1.bf16.msra.mxu0 %v2459
        %4676 = vmatprep.subr.bf16.mxu0 %v2462
        %4677 = vmatpush1.bf16.msra.mxu0 %v2461
        %4678 = vmatprep.subr.bf16.mxu0 %v2464
        %4679 = vmatpush1.bf16.msra.mxu0 %v2463
        %4680 = vmatprep.subr.bf16.mxu0 %v2466
        %4681 = vmatpush1.bf16.msra.mxu0 %v2465
        %4682 = vmatprep.subr.bf16.mxu0 %v2468
        %4683 = vmatpush1.bf16.msra.mxu0 %v2467
        %4684 = vmatprep.subr.bf16.mxu0 %v2470
        %4685 = vmatpush1.bf16.msra.mxu0 %v2469
        %4686 = vmatprep.subr.bf16.mxu0 %v2472
        %4687 = vmatpush1.bf16.msra.mxu0 %v2471
        %4688 = vmatprep.subr.bf16.mxu0 %v2474
        %4689 = vmatpush1.bf16.msra.mxu0 %v2473
        %4690 = vmatprep.subr.bf16.mxu0 %v2476
        %4691 = vmatpush1.bf16.msra.mxu0 %v2475
        %4692 = vmatprep.subr.bf16.mxu0 %v2478
        %4693 = vmatpush1.bf16.msra.mxu0 %v2477
        %4694 = vmatprep.subr.bf16.mxu0 %v2480
        %4695 = vmatpush1.bf16.msra.mxu0 %v2479
        %4696 = vmatprep.subr.bf16.mxu0 %v2482
        %4697 = vmatpush1.bf16.msra.mxu0 %v2481
        %4698 = vmatprep.subr.bf16.mxu0 %v2484
        %4699 = vmatpush1.bf16.msra.mxu0 %v2483
        %4700 = vmatprep.subr.bf16.mxu0 %v2486
        %4701 = vmatpush1.bf16.msra.mxu0 %v2485
        %4702 = vmatprep.subr.bf16.mxu0 %v2488
        %4703 = vmatpush1.bf16.msra.mxu0 %v2487
        %4704 = vmatprep.subr.bf16.mxu0 %v2490
        %4705 = vmatpush1.bf16.msra.mxu0 %v2489
        %4706 = vmatprep.mubr.bf16.mxu0 %v2826
        %4707 = vmatmul.mubr.bf16.gmra.mrb[0].mxu0 %v2825
        %v4708 = vpop.f32.mrb[0].mxu0
        %v4709 = vadd.f32 %v4666, %v4708
        %v4710 = vpop.f32.mrb[0].mxu0
        %v4711 = vadd.f32 %v4668, %v4710
        %v4712 = vpop.f32.mrb[0].mxu0
        %v4713 = vadd.f32 %v4670, %v4712
        %v4714 = vpop.f32.mrb[0].mxu0
        %v4715 = vadd.f32 %v4672, %v4714
        %4716 = vdwg.mxu0
        %v4717 = vld [vmem:[%s304] sm:$0x3]
        %v4719 = vlaneseq
        %v4720 = vshrl.u32 %v4719, 7
        %v4721 = vsub.s32 0, %v4720
        %v4722 = vrot.slane %v4717, %v4721
        %v4723 = vlaneseq
        %v4724 = vshrl.u32 %v4723, 7
        %v4725 = vsub.s32 1, %v4724
        %v4726 = vrot.slane %v4717, %v4725
        %v4729 = vmul.f32 %v4709, %v4722
        %v4730 = vmul.f32 %v4711, %v4726
        %v4731 = vmul.f32 %v4713, %v4722
        %v4732 = vmul.f32 %v4715, %v4726
        %v4733 = vld [vmem:[%s313] sm:$0x3]
        %v4735 = vlaneseq
        %v4736 = vshrl.u32 %v4735, 7
        %v4737 = vsub.s32 0, %v4736
        %v4738 = vrot.slane %v4733, %v4737
        %v4739 = vlaneseq
        %v4740 = vshrl.u32 %v4739, 7
        %v4741 = vsub.s32 1, %v4740
        %v4742 = vrot.slane %v4733, %v4741
        %v4745 = vadd.f32 %v4729, %v4738
        %v4746 = vadd.f32 %v4730, %v4742
        %v4747 = vadd.f32 %v4731, %v4738
        %v4748 = vadd.f32 %v4732, %v4742
        %v4749 = vmax.f32 %v4745, 0.0
        %v4750 = vmax.f32 %v4746, 0.0
        %v4751 = vmax.f32 %v4747, 0.0
        %v4752 = vmax.f32 %v4748, 0.0
        %v4753 = vld [vmem:[%s379] sm:$0xff]
        %v4754 = vld [vmem:[%s379 + $0x8] sm:$0xff]
        %v4755 = vld [vmem:[%s379 + $0x10] sm:$0xff]
        %v4756 = vld [vmem:[%s379 + $0x18] sm:$0xff]
        %v4757 = vld [vmem:[%s379 + $0x20] sm:$0xff]
        %v4758 = vld [vmem:[%s379 + $0x28] sm:$0xff]
        %v4759 = vld [vmem:[%s379 + $0x30] sm:$0xff]
        %v4760 = vld [vmem:[%s379 + $0x38] sm:$0xff]
        %v4761 = vld [vmem:[%s379 + $0x40] sm:$0xff]
        %v4762 = vld [vmem:[%s379 + $0x48] sm:$0xff]
        %v4763 = vld [vmem:[%s379 + $0x50] sm:$0xff]
        %v4764 = vld [vmem:[%s379 + $0x58] sm:$0xff]
        %v4765 = vld [vmem:[%s379 + $0x60] sm:$0xff]
        %v4766 = vld [vmem:[%s379 + $0x68] sm:$0xff]
        %v4767 = vld [vmem:[%s379 + $0x70] sm:$0xff]
        %v4768 = vld [vmem:[%s379 + $0x78] sm:$0xff]
        %v4769 = vld [vmem:[%s379 + $0x80] sm:$0xff]
        %v4770 = vld [vmem:[%s379 + $0x88] sm:$0xff]
        %v4771 = vld [vmem:[%s379 + $0x90] sm:$0xff]
        %v4772 = vld [vmem:[%s379 + $0x98] sm:$0xff]
        %v4773 = vld [vmem:[%s379 + $0xa0] sm:$0xff]
        %v4774 = vld [vmem:[%s379 + $0xa8] sm:$0xff]
        %v4775 = vld [vmem:[%s379 + $0xb0] sm:$0xff]
        %v4776 = vld [vmem:[%s379 + $0xb8] sm:$0xff]
        %v4777 = vld [vmem:[%s379 + $0xc0] sm:$0xff]
        %v4778 = vld [vmem:[%s379 + $0xc8] sm:$0xff]
        %v4779 = vld [vmem:[%s379 + $0xd0] sm:$0xff]
        %v4780 = vld [vmem:[%s379 + $0xd8] sm:$0xff]
        %v4781 = vld [vmem:[%s379 + $0xe0] sm:$0xff]
        %v4782 = vld [vmem:[%s379 + $0xe8] sm:$0xff]
        %v4783 = vld [vmem:[%s379 + $0xf0] sm:$0xff]
        %v4784 = vld [vmem:[%s379 + $0xf8] sm:$0xff]
        %4785 = vmatprep.subr.mxu0 0.0
        %4786 = vmatpush1.msra.mxu0 %v4753
        %4787 = vmatprep.subr.mxu0 0.0
        %4788 = vmatpush1.msra.mxu0 %v4754
        %4789 = vmatprep.subr.mxu0 0.0
        %4790 = vmatpush1.msra.mxu0 %v4755
        %4791 = vmatprep.subr.mxu0 0.0
        %4792 = vmatpush1.msra.mxu0 %v4756
        %4793 = vmatprep.subr.mxu0 0.0
        %4794 = vmatpush1.msra.mxu0 %v4757
        %4795 = vmatprep.subr.mxu0 0.0
        %4796 = vmatpush1.msra.mxu0 %v4758
        %4797 = vmatprep.subr.mxu0 0.0
        %4798 = vmatpush1.msra.mxu0 %v4759
        %4799 = vmatprep.subr.mxu0 0.0
        %4800 = vmatpush1.msra.mxu0 %v4760
        %4801 = vmatprep.subr.mxu0 0.0
        %4802 = vmatpush1.msra.mxu0 %v4761
        %4803 = vmatprep.subr.mxu0 0.0
        %4804 = vmatpush1.msra.mxu0 %v4762
        %4805 = vmatprep.subr.mxu0 0.0
        %4806 = vmatpush1.msra.mxu0 %v4763
        %4807 = vmatprep.subr.mxu0 0.0
        %4808 = vmatpush1.msra.mxu0 %v4764
        %4809 = vmatprep.subr.mxu0 0.0
        %4810 = vmatpush1.msra.mxu0 %v4765
        %4811 = vmatprep.subr.mxu0 0.0
        %4812 = vmatpush1.msra.mxu0 %v4766
        %4813 = vmatprep.subr.mxu0 0.0
        %4814 = vmatpush1.msra.mxu0 %v4767
        %4815 = vmatprep.subr.mxu0 0.0
        %4816 = vmatpush1.msra.mxu0 %v4768
        %4817 = vmatprep.subr.mxu0 0.0
        %4818 = vmatpush1.msra.mxu0 %v4769
        %4819 = vmatprep.subr.mxu0 0.0
        %4820 = vmatpush1.msra.mxu0 %v4770
        %4821 = vmatprep.subr.mxu0 0.0
        %4822 = vmatpush1.msra.mxu0 %v4771
        %4823 = vmatprep.subr.mxu0 0.0
        %4824 = vmatpush1.msra.mxu0 %v4772
        %4825 = vmatprep.subr.mxu0 0.0
        %4826 = vmatpush1.msra.mxu0 %v4773
        %4827 = vmatprep.subr.mxu0 0.0
        %4828 = vmatpush1.msra.mxu0 %v4774
        %4829 = vmatprep.subr.mxu0 0.0
        %4830 = vmatpush1.msra.mxu0 %v4775
        %4831 = vmatprep.subr.mxu0 0.0
        %4832 = vmatpush1.msra.mxu0 %v4776
        %4833 = vmatprep.subr.mxu0 0.0
        %4834 = vmatpush1.msra.mxu0 %v4777
        %4835 = vmatprep.subr.mxu0 0.0
        %4836 = vmatpush1.msra.mxu0 %v4778
        %4837 = vmatprep.subr.mxu0 0.0
        %4838 = vmatpush1.msra.mxu0 %v4779
        %4839 = vmatprep.subr.mxu0 0.0
        %4840 = vmatpush1.msra.mxu0 %v4780
        %4841 = vmatprep.subr.mxu0 0.0
        %4842 = vmatpush1.msra.mxu0 %v4781
        %4843 = vmatprep.subr.mxu0 0.0
        %4844 = vmatpush1.msra.mxu0 %v4782
        %4845 = vmatprep.subr.mxu0 0.0
        %4846 = vmatpush1.msra.mxu0 %v4783
        %4847 = vmatprep.subr.mxu0 0.0
        %4848 = vmatpush1.msra.mxu0 %v4784
        %4849 = vmatprep.mubr.f32.mxu0 %v4750
        %4850 = vmatmul.mubr.f32.gmra.mrb[0].mxu0 %v4749
        %v4851 = vpop.f32.mrb[0].mxu0
        %v4852 = vadd.f32 0.0, %v4851
        %v4853 = vpop.f32.mrb[0].mxu0
        %4854 = vmatprep.mubr.f32.mxu0 %v4752
        %4855 = vmatmul.mubr.f32.gmra.mrb[0].mxu0 %v4751
        %v4856 = vpop.f32.mrb[0].mxu0
        %v4857 = vadd.f32 0.0, %v4856
        %v4858 = vpop.f32.mrb[0].mxu0
        %4859 = vdwg.mxu0
        %vm4860 = vcmask 7168
        %4861 = vst.msk [vmem:[%s389] sm:$0xff] %vm4860, %v4852
        %4862 = vst.msk [vmem:[%s389 + $0x8] sm:$0xff] %vm4860, %v4857
        %s4863 = smul.u32 2, %s27
        %p4864 = scmp.lt.s32.totalorder %s26, 1
        %s4865 = scalar_select %p4864, %s26, 1
        %p4866 = scmp.lt.s32.totalorder %s4863, 1
        %s4867 = scalar_select %p4866, %s4863, 1
        %s4868 = smul.addr %s4865, 2
        %s4869 = sadd.s32 %s4867, %s4868
        %s4870 = smul.addr %s4869, 8
        %s4871 = scalar_lea.vmem %s5, %s4870
        // Predicated region
        $region53: #{learner_forward.1} parent=39 // pred_check
          %p4872 = pneg %p184
        $region54: #{learner_forward.1} parent=39 // pred_check_branch
          %4874 = sbr.rel (%p4872) target = $region56
        $region55: #{learner_forward.1} parent=39 // pred_region
          %s4875 = smul.u32 2, %s27
        $region56: #{learner_forward.1} parent=39 // pred_fallthru
          _
      $region40: #{learner_forward.1} parent=5 // pred_fallthru
        _
      %p4876 = scmp.le.s32.totalorder 2, %s17
      // Predicated region
      $region57: #{learner_forward.1} parent=5 // pred_check
        %p4877 = pneg %p4876
      $region58: #{learner_forward.1} parent=5 // pred_check_branch
        %4879 = sbr.rel (%p4877) target = $region60
      $region59: #{learner_forward.1} parent=5 // pred_region
        %s4880 = ssub.s32 %s17, 2
        // Predicated region
        $region61: #{learner_forward.1} parent=59 // pred_check
          %p4881 = pneg %p190
        $region62: #{learner_forward.1} parent=59 // pred_check_branch
          %4883 = sbr.rel (%p4881) target = $region64
        $region63: #{learner_forward.1} parent=59 // pred_region
          %s4884 = smul.u32 2, %s29
          %p4885 = scmp.lt.s32.totalorder %s28, 1
          %s4886 = scalar_select %p4885, %s28, 1
          %p4887 = scmp.lt.s32.totalorder %s4884, 1
          %s4888 = scalar_select %p4887, %s4884, 1
          %s4889 = smul.addr %s4886, 2
          %s4890 = sadd.s32 %s4888, %s4889
          %s4891 = smul.addr %s4890, 8
          %s4892 = scalar_lea.vmem %s5, %s4891
        $region64: #{learner_forward.1} parent=59 // pred_fallthru
          _
      $region60: #{learner_forward.1} parent=5 // pred_fallthru
        _
    $region6: #{learner_forward.1} parent=1 // loop_footer
      %s21 = sadd.s32 1, %s17
    $region7: #{learner_forward.1} parent=1 // loop_footer_branch
      %16 = sbr.rel target = $region3
    $region8: #{learner_forward.1} parent=1 // loop_exit
      _
    %4893 = vsyncpa [#allocation3], 1
    %s4894 = scalar_lea.sflag [#allocation3], 1
    %4895 = vsyncpa %s4894, 1
    %4896 = vsyncpa [#allocation5], 1
    %s4897 = scalar_lea.sflag [#allocation5], 1
    %4898 = vsyncpa %s4897, 1

</llo_original>
